<compile_context>
chip_gen: v7x
topology: tpu7x:2x2x1
jax: 0.10.0
libtpu: 0.0.40
codegen_flags: <defaults>
</compile_context>

<pallas_src>
import jax
import jax.numpy as jnp
from jax import lax
from jax.experimental import pallas as pl
from jax.experimental.pallas import tpu as pltpu


def _make_dense_fusion_kernel(chunk, n_chunks, true_n, padded):
    """Builds the per-batch-element kernel.  Arguments are Python ints/bools,
    so the chunk loop and the pad mask are specialized at trace time."""
    inv_n = 1.0 / float(true_n)

    def kernel(feat1_ref, w2_ref, b2_ref, w3_ref, b3_ref, w4_ref, b4_ref,
               out_ref):
        n_pad = out_ref.shape[-1]

        def chunk_body(c, acc):
            start = pl.multiple_of(c * chunk, chunk)
            sl = pl.ds(start, chunk)

            f1c = feat1_ref[0, :, sl]                       # (128, chunk) f32
            out_ref[0, 0:128, sl] = f1c                     # feat_1 (exact f32)
            f1b = f1c.astype(jnp.bfloat16)

            # Fused conv2_rgb | conv2_cld via block-diagonal (512,128) weight.
            f2 = jnp.maximum(
                jnp.dot(w2_ref[...], f1b, preferred_element_type=jnp.float32)
                + b2_ref[...], 0.0)                         # (512, chunk) f32
            out_ref[0, 128:640, sl] = f2

            # conv3 + ReLU, produced directly in bf16 for the conv4 MXU pass.
            h = jnp.maximum(
                jnp.dot(w3_ref[...], f1b, preferred_element_type=jnp.float32)
                + b3_ref[...], 0.0).astype(jnp.bfloat16)    # (512, chunk)

            # conv4 + ReLU, consumed only by its row-sum (streamed AvgPool).
            r = jnp.maximum(
                jnp.dot(w4_ref[...], h, preferred_element_type=jnp.float32)
                + b4_ref[...], 0.0)                         # (1024, chunk) f32
            if padded:
                col = start + lax.broadcasted_iota(jnp.int32, r.shape, 1)
                r = jnp.where(col < true_n, r, 0.0)
            return acc + jnp.sum(r, axis=1, keepdims=True)

        acc = lax.fori_loop(0, n_chunks, chunk_body,
                            jnp.zeros((1024, 1), jnp.float32), unroll=True)

        # AvgPool1d over the full (true) point axis, broadcast-stored as feat_3.
        mean = acc * inv_n
        out_ref[0, 640:1664, :] = jnp.broadcast_to(mean, (1024, n_pad))

    return kernel


def _vmem_limit_bytes():
    cap = 64 * 1024 * 1024
    try:
        info = pltpu.get_tpu_info()
        cap = int(getattr(info, "vmem_capacity_bytes", cap))
    except Exception:
        pass
    # Leave headroom below the physical cap; v5e/v6e (128 MiB) get a larger
    # budget than v7x (64 MiB).
    return int(min(max(cap - 12 * 1024 * 1024, 32 * 1024 * 1024),
                   112 * 1024 * 1024))


def dense_fusion(rgb_emb, cld_emb, params, num_points=None):
    """rgb_emb, cld_emb: (bs, 64, n_pts) float32 (PyTorch NCW layout).
    Returns (bs, 1664, n_pts) float32, matching DenseFusion.forward."""
    bs, cin, n_pts = rgb_emb.shape
    assert cin == 64 and cld_emb.shape == (bs, 64, n_pts)
    if num_points is None:
        num_points = n_pts
    # AvgPool1d(num_points) followed by .view(-1, 1024, 1) only makes sense when
    # the pool covers the full point axis; assert instead of silently diverging.
    assert num_points == n_pts, "kernel assumes AvgPool1d over the full point axis"

    n_pad = ((n_pts + 127) // 128) * 128
    padded = n_pad != n_pts

    # feat_1 built once in the wrapper (NCW end to end, no transposes anywhere);
    # zero-pad the point axis so every kernel store is unmasked / lane-dense.
    feat_1 = jnp.concatenate([rgb_emb, cld_emb], axis=1).astype(jnp.float32)
    if padded:
        feat_1 = jnp.pad(feat_1, ((0, 0), (0, 0), (0, n_pad - n_pts)))

    (w_rgb, b_rgb, w_cld, b_cld, w3, b3, w4, b4) = params
    # conv2_rgb | conv2_cld fused into one block-diagonal (512, 128) weight.
    w2_bd = jnp.zeros((512, 128), jnp.float32)
    w2_bd = w2_bd.at[0:256, 0:64].set(w_rgb[:, :, 0])
    w2_bd = w2_bd.at[256:512, 64:128].set(w_cld[:, :, 0])
    w2_bd = w2_bd.astype(jnp.bfloat16)
    b2_bd = jnp.concatenate([b_rgb, b_cld])[:, None].astype(jnp.float32)  # (512,1)
    w3_2 = w3[:, :, 0].astype(jnp.bfloat16)                               # (512,128)
    b3_2 = b3[:, None].astype(jnp.float32)
    w4_2 = w4[:, :, 0].astype(jnp.bfloat16)                               # (1024,512)
    b4_2 = b4[:, None].astype(jnp.float32)

    # Largest point chunk in {512, 256, 128} dividing the padded width.
    chunk = next(c for c in (512, 256, 128) if n_pad % c == 0)
    n_chunks = n_pad // chunk
    kernel = _make_dense_fusion_kernel(chunk, n_chunks, n_pts, padded)

    const = lambda shape: pl.BlockSpec(shape, lambda b: (0,) * len(shape))

    out = pl.pallas_call(
        kernel,
        out_shape=jax.ShapeDtypeStruct((bs, 1664, n_pad), jnp.float32),
        grid_spec=pltpu.PrefetchScalarGridSpec(
            num_scalar_prefetch=0,
            grid=(bs,),
            in_specs=[
                pl.BlockSpec((1, 128, n_pad), lambda b: (b, 0, 0)),  # feat_1
                const((512, 128)), const((512, 1)),                  # fused conv2
                const((512, 128)), const((512, 1)),                  # conv3
                const((1024, 512)), const((1024, 1)),                # conv4
            ],
            out_specs=pl.BlockSpec((1, 1664, n_pad), lambda b: (b, 0, 0)),
        ),
        compiler_params=pltpu.CompilerParams(
            dimension_semantics=("parallel",),
            vmem_limit_bytes=_vmem_limit_bytes(),
        ),
    )(feat_1, w2_bd, b2_bd, w3_2, b3_2, w4_2, b4_2)

    if padded:
        out = out[:, :, :n_pts]
    return out


def dense_fusion_ref(rgb_emb, cld_emb, params):
    """Pure-JAX reference mirroring the PyTorch forward (NCW layout, f32)."""
    (w_rgb, b_rgb, w_cld, b_cld, w3, b3, w4, b4) = params
    hp = jax.lax.Precision.HIGHEST

    def conv1(x, w, b):  # x: (bs, Cin, N), w: (Cout, Cin, 1)
        y = jnp.einsum("oc,bcn->bon", w[:, :, 0], x, precision=hp)
        return y + b[None, :, None]

    feat_1 = jnp.concatenate([rgb_emb, cld_emb], axis=1)            # (bs,128,N)
    rgb = jax.nn.relu(conv1(rgb_emb, w_rgb, b_rgb))                 # (bs,256,N)
    cld = jax.nn.relu(conv1(cld_emb, w_cld, b_cld))                 # (bs,256,N)
    feat_2 = jnp.concatenate([rgb, cld], axis=1)                    # (bs,512,N)
    rgbd = jax.nn.relu(conv1(feat_1, w3, b3))                       # (bs,512,N)
    rgbd = jax.nn.relu(conv1(rgbd, w4, b4))                         # (bs,1024,N)
    ap = jnp.mean(rgbd, axis=2, keepdims=True)                      # (bs,1024,1)
    feat_3 = jnp.broadcast_to(ap, rgbd.shape)                       # (bs,1024,N)
    return jnp.concatenate([feat_1, feat_2, feat_3], axis=1)        # (bs,1664,N)


def make_params(key):
    ks = jax.random.split(key, 8)

    def w(k, shape, fan_in):
        return jax.random.normal(k, shape, jnp.float32) * (1.0 / fan_in ** 0.5)

    w_rgb = w(ks[0], (256, 64, 1), 64)
    b_rgb = w(ks[1], (256,), 64)
    w_cld = w(ks[2], (256, 64, 1), 64)
    b_cld = w(ks[3], (256,), 64)
    w3 = w(ks[4], (512, 128, 1), 128)
    b3 = w(ks[5], (512,), 128)
    w4 = w(ks[6], (1024, 512, 1), 512)
    b4 = w(ks[7], (1024,), 512)
    return (w_rgb, b_rgb, w_cld, b_cld, w3, b3, w4, b4)


if __name__ == "__main__":
    import numpy as np

    key = jax.random.PRNGKey(0)
    k_rgb, k_cld, k_params = jax.random.split(key, 3)
    params = make_params(k_params)

    # Test 1: lane-aligned point count (num_points == n_pts, no padding path).
    bs, n_pts = 2, 128
    rgb_emb = jax.random.normal(k_rgb, (bs, 64, n_pts), jnp.float32)
    cld_emb = jax.random.normal(k_cld, (bs, 64, n_pts), jnp.float32)
    out = jax.block_until_ready(dense_fusion(rgb_emb, cld_emb, params))
    assert out.shape == (bs, 1664, n_pts), out.shape
    ref = jax.block_until_ready(dense_fusion_ref(rgb_emb, cld_emb, params))
    # bf16 MXU operands (f32 accumulation) vs f32 HIGHEST reference.
    np.testing.assert_allclose(np.asarray(out), np.asarray(ref),
                               rtol=2e-2, atol=2e-2)

    # Test 2: non-multiple-of-128 point count exercises the pad + masked-mean path.
    bs2, n_pts2 = 1, 96
    rgb2 = jax.random.normal(jax.random.PRNGKey(3), (bs2, 64, n_pts2), jnp.float32)
    cld2 = jax.random.normal(jax.random.PRNGKey(4), (bs2, 64, n_pts2), jnp.float32)
    out2 = jax.block_until_ready(dense_fusion(rgb2, cld2, params))
    assert out2.shape == (bs2, 1664, n_pts2), out2.shape
    ref2 = jax.block_until_ready(dense_fusion_ref(rgb2, cld2, params))
    np.testing.assert_allclose(np.asarray(out2), np.asarray(ref2),
                               rtol=2e-2, atol=2e-2)

    print("KERNEL_OK")
</pallas_src>

<mosaic_0001>
module attributes {stable_mosaic.version = 11 : i64} {
  func.func @kernel(%arg0: i32, %arg1: memref<1x128x128xf32, #tpu.memory_space<vmem>>, %arg2: memref<512x128xbf16, #tpu.memory_space<vmem>>, %arg3: memref<512x1xf32, #tpu.memory_space<vmem>>, %arg4: memref<512x128xbf16, #tpu.memory_space<vmem>>, %arg5: memref<512x1xf32, #tpu.memory_space<vmem>>, %arg6: memref<1024x512xbf16, #tpu.memory_space<vmem>>, %arg7: memref<1024x1xf32, #tpu.memory_space<vmem>>, %arg8: memref<1x1664x128xf32, #tpu.memory_space<vmem>>) attributes {dimension_semantics = [#tpu.dimension_semantics<parallel>], iteration_bounds = array<i64: 2>, scalar_prefetch = 0 : i64, scratch_operands = 0 : i64, tpu.core_type = #tpu.core_type<tc>, window_params = [{transform_indices = @transform_0, window_bounds = array<i64: 1, 128, 128>}, {pipeline_mode = #tpu.pipeline_mode<synchronous>, transform_indices = @transform_1, window_bounds = array<i64: 512, 128>}, {pipeline_mode = #tpu.pipeline_mode<synchronous>, transform_indices = @transform_2, window_bounds = array<i64: 512, 1>}, {pipeline_mode = #tpu.pipeline_mode<synchronous>, transform_indices = @transform_3, window_bounds = array<i64: 512, 128>}, {pipeline_mode = #tpu.pipeline_mode<synchronous>, transform_indices = @transform_4, window_bounds = array<i64: 512, 1>}, {pipeline_mode = #tpu.pipeline_mode<synchronous>, transform_indices = @transform_5, window_bounds = array<i64: 1024, 512>}, {pipeline_mode = #tpu.pipeline_mode<synchronous>, transform_indices = @transform_6, window_bounds = array<i64: 1024, 1>}, {transform_indices = @transform_7, window_bounds = array<i64: 1, 1664, 128>}]} {
    %cst = arith.constant 0.000000e+00 : f32
    %0 = vector.broadcast %cst : f32 to vector<1024x1xf32>
    %c0_i32 = arith.constant 0 : i32
    %c128_i32 = arith.constant 128 : i32
    %1 = arith.muli %c0_i32, %c128_i32 : i32
    %2 = tpu.assume_multiple %1, 128 : i32
    %c0 = arith.constant 0 : index
    %c0_0 = arith.constant 0 : index
    %3 = arith.index_cast %2 : i32 to index
    %4 = vector.load %arg1[%c0, %c0_0, %3] : memref<1x128x128xf32, #tpu.memory_space<vmem>>, vector<1x128x128xf32>
    %5 = vector.shape_cast %4 : vector<1x128x128xf32> to vector<128x128xf32>
    %c0_1 = arith.constant 0 : index
    %c0_2 = arith.constant 0 : index
    %6 = arith.index_cast %2 : i32 to index
    %7 = vector.load %arg8[%c0_1, %c0_2, %6] : memref<1x1664x128xf32, #tpu.memory_space<vmem>>, vector<1x128x128xf32>
    %8 = vector.shape_cast %7 : vector<1x128x128xf32> to vector<128x128xf32>
    %9 = vector.shape_cast %5 : vector<128x128xf32> to vector<1x128x128xf32>
    tpu.vector_store %arg8[%c0_1, %c0_2, %6], %9 {strides = array<i32>} : memref<1x1664x128xf32, #tpu.memory_space<vmem>>, vector<1x128x128xf32>,
    %10 = arith.truncf %5 : vector<128x128xf32> to vector<128x128xbf16>
    %c0_3 = arith.constant 0 : index
    %c0_4 = arith.constant 0 : index
    %11 = vector.load %arg2[%c0_3, %c0_4] : memref<512x128xbf16, #tpu.memory_space<vmem>>, vector<512x128xbf16>
    %cst_5 = arith.constant dense<0.000000e+00> : vector<512x128xf32>
    %12 = tpu.matmul %11, %10, %cst_5 {dimension_numbers = #tpu.dot_dimension_numbers<[1], [0], [0], [1], [0, 0, 1, 1], [], []>} : vector<512x128xbf16>, vector<128x128xbf16>, vector<512x128xf32> -> vector<512x128xf32>
    %c0_6 = arith.constant 0 : index
    %c0_7 = arith.constant 0 : index
    %13 = vector.load %arg3[%c0_6, %c0_7] : memref<512x1xf32, #tpu.memory_space<vmem>>, vector<512x1xf32>
    %14 = vector.broadcast %13 : vector<512x1xf32> to vector<512x128xf32>
    %15 = arith.addf %12, %14 : vector<512x128xf32>
    %cst_8 = arith.constant 0.000000e+00 : f32
    %16 = vector.broadcast %cst_8 : f32 to vector<512x128xf32>
    %17 = arith.maximumf %15, %16 : vector<512x128xf32>
    %c0_9 = arith.constant 0 : index
    %c128 = arith.constant 128 : index
    %18 = arith.index_cast %2 : i32 to index
    %19 = vector.load %arg8[%c0_9, %c128, %18] : memref<1x1664x128xf32, #tpu.memory_space<vmem>>, vector<1x512x128xf32>
    %20 = vector.shape_cast %19 : vector<1x512x128xf32> to vector<512x128xf32>
    %21 = vector.shape_cast %17 : vector<512x128xf32> to vector<1x512x128xf32>
    tpu.vector_store %arg8[%c0_9, %c128, %18], %21 {strides = array<i32>} : memref<1x1664x128xf32, #tpu.memory_space<vmem>>, vector<1x512x128xf32>,
    %c0_10 = arith.constant 0 : index
    %c0_11 = arith.constant 0 : index
    %22 = vector.load %arg4[%c0_10, %c0_11] : memref<512x128xbf16, #tpu.memory_space<vmem>>, vector<512x128xbf16>
    %cst_12 = arith.constant dense<0.000000e+00> : vector<512x128xf32>
    %23 = tpu.matmul %22, %10, %cst_12 {dimension_numbers = #tpu.dot_dimension_numbers<[1], [0], [0], [1], [0, 0, 1, 1], [], []>} : vector<512x128xbf16>, vector<128x128xbf16>, vector<512x128xf32> -> vector<512x128xf32>
    %c0_13 = arith.constant 0 : index
    %c0_14 = arith.constant 0 : index
    %24 = vector.load %arg5[%c0_13, %c0_14] : memref<512x1xf32, #tpu.memory_space<vmem>>, vector<512x1xf32>
    %25 = vector.broadcast %24 : vector<512x1xf32> to vector<512x128xf32>
    %26 = arith.addf %23, %25 : vector<512x128xf32>
    %cst_15 = arith.constant 0.000000e+00 : f32
    %27 = vector.broadcast %cst_15 : f32 to vector<512x128xf32>
    %28 = arith.maximumf %26, %27 : vector<512x128xf32>
    %29 = arith.truncf %28 : vector<512x128xf32> to vector<512x128xbf16>
    %c0_16 = arith.constant 0 : index
    %c0_17 = arith.constant 0 : index
    %30 = vector.load %arg6[%c0_16, %c0_17] : memref<1024x512xbf16, #tpu.memory_space<vmem>>, vector<1024x512xbf16>
    %cst_18 = arith.constant dense<0.000000e+00> : vector<1024x128xf32>
    %31 = tpu.matmul %30, %29, %cst_18 {dimension_numbers = #tpu.dot_dimension_numbers<[1], [0], [0], [1], [0, 0, 1, 1], [], []>} : vector<1024x512xbf16>, vector<512x128xbf16>, vector<1024x128xf32> -> vector<1024x128xf32>
    %c0_19 = arith.constant 0 : index
    %c0_20 = arith.constant 0 : index
    %32 = vector.load %arg7[%c0_19, %c0_20] : memref<1024x1xf32, #tpu.memory_space<vmem>>, vector<1024x1xf32>
    %33 = vector.broadcast %32 : vector<1024x1xf32> to vector<1024x128xf32>
    %34 = arith.addf %31, %33 : vector<1024x128xf32>
    %cst_21 = arith.constant 0.000000e+00 : f32
    %35 = vector.broadcast %cst_21 : f32 to vector<1024x128xf32>
    %36 = arith.maximumf %34, %35 : vector<1024x128xf32>
    %cst_22 = arith.constant dense<0.000000e+00> : vector<1024xf32>
    %37 = vector.multi_reduction <add>, %36, %cst_22 [1] : vector<1024x128xf32> to vector<1024xf32>
    %38 = vector.shape_cast %37 : vector<1024xf32> to vector<1024x1xf32>
    %39 = arith.addf %0, %38 : vector<1024x1xf32>
    %c1_i32 = arith.constant 1 : i32
    %cst_23 = arith.constant 7.812500e-03 : f32
    %40 = vector.broadcast %cst_23 : f32 to vector<1024x1xf32>
    %41 = arith.mulf %39, %40 : vector<1024x1xf32>
    %42 = vector.shape_cast %41 : vector<1024x1xf32> to vector<1024x1xf32>
    %43 = vector.broadcast %42 : vector<1024x1xf32> to vector<1024x128xf32>
    %c0_24 = arith.constant 0 : index
    %c640 = arith.constant 640 : index
    %c0_25 = arith.constant 0 : index
    %44 = vector.load %arg8[%c0_24, %c640, %c0_25] : memref<1x1664x128xf32, #tpu.memory_space<vmem>>, vector<1x1024x128xf32>
    %45 = vector.shape_cast %44 : vector<1x1024x128xf32> to vector<1024x128xf32>
    %46 = vector.shape_cast %43 : vector<1024x128xf32> to vector<1x1024x128xf32>
    tpu.vector_store %arg8[%c0_24, %c640, %c0_25], %46 {strides = array<i32>} : memref<1x1664x128xf32, #tpu.memory_space<vmem>>, vector<1x1024x128xf32>,
    return
  }
  func.func @transform_0(%arg0: i32) -> (i32, i32, i32) {
    %c0_i32 = arith.constant 0 : i32
    %c0_i32_0 = arith.constant 0 : i32
    %c0_i32_1 = arith.constant 0 : i32
    return %arg0, %c0_i32, %c0_i32_0 : i32, i32, i32
  }
  func.func @transform_1(%arg0: i32) -> (i32, i32) {
    %c0_i32 = arith.constant 0 : i32
    %c0_i32_0 = arith.constant 0 : i32
    %c0_i32_1 = arith.constant 0 : i32
    return %c0_i32, %c0_i32_0 : i32, i32
  }
  func.func @transform_2(%arg0: i32) -> (i32, i32) {
    %c0_i32 = arith.constant 0 : i32
    %c0_i32_0 = arith.constant 0 : i32
    %c0_i32_1 = arith.constant 0 : i32
    return %c0_i32, %c0_i32_0 : i32, i32
  }
  func.func @transform_3(%arg0: i32) -> (i32, i32) {
    %c0_i32 = arith.constant 0 : i32
    %c0_i32_0 = arith.constant 0 : i32
    %c0_i32_1 = arith.constant 0 : i32
    return %c0_i32, %c0_i32_0 : i32, i32
  }
  func.func @transform_4(%arg0: i32) -> (i32, i32) {
    %c0_i32 = arith.constant 0 : i32
    %c0_i32_0 = arith.constant 0 : i32
    %c0_i32_1 = arith.constant 0 : i32
    return %c0_i32, %c0_i32_0 : i32, i32
  }
  func.func @transform_5(%arg0: i32) -> (i32, i32) {
    %c0_i32 = arith.constant 0 : i32
    %c0_i32_0 = arith.constant 0 : i32
    %c0_i32_1 = arith.constant 0 : i32
    return %c0_i32, %c0_i32_0 : i32, i32
  }
  func.func @transform_6(%arg0: i32) -> (i32, i32) {
    %c0_i32 = arith.constant 0 : i32
    %c0_i32_0 = arith.constant 0 : i32
    %c0_i32_1 = arith.constant 0 : i32
    return %c0_i32, %c0_i32_0 : i32, i32
  }
  func.func @transform_7(%arg0: i32) -> (i32, i32, i32) {
    %c0_i32 = arith.constant 0 : i32
    %c0_i32_0 = arith.constant 0 : i32
    %c0_i32_1 = arith.constant 0 : i32
    return %arg0, %c0_i32, %c0_i32_0 : i32, i32, i32
  }
}

</mosaic_0001>

<llo_original>
// kernel: tpu_custom_call.1
$region0: #{tpu_custom_call.1}
  #allocation0 [shape = 'u32[]', space=smem, size = 0x4, offset = 0x4, fixed_abs, tag = 'smem constant byte address 0x4 - core index']
  #allocation1 [shape = 'u32[144,128]{1,0:T(1,128)}', space=vmem, size = 0x12000, scoped, tag = 'internal scratch']
  %s0 = inlined_call_operand.hbm [shape: f32[2,128,128], index: 0, kind: input, shape index: {}]
  %s1 = inlined_call_operand.hbm [shape: bf16[512,128], index: 1, kind: input, shape index: {}]
  %s2 = inlined_call_operand.vmem [shape: f32[512,1], index: 2, kind: input, shape index: {}]
  %s3 = inlined_call_operand.hbm [shape: bf16[512,128], index: 3, kind: input, shape index: {}]
  %s4 = inlined_call_operand.vmem [shape: f32[512,1], index: 4, kind: input, shape index: {}]
  %s5 = inlined_call_operand.vmem [shape: bf16[1024,512], index: 5, kind: input, shape index: {}]
  %s6 = inlined_call_operand.vmem [shape: f32[1024,1], index: 6, kind: input, shape index: {}]
  %s7 = inlined_call_operand.hbm [shape: f32[2,1664,128], index: 7, kind: output, shape index: {}]
  %s8 = sld [smem:[#allocation0]]
  $region73: #{tpu_custom_call.1} parent=0
    _
  %s10 = ssub.s32 1, %s8
  %s11 = scalar_select 0, %s10, %s8
  $region1: #{tpu_custom_call.1} parent=0
    #allocation2 [shape = 'u8[131072]{0}', space=vmem, size = 0x20000, scoped, tag = 'input window, operand 0']
    #allocation3 [shape = 's32[2]{0}', space=sflag, size = 0x8, scoped, tag = 'scoped memory for tpu_custom_call.1']
    #allocation4 [shape = 's32[2]{0}', space=sflag, size = 0x8, scoped, tag = 'scoped memory for tpu_custom_call.1']
    #allocation5 [shape = 'u8[131072]{0}', space=vmem, size = 0x20000, scoped, tag = 'input window, operand 1, single buffered']
    #allocation6 [shape = 's32[1]{0}', space=sflag, size = 0x4, scoped, tag = 'scoped memory for tpu_custom_call.1']
    #allocation7 [shape = 'u8[131072]{0}', space=vmem, size = 0x20000, scoped, tag = 'input window, operand 3, single buffered']
    #allocation8 [shape = 'u8[1703936]{0}', space=vmem, size = 0x1a0000, scoped, tag = 'output window, operand 0']
    %12 = vsyncpa [#allocation3], 0
    %s13 = scalar_lea.sflag [#allocation3], 1
    %14 = vsyncpa %s13, 0
    %15 = vsyncpa [#allocation6], 0
    %16 = vsyncpa [#allocation4], 0
    %s17 = scalar_lea.sflag [#allocation4], 1
    %18 = vsyncpa %s17, 0
    loop: start=0, step=1, limit=4
    $region2: #{tpu_custom_call.1} parent=1 // loop_pre_header
      _
    $region3: #{tpu_custom_call.1} parent=1 // loop_header
      %s20 = sphi 0, %s24
      %p21 = scmp.ge.s32.totalorder %s20, 4
      %s30 = sphi 0, %s32
      %s33 = sphi 0, %s30
      %s34 = sphi 0, %s33
      %s50 = sphi 0, %s34
      %s54 = sphi 0, %s54
      %s56 = sphi 0, %s54
      %s57 = sphi 0, %s56
      %s71 = sphi 0, %s57
      %s75 = sphi 0, %s75
      %s77 = sphi 0, %s75
      %s78 = sphi 0, %s77
      %s92 = sphi 0, %s78
      %s96 = sphi 0, %s96
      %s98 = sphi 0, %s96
      %s99 = sphi 0, %s98
      %s113 = sphi 0, %s99
      %s117 = sphi 0, %s117
      %s119 = sphi 0, %s117
      %s120 = sphi 0, %s119
      %s134 = sphi 0, %s120
      %s138 = sphi 0, %s138
      %s140 = sphi 0, %s138
      %s141 = sphi 0, %s140
      %s155 = sphi 0, %s141
      %s159 = sphi 0, %s159
      %s161 = sphi 0, %s159
      %s162 = sphi 0, %s161
      %s176 = sphi 0, %s162
      %s182 = sphi 0, %s184
      %s185 = sphi 0, %s182
      %s186 = sphi 0, %s185
      %s202 = sphi 0, %s186
    $region4: #{tpu_custom_call.1} parent=1 // loop_header_branch
      %23 = sbr.rel (%p21) target = $region8
    $region5: #{tpu_custom_call.1} parent=1 // loop_body
      %s25 = ssub.s32 %s20, 1
      %s26 = ssub.s32 %s20, 2
      %s27 = sadd.s32 %s20, 1
      %s28 = ssub.s32 %s20, %s27
      %p29 = scmp.eq.s32.totalorder %s28, 0
      %s31 = sadd.s32 %s30, 1
      %s32 = scalar_select %p29, %s30, %s31
      %p35 = pneg %p29
      %p36 = scmp.eq.s32.totalorder %s20, 1
      %p37 = por %p35, %p36
      %p38 = scmp.ne.s32.totalorder %s30, %s33
      %p39 = scmp.eq.s32.totalorder %s20, 0
      %p40 = por %p38, %p39
      %p41 = scmp.ne.s32.totalorder %s30, %s33
      %p42 = scmp.eq.s32.totalorder %s25, 1
      %p43 = por %p41, %p42
      %p44 = scmp.ne.s32.totalorder %s33, %s34
      %p45 = scmp.eq.s32.totalorder %s25, 0
      %p46 = por %p44, %p45
      %p47 = scmp.ne.s32.totalorder %s33, %s34
      %p48 = scmp.eq.s32.totalorder %s26, 1
      %p49 = por %p47, %p48
      %p51 = scmp.ne.s32.totalorder %s34, %s50
      %p52 = scmp.eq.s32.totalorder %s26, 0
      %p53 = por %p51, %p52
      %s55 = sadd.s32 %s54, 1
      %p58 = scmp.eq.s32.totalorder %s20, 1
      %p59 = scmp.ne.s32.totalorder %s54, %s56
      %p60 = scmp.eq.s32.totalorder %s20, 0
      %p61 = por %p59, %p60
      %p62 = scmp.ne.s32.totalorder %s54, %s56
      %p63 = scmp.eq.s32.totalorder %s25, 1
      %p64 = por %p62, %p63
      %p65 = scmp.ne.s32.totalorder %s56, %s57
      %p66 = scmp.eq.s32.totalorder %s25, 0
      %p67 = por %p65, %p66
      %p68 = scmp.ne.s32.totalorder %s56, %s57
      %p69 = scmp.eq.s32.totalorder %s26, 1
      %p70 = por %p68, %p69
      %p72 = scmp.ne.s32.totalorder %s57, %s71
      %p73 = scmp.eq.s32.totalorder %s26, 0
      %p74 = por %p72, %p73
      %s76 = sadd.s32 %s75, 1
      %p79 = scmp.eq.s32.totalorder %s20, 1
      %p80 = scmp.ne.s32.totalorder %s75, %s77
      %p81 = scmp.eq.s32.totalorder %s20, 0
      %p82 = por %p80, %p81
      %p83 = scmp.ne.s32.totalorder %s75, %s77
      %p84 = scmp.eq.s32.totalorder %s25, 1
      %p85 = por %p83, %p84
      %p86 = scmp.ne.s32.totalorder %s77, %s78
      %p87 = scmp.eq.s32.totalorder %s25, 0
      %p88 = por %p86, %p87
      %p89 = scmp.ne.s32.totalorder %s77, %s78
      %p90 = scmp.eq.s32.totalorder %s26, 1
      %p91 = por %p89, %p90
      %p93 = scmp.ne.s32.totalorder %s78, %s92
      %p94 = scmp.eq.s32.totalorder %s26, 0
      %p95 = por %p93, %p94
      %s97 = sadd.s32 %s96, 1
      %p100 = scmp.eq.s32.totalorder %s20, 1
      %p101 = scmp.ne.s32.totalorder %s96, %s98
      %p102 = scmp.eq.s32.totalorder %s20, 0
      %p103 = por %p101, %p102
      %p104 = scmp.ne.s32.totalorder %s96, %s98
      %p105 = scmp.eq.s32.totalorder %s25, 1
      %p106 = por %p104, %p105
      %p107 = scmp.ne.s32.totalorder %s98, %s99
      %p108 = scmp.eq.s32.totalorder %s25, 0
      %p109 = por %p107, %p108
      %p110 = scmp.ne.s32.totalorder %s98, %s99
      %p111 = scmp.eq.s32.totalorder %s26, 1
      %p112 = por %p110, %p111
      %p114 = scmp.ne.s32.totalorder %s99, %s113
      %p115 = scmp.eq.s32.totalorder %s26, 0
      %p116 = por %p114, %p115
      %s118 = sadd.s32 %s117, 1
      %p121 = scmp.eq.s32.totalorder %s20, 1
      %p122 = scmp.ne.s32.totalorder %s117, %s119
      %p123 = scmp.eq.s32.totalorder %s20, 0
      %p124 = por %p122, %p123
      %p125 = scmp.ne.s32.totalorder %s117, %s119
      %p126 = scmp.eq.s32.totalorder %s25, 1
      %p127 = por %p125, %p126
      %p128 = scmp.ne.s32.totalorder %s119, %s120
      %p129 = scmp.eq.s32.totalorder %s25, 0
      %p130 = por %p128, %p129
      %p131 = scmp.ne.s32.totalorder %s119, %s120
      %p132 = scmp.eq.s32.totalorder %s26, 1
      %p133 = por %p131, %p132
      %p135 = scmp.ne.s32.totalorder %s120, %s134
      %p136 = scmp.eq.s32.totalorder %s26, 0
      %p137 = por %p135, %p136
      %s139 = sadd.s32 %s138, 1
      %p142 = scmp.eq.s32.totalorder %s20, 1
      %p143 = scmp.ne.s32.totalorder %s138, %s140
      %p144 = scmp.eq.s32.totalorder %s20, 0
      %p145 = por %p143, %p144
      %p146 = scmp.ne.s32.totalorder %s138, %s140
      %p147 = scmp.eq.s32.totalorder %s25, 1
      %p148 = por %p146, %p147
      %p149 = scmp.ne.s32.totalorder %s140, %s141
      %p150 = scmp.eq.s32.totalorder %s25, 0
      %p151 = por %p149, %p150
      %p152 = scmp.ne.s32.totalorder %s140, %s141
      %p153 = scmp.eq.s32.totalorder %s26, 1
      %p154 = por %p152, %p153
      %p156 = scmp.ne.s32.totalorder %s141, %s155
      %p157 = scmp.eq.s32.totalorder %s26, 0
      %p158 = por %p156, %p157
      %s160 = sadd.s32 %s159, 1
      %p163 = scmp.eq.s32.totalorder %s20, 1
      %p164 = scmp.ne.s32.totalorder %s159, %s161
      %p165 = scmp.eq.s32.totalorder %s20, 0
      %p166 = por %p164, %p165
      %p167 = scmp.ne.s32.totalorder %s159, %s161
      %p168 = scmp.eq.s32.totalorder %s25, 1
      %p169 = por %p167, %p168
      %p170 = scmp.ne.s32.totalorder %s161, %s162
      %p171 = scmp.eq.s32.totalorder %s25, 0
      %p172 = por %p170, %p171
      %p173 = scmp.ne.s32.totalorder %s161, %s162
      %p174 = scmp.eq.s32.totalorder %s26, 1
      %p175 = por %p173, %p174
      %p177 = scmp.ne.s32.totalorder %s162, %s176
      %p178 = scmp.eq.s32.totalorder %s26, 0
      %p179 = por %p177, %p178
      %s180 = ssub.s32 %s20, %s27
      %p181 = scmp.eq.s32.totalorder %s180, 0
      %s183 = sadd.s32 %s182, 1
      %s184 = scalar_select %p181, %s182, %s183
      %p187 = pneg %p181
      %p188 = scmp.eq.s32.totalorder %s20, 1
      %p189 = por %p187, %p188
      %p190 = scmp.ne.s32.totalorder %s182, %s185
      %p191 = scmp.eq.s32.totalorder %s20, 0
      %p192 = por %p190, %p191
      %p193 = scmp.ne.s32.totalorder %s182, %s185
      %p194 = scmp.eq.s32.totalorder %s25, 1
      %p195 = por %p193, %p194
      %p196 = scmp.ne.s32.totalorder %s185, %s186
      %p197 = scmp.eq.s32.totalorder %s25, 0
      %p198 = por %p196, %p197
      %p199 = scmp.ne.s32.totalorder %s185, %s186
      %p200 = scmp.eq.s32.totalorder %s26, 1
      %p201 = por %p199, %p200
      %p203 = scmp.ne.s32.totalorder %s186, %s202
      %p204 = scmp.eq.s32.totalorder %s26, 0
      %p205 = por %p203, %p204
      %p206 = scmp.le.s32.totalorder 1, %s20
      %p207 = scmp.lt.s32.totalorder %s20, 3
      %p208 = pnand %p206, %p207
      %p209 = pneg %p208
      // Predicated region
      $region9: #{tpu_custom_call.1} parent=5 // pred_check
        _
      $region10: #{tpu_custom_call.1} parent=5 // pred_check_branch
        %211 = sbr.rel (%p208) target = $region12
      $region11: #{tpu_custom_call.1} parent=5 // pred_region
        %s212 = ssub.s32 %s20, 1
        // Predicated region
        $region13: #{tpu_custom_call.1} parent=11 // pred_check
          %p213 = pneg %p67
        $region14: #{tpu_custom_call.1} parent=11 // pred_check_branch
          %215 = sbr.rel (%p213) target = $region16
        $region15: #{tpu_custom_call.1} parent=11 // pred_region
          %s217 = ssub.s32 4096, 4096
          %218 = vsyncadd [#allocation6], %s217
          %s219 = sshll.u32 [#allocation5], 4
          %s220 = int_to_ptr.vmem [resolvable:$true] %s219
          %225 = dma.hbm_to_vmem [thread:$0]  %s1, 4096, %s220, [#allocation6], 64, 64, 4
        $region16: #{tpu_custom_call.1} parent=11 // pred_fallthru
          _
        // Predicated region
        $region17: #{tpu_custom_call.1} parent=11 // pred_check
          %p226 = pneg %p88
        $region18: #{tpu_custom_call.1} parent=11 // pred_check_branch
          %228 = sbr.rel (%p226) target = $region20
        $region19: #{tpu_custom_call.1} parent=11 // pred_region
          _
        $region20: #{tpu_custom_call.1} parent=11 // pred_fallthru
          _
        // Predicated region
        $region21: #{tpu_custom_call.1} parent=11 // pred_check
          %p229 = pneg %p109
        $region22: #{tpu_custom_call.1} parent=11 // pred_check_branch
          %231 = sbr.rel (%p229) target = $region24
        $region23: #{tpu_custom_call.1} parent=11 // pred_region
          %s233 = ssub.s32 4096, 4096
          %234 = vsyncadd [#allocation6], %s233
          %s235 = sshll.u32 [#allocation7], 4
          %s236 = int_to_ptr.vmem [resolvable:$true] %s235
          %241 = dma.hbm_to_vmem [thread:$0]  %s3, 4096, %s236, [#allocation6], 64, 64, 4
        $region24: #{tpu_custom_call.1} parent=11 // pred_fallthru
          _
        // Predicated region
        $region25: #{tpu_custom_call.1} parent=11 // pred_check
          %p242 = pneg %p130
        $region26: #{tpu_custom_call.1} parent=11 // pred_check_branch
          %244 = sbr.rel (%p242) target = $region28
        $region27: #{tpu_custom_call.1} parent=11 // pred_region
          _
        $region28: #{tpu_custom_call.1} parent=11 // pred_fallthru
          _
        // Predicated region
        $region29: #{tpu_custom_call.1} parent=11 // pred_check
          %p245 = pneg %p151
        $region30: #{tpu_custom_call.1} parent=11 // pred_check_branch
          %247 = sbr.rel (%p245) target = $region32
        $region31: #{tpu_custom_call.1} parent=11 // pred_region
          _
        $region32: #{tpu_custom_call.1} parent=11 // pred_fallthru
          _
        // Predicated region
        $region33: #{tpu_custom_call.1} parent=11 // pred_check
          %p248 = pneg %p172
        $region34: #{tpu_custom_call.1} parent=11 // pred_check_branch
          %250 = sbr.rel (%p248) target = $region36
        $region35: #{tpu_custom_call.1} parent=11 // pred_region
          _
        $region36: #{tpu_custom_call.1} parent=11 // pred_fallthru
          _
      $region12: #{tpu_custom_call.1} parent=5 // pred_fallthru
        _
      %p251 = scmp.lt.s32.totalorder %s20, 2
      // Predicated region
      $region37: #{tpu_custom_call.1} parent=5 // pred_check
        %p252 = pneg %p251
      $region38: #{tpu_custom_call.1} parent=5 // pred_check_branch
        %254 = sbr.rel (%p252) target = $region40
      $region39: #{tpu_custom_call.1} parent=5 // pred_region
        // Predicated region
        $region41: #{tpu_custom_call.1} parent=39 // pred_check
          %p255 = pneg %p40
        $region42: #{tpu_custom_call.1} parent=39 // pred_check_branch
          %257 = sbr.rel (%p255) target = $region44
        $region43: #{tpu_custom_call.1} parent=39 // pred_region
          %s258 = sand.u32 %s30, 1
          %s259 = scalar_lea.sflag [#allocation3], %s258
          %s260 = sand.u32 %s30, 1
          %s261 = smul.addr %s260, 128
          %s262 = scalar_lea.vmem [#allocation2], %s261
          %s264 = ssub.s32 2048, 2048
          %265 = vsyncadd %s259, %s264
          %s266 = smul.addr %s20, 16
          %s267 = smul.addr %s266, 128
          %s268 = scalar_lea.hbm %s0, %s267
          %s269 = sshll.u32 %s262, 4
          %s270 = int_to_ptr.vmem [resolvable:$true] %s269
          %275 = dma.hbm_to_vmem [thread:$0]  %s268, 2048, %s270, %s259, 128, 128, 8
        $region44: #{tpu_custom_call.1} parent=39 // pred_fallthru
          _
      $region40: #{tpu_custom_call.1} parent=5 // pred_fallthru
        _
      %p276 = scmp.le.s32.totalorder 1, %s20
      %p277 = scmp.lt.s32.totalorder %s20, 3
      %p278 = pnand %p276, %p277
      %p279 = pneg %p278
      // Predicated region
      $region45: #{tpu_custom_call.1} parent=5 // pred_check
        _
      $region46: #{tpu_custom_call.1} parent=5 // pred_check_branch
        %281 = sbr.rel (%p278) target = $region48
      $region47: #{tpu_custom_call.1} parent=5 // pred_region
        %s282 = ssub.s32 %s20, 1
        %s283 = sand.u32 %s33, 1
        %s284 = scalar_lea.sflag [#allocation3], %s283
        %s285 = sand.u32 %s33, 1
        %s286 = smul.addr %s285, 128
        %s287 = scalar_lea.vmem [#allocation2], %s286
        // Predicated region
        $region49: #{tpu_custom_call.1} parent=47 // pred_check
          %p288 = pneg %p46
        $region50: #{tpu_custom_call.1} parent=47 // pred_check_branch
          %290 = sbr.rel (%p288) target = $region52
        $region51: #{tpu_custom_call.1} parent=47 // pred_region
          %291 = dma.done %s284, 2048
        $region52: #{tpu_custom_call.1} parent=47 // pred_fallthru
          _
        // Predicated region
        $region53: #{tpu_custom_call.1} parent=47 // pred_check
          %p292 = pneg %p67
        $region54: #{tpu_custom_call.1} parent=47 // pred_check_branch
          %294 = sbr.rel (%p292) target = $region56
        $region55: #{tpu_custom_call.1} parent=47 // pred_region
          %295 = dma.done [#allocation6], 4096
        $region56: #{tpu_custom_call.1} parent=47 // pred_fallthru
          _
        // Predicated region
        $region57: #{tpu_custom_call.1} parent=47 // pred_check
          %p296 = pneg %p109
        $region58: #{tpu_custom_call.1} parent=47 // pred_check_branch
          %298 = sbr.rel (%p296) target = $region60
        $region59: #{tpu_custom_call.1} parent=47 // pred_region
          %299 = dma.done [#allocation6], 4096
        $region60: #{tpu_custom_call.1} parent=47 // pred_fallthru
          _
        %s300 = sand.u32 %s33, 1
        %s301 = scalar_lea.sflag [#allocation3], %s300
        %s302 = sand.u32 %s33, 1
        %s303 = smul.addr %s302, 128
        %s304 = scalar_lea.vmem [#allocation2], %s303
        %p305 = pneg %p46
        %p306 = pneg %p43
        %p307 = pneg %p67
        %p308 = pneg %p64
        %p309 = pneg %p88
        %p310 = pneg %p85
        %p311 = pneg %p109
        %p312 = pneg %p106
        %p313 = pneg %p130
        %p314 = pneg %p127
        %p315 = pneg %p151
        %p316 = pneg %p148
        %p317 = pneg %p172
        %p318 = pneg %p169
        %p319 = pneg %p198
        %p320 = pneg %p195
        %s321 = sand.u32 %s185, 1
        %s322 = scalar_lea.sflag [#allocation4], %s321
        %s323 = sand.u32 %s185, 1
        %s324 = smul.addr %s323, 1664
        %s325 = scalar_lea.vmem [#allocation8], %s324
        %v327 = vld [vmem:[%s287] sm:$0xff]
        %v328 = vld [vmem:[%s287 + $0x8] sm:$0xff]
        %v329 = vld [vmem:[%s287 + $0x10] sm:$0xff]
        %v330 = vld [vmem:[%s287 + $0x18] sm:$0xff]
        %v331 = vld [vmem:[%s287 + $0x20] sm:$0xff]
        %v332 = vld [vmem:[%s287 + $0x28] sm:$0xff]
        %v333 = vld [vmem:[%s287 + $0x30] sm:$0xff]
        %v334 = vld [vmem:[%s287 + $0x38] sm:$0xff]
        %v335 = vld [vmem:[%s287 + $0x40] sm:$0xff]
        %v336 = vld [vmem:[%s287 + $0x48] sm:$0xff]
        %v337 = vld [vmem:[%s287 + $0x50] sm:$0xff]
        %v338 = vld [vmem:[%s287 + $0x58] sm:$0xff]
        %v339 = vld [vmem:[%s287 + $0x60] sm:$0xff]
        %v340 = vld [vmem:[%s287 + $0x68] sm:$0xff]
        %v341 = vld [vmem:[%s287 + $0x70] sm:$0xff]
        %v342 = vld [vmem:[%s287 + $0x78] sm:$0xff]
        %343 = vst [vmem:[%s325] sm:$0xff] %v327
        %344 = vst [vmem:[%s325 + $0x8] sm:$0xff] %v328
        %345 = vst [vmem:[%s325 + $0x10] sm:$0xff] %v329
        %346 = vst [vmem:[%s325 + $0x18] sm:$0xff] %v330
        %347 = vst [vmem:[%s325 + $0x20] sm:$0xff] %v331
        %348 = vst [vmem:[%s325 + $0x28] sm:$0xff] %v332
        %349 = vst [vmem:[%s325 + $0x30] sm:$0xff] %v333
        %350 = vst [vmem:[%s325 + $0x38] sm:$0xff] %v334
        %351 = vst [vmem:[%s325 + $0x40] sm:$0xff] %v335
        %352 = vst [vmem:[%s325 + $0x48] sm:$0xff] %v336
        %353 = vst [vmem:[%s325 + $0x50] sm:$0xff] %v337
        %354 = vst [vmem:[%s325 + $0x58] sm:$0xff] %v338
        %355 = vst [vmem:[%s325 + $0x60] sm:$0xff] %v339
        %356 = vst [vmem:[%s325 + $0x68] sm:$0xff] %v340
        %357 = vst [vmem:[%s325 + $0x70] sm:$0xff] %v341
        %358 = vst [vmem:[%s325 + $0x78] sm:$0xff] %v342
        %v359 = vpack.c.bf16 %v328, %v327
        %v360 = vpack.c.bf16 %v330, %v329
        %v361 = vpack.c.bf16 %v332, %v331
        %v362 = vpack.c.bf16 %v334, %v333
        %v363 = vpack.c.bf16 %v336, %v335
        %v364 = vpack.c.bf16 %v338, %v337
        %v365 = vpack.c.bf16 %v340, %v339
        %v366 = vpack.c.bf16 %v342, %v341
        %v367 = vld [vmem:[#allocation5] sm:$0xf]
        %v368 = vld [vmem:[#allocation5 + $0x4] sm:$0xf]
        %v369 = vld [vmem:[#allocation5 + $0x8] sm:$0xf]
        %v370 = vld [vmem:[#allocation5 + $0xc] sm:$0xf]
        %v371 = vld [vmem:[#allocation5 + $0x10] sm:$0xf]
        %v372 = vld [vmem:[#allocation5 + $0x14] sm:$0xf]
        %v373 = vld [vmem:[#allocation5 + $0x18] sm:$0xf]
        %v374 = vld [vmem:[#allocation5 + $0x1c] sm:$0xf]
        %v375 = vld [vmem:[#allocation5 + $0x20] sm:$0xf]
        %v376 = vld [vmem:[#allocation5 + $0x24] sm:$0xf]
        %v377 = vld [vmem:[#allocation5 + $0x28] sm:$0xf]
        %v378 = vld [vmem:[#allocation5 + $0x2c] sm:$0xf]
        %v379 = vld [vmem:[#allocation5 + $0x30] sm:$0xf]
        %v380 = vld [vmem:[#allocation5 + $0x34] sm:$0xf]
        %v381 = vld [vmem:[#allocation5 + $0x38] sm:$0xf]
        %v382 = vld [vmem:[#allocation5 + $0x3c] sm:$0xf]
        %v383 = vld [vmem:[#allocation5 + $0x40] sm:$0xf]
        %v384 = vld [vmem:[#allocation5 + $0x44] sm:$0xf]
        %v385 = vld [vmem:[#allocation5 + $0x48] sm:$0xf]
        %v386 = vld [vmem:[#allocation5 + $0x4c] sm:$0xf]
        %v387 = vld [vmem:[#allocation5 + $0x50] sm:$0xf]
        %v388 = vld [vmem:[#allocation5 + $0x54] sm:$0xf]
        %v389 = vld [vmem:[#allocation5 + $0x58] sm:$0xf]
        %v390 = vld [vmem:[#allocation5 + $0x5c] sm:$0xf]
        %v391 = vld [vmem:[#allocation5 + $0x60] sm:$0xf]
        %v392 = vld [vmem:[#allocation5 + $0x64] sm:$0xf]
        %v393 = vld [vmem:[#allocation5 + $0x68] sm:$0xf]
        %v394 = vld [vmem:[#allocation5 + $0x6c] sm:$0xf]
        %v395 = vld [vmem:[#allocation5 + $0x70] sm:$0xf]
        %v396 = vld [vmem:[#allocation5 + $0x74] sm:$0xf]
        %v397 = vld [vmem:[#allocation5 + $0x78] sm:$0xf]
        %v398 = vld [vmem:[#allocation5 + $0x7c] sm:$0xf]
        %v399 = vld [vmem:[#allocation5 + $0x80] sm:$0xf]
        %v400 = vld [vmem:[#allocation5 + $0x84] sm:$0xf]
        %v401 = vld [vmem:[#allocation5 + $0x88] sm:$0xf]
        %v402 = vld [vmem:[#allocation5 + $0x8c] sm:$0xf]
        %v403 = vld [vmem:[#allocation5 + $0x90] sm:$0xf]
        %v404 = vld [vmem:[#allocation5 + $0x94] sm:$0xf]
        %v405 = vld [vmem:[#allocation5 + $0x98] sm:$0xf]
        %v406 = vld [vmem:[#allocation5 + $0x9c] sm:$0xf]
        %v407 = vld [vmem:[#allocation5 + $0xa0] sm:$0xf]
        %v408 = vld [vmem:[#allocation5 + $0xa4] sm:$0xf]
        %v409 = vld [vmem:[#allocation5 + $0xa8] sm:$0xf]
        %v410 = vld [vmem:[#allocation5 + $0xac] sm:$0xf]
        %v411 = vld [vmem:[#allocation5 + $0xb0] sm:$0xf]
        %v412 = vld [vmem:[#allocation5 + $0xb4] sm:$0xf]
        %v413 = vld [vmem:[#allocation5 + $0xb8] sm:$0xf]
        %v414 = vld [vmem:[#allocation5 + $0xbc] sm:$0xf]
        %v415 = vld [vmem:[#allocation5 + $0xc0] sm:$0xf]
        %v416 = vld [vmem:[#allocation5 + $0xc4] sm:$0xf]
        %v417 = vld [vmem:[#allocation5 + $0xc8] sm:$0xf]
        %v418 = vld [vmem:[#allocation5 + $0xcc] sm:$0xf]
        %v419 = vld [vmem:[#allocation5 + $0xd0] sm:$0xf]
        %v420 = vld [vmem:[#allocation5 + $0xd4] sm:$0xf]
        %v421 = vld [vmem:[#allocation5 + $0xd8] sm:$0xf]
        %v422 = vld [vmem:[#allocation5 + $0xdc] sm:$0xf]
        %v423 = vld [vmem:[#allocation5 + $0xe0] sm:$0xf]
        %v424 = vld [vmem:[#allocation5 + $0xe4] sm:$0xf]
        %v425 = vld [vmem:[#allocation5 + $0xe8] sm:$0xf]
        %v426 = vld [vmem:[#allocation5 + $0xec] sm:$0xf]
        %v427 = vld [vmem:[#allocation5 + $0xf0] sm:$0xf]
        %v428 = vld [vmem:[#allocation5 + $0xf4] sm:$0xf]
        %v429 = vld [vmem:[#allocation5 + $0xf8] sm:$0xf]
        %v430 = vld [vmem:[#allocation5 + $0xfc] sm:$0xf]
        %v431 = vld [vmem:[%s2] sm:$0xff]
        %v432 = vld [vmem:[%s2 + $0x8] sm:$0xff]
        %v433 = vld [vmem:[%s2 + $0x10] sm:$0xff]
        %v434 = vld [vmem:[%s2 + $0x18] sm:$0xff]
        %v435 = vld [vmem:[%s2 + $0x20] sm:$0xff]
        %v436 = vld [vmem:[%s2 + $0x28] sm:$0xff]
        %v437 = vld [vmem:[%s2 + $0x30] sm:$0xff]
        %v438 = vld [vmem:[%s2 + $0x38] sm:$0xff]
        %v439 = vld [vmem:[%s2 + $0x40] sm:$0xff]
        %v440 = vld [vmem:[%s2 + $0x48] sm:$0xff]
        %v441 = vld [vmem:[%s2 + $0x50] sm:$0xff]
        %v442 = vld [vmem:[%s2 + $0x58] sm:$0xff]
        %v443 = vld [vmem:[%s2 + $0x60] sm:$0xff]
        %v444 = vld [vmem:[%s2 + $0x68] sm:$0xff]
        %v445 = vld [vmem:[%s2 + $0x70] sm:$0xff]
        %v446 = vld [vmem:[%s2 + $0x78] sm:$0xff]
        %v447 = vld [vmem:[%s2 + $0x80] sm:$0xff]
        %v448 = vld [vmem:[%s2 + $0x88] sm:$0xff]
        %v449 = vld [vmem:[%s2 + $0x90] sm:$0xff]
        %v450 = vld [vmem:[%s2 + $0x98] sm:$0xff]
        %v451 = vld [vmem:[%s2 + $0xa0] sm:$0xff]
        %v452 = vld [vmem:[%s2 + $0xa8] sm:$0xff]
        %v453 = vld [vmem:[%s2 + $0xb0] sm:$0xff]
        %v454 = vld [vmem:[%s2 + $0xb8] sm:$0xff]
        %v455 = vld [vmem:[%s2 + $0xc0] sm:$0xff]
        %v456 = vld [vmem:[%s2 + $0xc8] sm:$0xff]
        %v457 = vld [vmem:[%s2 + $0xd0] sm:$0xff]
        %v458 = vld [vmem:[%s2 + $0xd8] sm:$0xff]
        %v459 = vld [vmem:[%s2 + $0xe0] sm:$0xff]
        %v460 = vld [vmem:[%s2 + $0xe8] sm:$0xff]
        %v461 = vld [vmem:[%s2 + $0xf0] sm:$0xff]
        %v462 = vld [vmem:[%s2 + $0xf8] sm:$0xff]
        %v463 = vld [vmem:[%s2 + $0x100] sm:$0xff]
        %v464 = vld [vmem:[%s2 + $0x108] sm:$0xff]
        %v465 = vld [vmem:[%s2 + $0x110] sm:$0xff]
        %v466 = vld [vmem:[%s2 + $0x118] sm:$0xff]
        %v467 = vld [vmem:[%s2 + $0x120] sm:$0xff]
        %v468 = vld [vmem:[%s2 + $0x128] sm:$0xff]
        %v469 = vld [vmem:[%s2 + $0x130] sm:$0xff]
        %v470 = vld [vmem:[%s2 + $0x138] sm:$0xff]
        %v471 = vld [vmem:[%s2 + $0x140] sm:$0xff]
        %v472 = vld [vmem:[%s2 + $0x148] sm:$0xff]
        %v473 = vld [vmem:[%s2 + $0x150] sm:$0xff]
        %v474 = vld [vmem:[%s2 + $0x158] sm:$0xff]
        %v475 = vld [vmem:[%s2 + $0x160] sm:$0xff]
        %v476 = vld [vmem:[%s2 + $0x168] sm:$0xff]
        %v477 = vld [vmem:[%s2 + $0x170] sm:$0xff]
        %v478 = vld [vmem:[%s2 + $0x178] sm:$0xff]
        %v479 = vld [vmem:[%s2 + $0x180] sm:$0xff]
        %v480 = vld [vmem:[%s2 + $0x188] sm:$0xff]
        %v481 = vld [vmem:[%s2 + $0x190] sm:$0xff]
        %v482 = vld [vmem:[%s2 + $0x198] sm:$0xff]
        %v483 = vld [vmem:[%s2 + $0x1a0] sm:$0xff]
        %v484 = vld [vmem:[%s2 + $0x1a8] sm:$0xff]
        %v485 = vld [vmem:[%s2 + $0x1b0] sm:$0xff]
        %v486 = vld [vmem:[%s2 + $0x1b8] sm:$0xff]
        %v487 = vld [vmem:[%s2 + $0x1c0] sm:$0xff]
        %v488 = vld [vmem:[%s2 + $0x1c8] sm:$0xff]
        %v489 = vld [vmem:[%s2 + $0x1d0] sm:$0xff]
        %v490 = vld [vmem:[%s2 + $0x1d8] sm:$0xff]
        %v491 = vld [vmem:[%s2 + $0x1e0] sm:$0xff]
        %v492 = vld [vmem:[%s2 + $0x1e8] sm:$0xff]
        %v493 = vld [vmem:[%s2 + $0x1f0] sm:$0xff]
        %v494 = vld [vmem:[%s2 + $0x1f8] sm:$0xff]
        %496 = vset.pattern.permute.xlu0 0
        %497 = vperm.xlu0 %496, %v431
        %v498 = vpop.permute.xlu0 %497
        %501 = vset.pattern.permute.xlu0 0
        %502 = vperm.xlu0 %501, %v432
        %v503 = vpop.permute.xlu0 %502
        %506 = vset.pattern.permute.xlu0 0
        %507 = vperm.xlu0 %506, %v433
        %v508 = vpop.permute.xlu0 %507
        %511 = vset.pattern.permute.xlu0 0
        %512 = vperm.xlu0 %511, %v434
        %v513 = vpop.permute.xlu0 %512
        %516 = vset.pattern.permute.xlu0 0
        %517 = vperm.xlu0 %516, %v435
        %v518 = vpop.permute.xlu0 %517
        %521 = vset.pattern.permute.xlu0 0
        %522 = vperm.xlu0 %521, %v436
        %v523 = vpop.permute.xlu0 %522
        %526 = vset.pattern.permute.xlu0 0
        %527 = vperm.xlu0 %526, %v437
        %v528 = vpop.permute.xlu0 %527
        %531 = vset.pattern.permute.xlu0 0
        %532 = vperm.xlu0 %531, %v438
        %v533 = vpop.permute.xlu0 %532
        %536 = vset.pattern.permute.xlu0 0
        %537 = vperm.xlu0 %536, %v439
        %v538 = vpop.permute.xlu0 %537
        %541 = vset.pattern.permute.xlu0 0
        %542 = vperm.xlu0 %541, %v440
        %v543 = vpop.permute.xlu0 %542
        %546 = vset.pattern.permute.xlu0 0
        %547 = vperm.xlu0 %546, %v441
        %v548 = vpop.permute.xlu0 %547
        %551 = vset.pattern.permute.xlu0 0
        %552 = vperm.xlu0 %551, %v442
        %v553 = vpop.permute.xlu0 %552
        %556 = vset.pattern.permute.xlu0 0
        %557 = vperm.xlu0 %556, %v443
        %v558 = vpop.permute.xlu0 %557
        %561 = vset.pattern.permute.xlu0 0
        %562 = vperm.xlu0 %561, %v444
        %v563 = vpop.permute.xlu0 %562
        %566 = vset.pattern.permute.xlu0 0
        %567 = vperm.xlu0 %566, %v445
        %v568 = vpop.permute.xlu0 %567
        %571 = vset.pattern.permute.xlu0 0
        %572 = vperm.xlu0 %571, %v446
        %v573 = vpop.permute.xlu0 %572
        %576 = vset.pattern.permute.xlu0 0
        %577 = vperm.xlu0 %576, %v447
        %v578 = vpop.permute.xlu0 %577
        %581 = vset.pattern.permute.xlu0 0
        %582 = vperm.xlu0 %581, %v448
        %v583 = vpop.permute.xlu0 %582
        %586 = vset.pattern.permute.xlu0 0
        %587 = vperm.xlu0 %586, %v449
        %v588 = vpop.permute.xlu0 %587
        %591 = vset.pattern.permute.xlu0 0
        %592 = vperm.xlu0 %591, %v450
        %v593 = vpop.permute.xlu0 %592
        %596 = vset.pattern.permute.xlu0 0
        %597 = vperm.xlu0 %596, %v451
        %v598 = vpop.permute.xlu0 %597
        %601 = vset.pattern.permute.xlu0 0
        %602 = vperm.xlu0 %601, %v452
        %v603 = vpop.permute.xlu0 %602
        %606 = vset.pattern.permute.xlu0 0
        %607 = vperm.xlu0 %606, %v453
        %v608 = vpop.permute.xlu0 %607
        %611 = vset.pattern.permute.xlu0 0
        %612 = vperm.xlu0 %611, %v454
        %v613 = vpop.permute.xlu0 %612
        %616 = vset.pattern.permute.xlu0 0
        %617 = vperm.xlu0 %616, %v455
        %v618 = vpop.permute.xlu0 %617
        %621 = vset.pattern.permute.xlu0 0
        %622 = vperm.xlu0 %621, %v456
        %v623 = vpop.permute.xlu0 %622
        %626 = vset.pattern.permute.xlu0 0
        %627 = vperm.xlu0 %626, %v457
        %v628 = vpop.permute.xlu0 %627
        %631 = vset.pattern.permute.xlu0 0
        %632 = vperm.xlu0 %631, %v458
        %v633 = vpop.permute.xlu0 %632
        %636 = vset.pattern.permute.xlu0 0
        %637 = vperm.xlu0 %636, %v459
        %v638 = vpop.permute.xlu0 %637
        %641 = vset.pattern.permute.xlu0 0
        %642 = vperm.xlu0 %641, %v460
        %v643 = vpop.permute.xlu0 %642
        %646 = vset.pattern.permute.xlu0 0
        %647 = vperm.xlu0 %646, %v461
        %v648 = vpop.permute.xlu0 %647
        %651 = vset.pattern.permute.xlu0 0
        %652 = vperm.xlu0 %651, %v462
        %v653 = vpop.permute.xlu0 %652
        %656 = vset.pattern.permute.xlu0 0
        %657 = vperm.xlu0 %656, %v463
        %v658 = vpop.permute.xlu0 %657
        %661 = vset.pattern.permute.xlu0 0
        %662 = vperm.xlu0 %661, %v464
        %v663 = vpop.permute.xlu0 %662
        %666 = vset.pattern.permute.xlu0 0
        %667 = vperm.xlu0 %666, %v465
        %v668 = vpop.permute.xlu0 %667
        %671 = vset.pattern.permute.xlu0 0
        %672 = vperm.xlu0 %671, %v466
        %v673 = vpop.permute.xlu0 %672
        %676 = vset.pattern.permute.xlu0 0
        %677 = vperm.xlu0 %676, %v467
        %v678 = vpop.permute.xlu0 %677
        %681 = vset.pattern.permute.xlu0 0
        %682 = vperm.xlu0 %681, %v468
        %v683 = vpop.permute.xlu0 %682
        %686 = vset.pattern.permute.xlu0 0
        %687 = vperm.xlu0 %686, %v469
        %v688 = vpop.permute.xlu0 %687
        %691 = vset.pattern.permute.xlu0 0
        %692 = vperm.xlu0 %691, %v470
        %v693 = vpop.permute.xlu0 %692
        %696 = vset.pattern.permute.xlu0 0
        %697 = vperm.xlu0 %696, %v471
        %v698 = vpop.permute.xlu0 %697
        %701 = vset.pattern.permute.xlu0 0
        %702 = vperm.xlu0 %701, %v472
        %v703 = vpop.permute.xlu0 %702
        %706 = vset.pattern.permute.xlu0 0
        %707 = vperm.xlu0 %706, %v473
        %v708 = vpop.permute.xlu0 %707
        %711 = vset.pattern.permute.xlu0 0
        %712 = vperm.xlu0 %711, %v474
        %v713 = vpop.permute.xlu0 %712
        %716 = vset.pattern.permute.xlu0 0
        %717 = vperm.xlu0 %716, %v475
        %v718 = vpop.permute.xlu0 %717
        %721 = vset.pattern.permute.xlu0 0
        %722 = vperm.xlu0 %721, %v476
        %v723 = vpop.permute.xlu0 %722
        %726 = vset.pattern.permute.xlu0 0
        %727 = vperm.xlu0 %726, %v477
        %v728 = vpop.permute.xlu0 %727
        %731 = vset.pattern.permute.xlu0 0
        %732 = vperm.xlu0 %731, %v478
        %v733 = vpop.permute.xlu0 %732
        %736 = vset.pattern.permute.xlu0 0
        %737 = vperm.xlu0 %736, %v479
        %v738 = vpop.permute.xlu0 %737
        %741 = vset.pattern.permute.xlu0 0
        %742 = vperm.xlu0 %741, %v480
        %v743 = vpop.permute.xlu0 %742
        %746 = vset.pattern.permute.xlu0 0
        %747 = vperm.xlu0 %746, %v481
        %v748 = vpop.permute.xlu0 %747
        %751 = vset.pattern.permute.xlu0 0
        %752 = vperm.xlu0 %751, %v482
        %v753 = vpop.permute.xlu0 %752
        %756 = vset.pattern.permute.xlu0 0
        %757 = vperm.xlu0 %756, %v483
        %v758 = vpop.permute.xlu0 %757
        %761 = vset.pattern.permute.xlu0 0
        %762 = vperm.xlu0 %761, %v484
        %v763 = vpop.permute.xlu0 %762
        %766 = vset.pattern.permute.xlu0 0
        %767 = vperm.xlu0 %766, %v485
        %v768 = vpop.permute.xlu0 %767
        %771 = vset.pattern.permute.xlu0 0
        %772 = vperm.xlu0 %771, %v486
        %v773 = vpop.permute.xlu0 %772
        %776 = vset.pattern.permute.xlu0 0
        %777 = vperm.xlu0 %776, %v487
        %v778 = vpop.permute.xlu0 %777
        %781 = vset.pattern.permute.xlu0 0
        %782 = vperm.xlu0 %781, %v488
        %v783 = vpop.permute.xlu0 %782
        %786 = vset.pattern.permute.xlu0 0
        %787 = vperm.xlu0 %786, %v489
        %v788 = vpop.permute.xlu0 %787
        %791 = vset.pattern.permute.xlu0 0
        %792 = vperm.xlu0 %791, %v490
        %v793 = vpop.permute.xlu0 %792
        %796 = vset.pattern.permute.xlu0 0
        %797 = vperm.xlu0 %796, %v491
        %v798 = vpop.permute.xlu0 %797
        %801 = vset.pattern.permute.xlu0 0
        %802 = vperm.xlu0 %801, %v492
        %v803 = vpop.permute.xlu0 %802
        %806 = vset.pattern.permute.xlu0 0
        %807 = vperm.xlu0 %806, %v493
        %v808 = vpop.permute.xlu0 %807
        %811 = vset.pattern.permute.xlu0 0
        %812 = vperm.xlu0 %811, %v494
        %v813 = vpop.permute.xlu0 %812
        %v879 = vunpack.c.l.b16 %v367
        %v880 = vunpack.c.l.b16 %v368
        %v881 = vunpack.c.l.b16 %v369
        %v882 = vunpack.c.l.b16 %v370
        %v883 = vunpack.c.l.b16 %v371
        %v884 = vunpack.c.l.b16 %v372
        %v885 = vunpack.c.l.b16 %v373
        %v886 = vunpack.c.l.b16 %v374
        %v887 = vunpack.c.l.b16 %v375
        %v888 = vunpack.c.l.b16 %v376
        %v889 = vunpack.c.l.b16 %v377
        %v890 = vunpack.c.l.b16 %v378
        %v891 = vunpack.c.l.b16 %v379
        %v892 = vunpack.c.l.b16 %v380
        %v893 = vunpack.c.l.b16 %v381
        %v894 = vunpack.c.l.b16 %v382
        %v895 = vunpack.c.l.b16 %v383
        %v896 = vunpack.c.l.b16 %v384
        %v897 = vunpack.c.l.b16 %v385
        %v898 = vunpack.c.l.b16 %v386
        %v899 = vunpack.c.l.b16 %v387
        %v900 = vunpack.c.l.b16 %v388
        %v901 = vunpack.c.l.b16 %v389
        %v902 = vunpack.c.l.b16 %v390
        %v903 = vunpack.c.l.b16 %v391
        %v904 = vunpack.c.l.b16 %v392
        %v905 = vunpack.c.l.b16 %v393
        %v906 = vunpack.c.l.b16 %v394
        %v907 = vunpack.c.l.b16 %v395
        %v908 = vunpack.c.l.b16 %v396
        %v909 = vunpack.c.l.b16 %v397
        %v910 = vunpack.c.l.b16 %v398
        %v911 = vunpack.c.l.b16 %v399
        %v912 = vunpack.c.l.b16 %v400
        %v913 = vunpack.c.l.b16 %v401
        %v914 = vunpack.c.l.b16 %v402
        %v915 = vunpack.c.l.b16 %v403
        %v916 = vunpack.c.l.b16 %v404
        %v917 = vunpack.c.l.b16 %v405
        %v918 = vunpack.c.l.b16 %v406
        %v919 = vunpack.c.l.b16 %v407
        %v920 = vunpack.c.l.b16 %v408
        %v921 = vunpack.c.l.b16 %v409
        %v922 = vunpack.c.l.b16 %v410
        %v923 = vunpack.c.l.b16 %v411
        %v924 = vunpack.c.l.b16 %v412
        %v925 = vunpack.c.l.b16 %v413
        %v926 = vunpack.c.l.b16 %v414
        %v927 = vunpack.c.l.b16 %v415
        %v928 = vunpack.c.l.b16 %v416
        %v929 = vunpack.c.l.b16 %v417
        %v930 = vunpack.c.l.b16 %v418
        %v931 = vunpack.c.l.b16 %v419
        %v932 = vunpack.c.l.b16 %v420
        %v933 = vunpack.c.l.b16 %v421
        %v934 = vunpack.c.l.b16 %v422
        %v935 = vunpack.c.l.b16 %v423
        %v936 = vunpack.c.l.b16 %v424
        %v937 = vunpack.c.l.b16 %v425
        %v938 = vunpack.c.l.b16 %v426
        %v939 = vunpack.c.l.b16 %v427
        %v940 = vunpack.c.l.b16 %v428
        %v941 = vunpack.c.l.b16 %v429
        %v942 = vunpack.c.l.b16 %v430
        %v943 = vpack.c.b16 %v880, %v879
        %v944 = vpack.c.b16 %v882, %v881
        %v945 = vpack.c.b16 %v884, %v883
        %v946 = vpack.c.b16 %v886, %v885
        %v947 = vpack.c.b16 %v888, %v887
        %v948 = vpack.c.b16 %v890, %v889
        %v949 = vpack.c.b16 %v892, %v891
        %v950 = vpack.c.b16 %v894, %v893
        %v951 = vpack.c.b16 %v896, %v895
        %v952 = vpack.c.b16 %v898, %v897
        %v953 = vpack.c.b16 %v900, %v899
        %v954 = vpack.c.b16 %v902, %v901
        %v955 = vpack.c.b16 %v904, %v903
        %v956 = vpack.c.b16 %v906, %v905
        %v957 = vpack.c.b16 %v908, %v907
        %v958 = vpack.c.b16 %v910, %v909
        %v959 = vpack.c.b16 %v912, %v911
        %v960 = vpack.c.b16 %v914, %v913
        %v961 = vpack.c.b16 %v916, %v915
        %v962 = vpack.c.b16 %v918, %v917
        %v963 = vpack.c.b16 %v920, %v919
        %v964 = vpack.c.b16 %v922, %v921
        %v965 = vpack.c.b16 %v924, %v923
        %v966 = vpack.c.b16 %v926, %v925
        %v967 = vpack.c.b16 %v928, %v927
        %v968 = vpack.c.b16 %v930, %v929
        %v969 = vpack.c.b16 %v932, %v931
        %v970 = vpack.c.b16 %v934, %v933
        %v971 = vpack.c.b16 %v936, %v935
        %v972 = vpack.c.b16 %v938, %v937
        %v973 = vpack.c.b16 %v940, %v939
        %v974 = vpack.c.b16 %v942, %v941
        %1007 = vmatprep.subr.bf16.mxu0 0
        %1008 = vmatpush1.bf16.msra.mxu0 %v359
        %1009 = vmatprep.subr.bf16.mxu0 0
        %1010 = vmatpush1.bf16.msra.mxu0 %v360
        %1011 = vmatprep.subr.bf16.mxu0 0
        %1012 = vmatpush1.bf16.msra.mxu0 %v361
        %1013 = vmatprep.subr.bf16.mxu0 0
        %1014 = vmatpush1.bf16.msra.mxu0 %v362
        %1015 = vmatprep.subr.bf16.mxu0 0
        %1016 = vmatpush1.bf16.msra.mxu0 %v363
        %1017 = vmatprep.subr.bf16.mxu0 0
        %1018 = vmatpush1.bf16.msra.mxu0 %v364
        %1019 = vmatprep.subr.bf16.mxu0 0
        %1020 = vmatpush1.bf16.msra.mxu0 %v365
        %1021 = vmatprep.subr.bf16.mxu0 0
        %1022 = vmatpush1.bf16.msra.mxu0 %v366
        %1023 = vmatprep.subr.bf16.mxu0 0
        %1024 = vmatpush1.bf16.msra.mxu0 0
        %1025 = vmatprep.subr.bf16.mxu0 0
        %1026 = vmatpush1.bf16.msra.mxu0 0
        %1027 = vmatprep.subr.bf16.mxu0 0
        %1028 = vmatpush1.bf16.msra.mxu0 0
        %1029 = vmatprep.subr.bf16.mxu0 0
        %1030 = vmatpush1.bf16.msra.mxu0 0
        %1031 = vmatprep.subr.bf16.mxu0 0
        %1032 = vmatpush1.bf16.msra.mxu0 0
        %1033 = vmatprep.subr.bf16.mxu0 0
        %1034 = vmatpush1.bf16.msra.mxu0 0
        %1035 = vmatprep.subr.bf16.mxu0 0
        %1036 = vmatpush1.bf16.msra.mxu0 0
        %1037 = vmatprep.subr.bf16.mxu0 0
        %1038 = vmatpush1.bf16.msra.mxu0 0
        %1039 = vmatprep.mubr.bf16.mxu0 0
        %1040 = vmatmul.mubr.bf16.gmra.mrb[0].mxu0 %v943
        %v1041 = vpop.f32.mrb[0].mxu0
        %v1042 = vadd.f32 %v498, %v1041
        %v1043 = vpop.f32.mrb[0].mxu0
        %v1044 = vpop.f32.mrb[0].mxu0
        %v1045 = vadd.f32 %v503, %v1044
        %v1046 = vpop.f32.mrb[0].mxu0
        %1047 = vmatprep.mubr.bf16.mxu0 0
        %1048 = vmatmul.mubr.bf16.gmra.mrb[0].mxu0 %v944
        %v1049 = vpop.f32.mrb[0].mxu0
        %v1050 = vadd.f32 %v508, %v1049
        %v1051 = vpop.f32.mrb[0].mxu0
        %v1052 = vpop.f32.mrb[0].mxu0
        %v1053 = vadd.f32 %v513, %v1052
        %v1054 = vpop.f32.mrb[0].mxu0
        %1055 = vmatprep.mubr.bf16.mxu0 0
        %1056 = vmatmul.mubr.bf16.gmra.mrb[0].mxu0 %v945
        %v1057 = vpop.f32.mrb[0].mxu0
        %v1058 = vadd.f32 %v518, %v1057
        %v1059 = vpop.f32.mrb[0].mxu0
        %v1060 = vpop.f32.mrb[0].mxu0
        %v1061 = vadd.f32 %v523, %v1060
        %v1062 = vpop.f32.mrb[0].mxu0
        %1063 = vmatprep.mubr.bf16.mxu0 0
        %1064 = vmatmul.mubr.bf16.gmra.mrb[0].mxu0 %v946
        %v1065 = vpop.f32.mrb[0].mxu0
        %v1066 = vadd.f32 %v528, %v1065
        %v1067 = vpop.f32.mrb[0].mxu0
        %v1068 = vpop.f32.mrb[0].mxu0
        %v1069 = vadd.f32 %v533, %v1068
        %v1070 = vpop.f32.mrb[0].mxu0
        %1071 = vmatprep.mubr.bf16.mxu0 0
        %1072 = vmatmul.mubr.bf16.gmra.mrb[0].mxu0 %v947
        %v1073 = vpop.f32.mrb[0].mxu0
        %v1074 = vadd.f32 %v538, %v1073
        %v1075 = vpop.f32.mrb[0].mxu0
        %v1076 = vpop.f32.mrb[0].mxu0
        %v1077 = vadd.f32 %v543, %v1076
        %v1078 = vpop.f32.mrb[0].mxu0
        %1079 = vmatprep.mubr.bf16.mxu0 0
        %1080 = vmatmul.mubr.bf16.gmra.mrb[0].mxu0 %v948
        %v1081 = vpop.f32.mrb[0].mxu0
        %v1082 = vadd.f32 %v548, %v1081
        %v1083 = vpop.f32.mrb[0].mxu0
        %v1084 = vpop.f32.mrb[0].mxu0
        %v1085 = vadd.f32 %v553, %v1084
        %v1086 = vpop.f32.mrb[0].mxu0
        %1087 = vmatprep.mubr.bf16.mxu0 0
        %1088 = vmatmul.mubr.bf16.gmra.mrb[0].mxu0 %v949
        %v1089 = vpop.f32.mrb[0].mxu0
        %v1090 = vadd.f32 %v558, %v1089
        %v1091 = vpop.f32.mrb[0].mxu0
        %v1092 = vpop.f32.mrb[0].mxu0
        %v1093 = vadd.f32 %v563, %v1092
        %v1094 = vpop.f32.mrb[0].mxu0
        %1095 = vmatprep.mubr.bf16.mxu0 0
        %1096 = vmatmul.mubr.bf16.gmra.mrb[0].mxu0 %v950
        %v1097 = vpop.f32.mrb[0].mxu0
        %v1098 = vadd.f32 %v568, %v1097
        %v1099 = vpop.f32.mrb[0].mxu0
        %v1100 = vpop.f32.mrb[0].mxu0
        %v1101 = vadd.f32 %v573, %v1100
        %v1102 = vpop.f32.mrb[0].mxu0
        %1103 = vmatprep.mubr.bf16.mxu0 0
        %1104 = vmatmul.mubr.bf16.gmra.mrb[0].mxu0 %v951
        %v1105 = vpop.f32.mrb[0].mxu0
        %v1106 = vadd.f32 %v578, %v1105
        %v1107 = vpop.f32.mrb[0].mxu0
        %v1108 = vpop.f32.mrb[0].mxu0
        %v1109 = vadd.f32 %v583, %v1108
        %v1110 = vpop.f32.mrb[0].mxu0
        %1111 = vmatprep.mubr.bf16.mxu0 0
        %1112 = vmatmul.mubr.bf16.gmra.mrb[0].mxu0 %v952
        %v1113 = vpop.f32.mrb[0].mxu0
        %v1114 = vadd.f32 %v588, %v1113
        %v1115 = vpop.f32.mrb[0].mxu0
        %v1116 = vpop.f32.mrb[0].mxu0
        %v1117 = vadd.f32 %v593, %v1116
        %v1118 = vpop.f32.mrb[0].mxu0
        %1119 = vmatprep.mubr.bf16.mxu0 0
        %1120 = vmatmul.mubr.bf16.gmra.mrb[0].mxu0 %v953
        %v1121 = vpop.f32.mrb[0].mxu0
        %v1122 = vadd.f32 %v598, %v1121
        %v1123 = vpop.f32.mrb[0].mxu0
        %v1124 = vpop.f32.mrb[0].mxu0
        %v1125 = vadd.f32 %v603, %v1124
        %v1126 = vpop.f32.mrb[0].mxu0
        %1127 = vmatprep.mubr.bf16.mxu0 0
        %1128 = vmatmul.mubr.bf16.gmra.mrb[0].mxu0 %v954
        %v1129 = vpop.f32.mrb[0].mxu0
        %v1130 = vadd.f32 %v608, %v1129
        %v1131 = vpop.f32.mrb[0].mxu0
        %v1132 = vpop.f32.mrb[0].mxu0
        %v1133 = vadd.f32 %v613, %v1132
        %v1134 = vpop.f32.mrb[0].mxu0
        %1135 = vmatprep.mubr.bf16.mxu0 0
        %1136 = vmatmul.mubr.bf16.gmra.mrb[0].mxu0 %v955
        %v1137 = vpop.f32.mrb[0].mxu0
        %v1138 = vadd.f32 %v618, %v1137
        %v1139 = vpop.f32.mrb[0].mxu0
        %v1140 = vpop.f32.mrb[0].mxu0
        %v1141 = vadd.f32 %v623, %v1140
        %v1142 = vpop.f32.mrb[0].mxu0
        %1143 = vmatprep.mubr.bf16.mxu0 0
        %1144 = vmatmul.mubr.bf16.gmra.mrb[0].mxu0 %v956
        %v1145 = vpop.f32.mrb[0].mxu0
        %v1146 = vadd.f32 %v628, %v1145
        %v1147 = vpop.f32.mrb[0].mxu0
        %v1148 = vpop.f32.mrb[0].mxu0
        %v1149 = vadd.f32 %v633, %v1148
        %v1150 = vpop.f32.mrb[0].mxu0
        %1151 = vmatprep.mubr.bf16.mxu0 0
        %1152 = vmatmul.mubr.bf16.gmra.mrb[0].mxu0 %v957
        %v1153 = vpop.f32.mrb[0].mxu0
        %v1154 = vadd.f32 %v638, %v1153
        %v1155 = vpop.f32.mrb[0].mxu0
        %v1156 = vpop.f32.mrb[0].mxu0
        %v1157 = vadd.f32 %v643, %v1156
        %v1158 = vpop.f32.mrb[0].mxu0
        %1159 = vmatprep.mubr.bf16.mxu0 0
        %1160 = vmatmul.mubr.bf16.gmra.mrb[0].mxu0 %v958
        %v1161 = vpop.f32.mrb[0].mxu0
        %v1162 = vadd.f32 %v648, %v1161
        %v1163 = vpop.f32.mrb[0].mxu0
        %v1164 = vpop.f32.mrb[0].mxu0
        %v1165 = vadd.f32 %v653, %v1164
        %v1166 = vpop.f32.mrb[0].mxu0
        %1167 = vmatprep.mubr.bf16.mxu0 0
        %1168 = vmatmul.mubr.bf16.gmra.mrb[0].mxu0 %v959
        %v1169 = vpop.f32.mrb[0].mxu0
        %v1170 = vadd.f32 %v658, %v1169
        %v1171 = vpop.f32.mrb[0].mxu0
        %v1172 = vpop.f32.mrb[0].mxu0
        %v1173 = vadd.f32 %v663, %v1172
        %v1174 = vpop.f32.mrb[0].mxu0
        %1175 = vmatprep.mubr.bf16.mxu0 0
        %1176 = vmatmul.mubr.bf16.gmra.mrb[0].mxu0 %v960
        %v1177 = vpop.f32.mrb[0].mxu0
        %v1178 = vadd.f32 %v668, %v1177
        %v1179 = vpop.f32.mrb[0].mxu0
        %v1180 = vpop.f32.mrb[0].mxu0
        %v1181 = vadd.f32 %v673, %v1180
        %v1182 = vpop.f32.mrb[0].mxu0
        %1183 = vmatprep.mubr.bf16.mxu0 0
        %1184 = vmatmul.mubr.bf16.gmra.mrb[0].mxu0 %v961
        %v1185 = vpop.f32.mrb[0].mxu0
        %v1186 = vadd.f32 %v678, %v1185
        %v1187 = vpop.f32.mrb[0].mxu0
        %v1188 = vpop.f32.mrb[0].mxu0
        %v1189 = vadd.f32 %v683, %v1188
        %v1190 = vpop.f32.mrb[0].mxu0
        %1191 = vmatprep.mubr.bf16.mxu0 0
        %1192 = vmatmul.mubr.bf16.gmra.mrb[0].mxu0 %v962
        %v1193 = vpop.f32.mrb[0].mxu0
        %v1194 = vadd.f32 %v688, %v1193
        %v1195 = vpop.f32.mrb[0].mxu0
        %v1196 = vpop.f32.mrb[0].mxu0
        %v1197 = vadd.f32 %v693, %v1196
        %v1198 = vpop.f32.mrb[0].mxu0
        %1199 = vmatprep.mubr.bf16.mxu0 0
        %1200 = vmatmul.mubr.bf16.gmra.mrb[0].mxu0 %v963
        %v1201 = vpop.f32.mrb[0].mxu0
        %v1202 = vadd.f32 %v698, %v1201
        %v1203 = vpop.f32.mrb[0].mxu0
        %v1204 = vpop.f32.mrb[0].mxu0
        %v1205 = vadd.f32 %v703, %v1204
        %v1206 = vpop.f32.mrb[0].mxu0
        %1207 = vmatprep.mubr.bf16.mxu0 0
        %1208 = vmatmul.mubr.bf16.gmra.mrb[0].mxu0 %v964
        %v1209 = vpop.f32.mrb[0].mxu0
        %v1210 = vadd.f32 %v708, %v1209
        %v1211 = vpop.f32.mrb[0].mxu0
        %v1212 = vpop.f32.mrb[0].mxu0
        %v1213 = vadd.f32 %v713, %v1212
        %v1214 = vpop.f32.mrb[0].mxu0
        %1215 = vmatprep.mubr.bf16.mxu0 0
        %1216 = vmatmul.mubr.bf16.gmra.mrb[0].mxu0 %v965
        %v1217 = vpop.f32.mrb[0].mxu0
        %v1218 = vadd.f32 %v718, %v1217
        %v1219 = vpop.f32.mrb[0].mxu0
        %v1220 = vpop.f32.mrb[0].mxu0
        %v1221 = vadd.f32 %v723, %v1220
        %v1222 = vpop.f32.mrb[0].mxu0
        %1223 = vmatprep.mubr.bf16.mxu0 0
        %1224 = vmatmul.mubr.bf16.gmra.mrb[0].mxu0 %v966
        %v1225 = vpop.f32.mrb[0].mxu0
        %v1226 = vadd.f32 %v728, %v1225
        %v1227 = vpop.f32.mrb[0].mxu0
        %v1228 = vpop.f32.mrb[0].mxu0
        %v1229 = vadd.f32 %v733, %v1228
        %v1230 = vpop.f32.mrb[0].mxu0
        %1231 = vmatprep.mubr.bf16.mxu0 0
        %1232 = vmatmul.mubr.bf16.gmra.mrb[0].mxu0 %v967
        %v1233 = vpop.f32.mrb[0].mxu0
        %v1234 = vadd.f32 %v738, %v1233
        %v1235 = vpop.f32.mrb[0].mxu0
        %v1236 = vpop.f32.mrb[0].mxu0
        %v1237 = vadd.f32 %v743, %v1236
        %v1238 = vpop.f32.mrb[0].mxu0
        %1239 = vmatprep.mubr.bf16.mxu0 0
        %1240 = vmatmul.mubr.bf16.gmra.mrb[0].mxu0 %v968
        %v1241 = vpop.f32.mrb[0].mxu0
        %v1242 = vadd.f32 %v748, %v1241
        %v1243 = vpop.f32.mrb[0].mxu0
        %v1244 = vpop.f32.mrb[0].mxu0
        %v1245 = vadd.f32 %v753, %v1244
        %v1246 = vpop.f32.mrb[0].mxu0
        %1247 = vmatprep.mubr.bf16.mxu0 0
        %1248 = vmatmul.mubr.bf16.gmra.mrb[0].mxu0 %v969
        %v1249 = vpop.f32.mrb[0].mxu0
        %v1250 = vadd.f32 %v758, %v1249
        %v1251 = vpop.f32.mrb[0].mxu0
        %v1252 = vpop.f32.mrb[0].mxu0
        %v1253 = vadd.f32 %v763, %v1252
        %v1254 = vpop.f32.mrb[0].mxu0
        %1255 = vmatprep.mubr.bf16.mxu0 0
        %1256 = vmatmul.mubr.bf16.gmra.mrb[0].mxu0 %v970
        %v1257 = vpop.f32.mrb[0].mxu0
        %v1258 = vadd.f32 %v768, %v1257
        %v1259 = vpop.f32.mrb[0].mxu0
        %v1260 = vpop.f32.mrb[0].mxu0
        %v1261 = vadd.f32 %v773, %v1260
        %v1262 = vpop.f32.mrb[0].mxu0
        %1263 = vmatprep.mubr.bf16.mxu0 0
        %1264 = vmatmul.mubr.bf16.gmra.mrb[0].mxu0 %v971
        %v1265 = vpop.f32.mrb[0].mxu0
        %v1266 = vadd.f32 %v778, %v1265
        %v1267 = vpop.f32.mrb[0].mxu0
        %v1268 = vpop.f32.mrb[0].mxu0
        %v1269 = vadd.f32 %v783, %v1268
        %v1270 = vpop.f32.mrb[0].mxu0
        %1271 = vmatprep.mubr.bf16.mxu0 0
        %1272 = vmatmul.mubr.bf16.gmra.mrb[0].mxu0 %v972
        %v1273 = vpop.f32.mrb[0].mxu0
        %v1274 = vadd.f32 %v788, %v1273
        %v1275 = vpop.f32.mrb[0].mxu0
        %v1276 = vpop.f32.mrb[0].mxu0
        %v1277 = vadd.f32 %v793, %v1276
        %v1278 = vpop.f32.mrb[0].mxu0
        %1279 = vmatprep.mubr.bf16.mxu0 0
        %1280 = vmatmul.mubr.bf16.gmra.mrb[0].mxu0 %v973
        %v1281 = vpop.f32.mrb[0].mxu0
        %v1282 = vadd.f32 %v798, %v1281
        %v1283 = vpop.f32.mrb[0].mxu0
        %v1284 = vpop.f32.mrb[0].mxu0
        %v1285 = vadd.f32 %v803, %v1284
        %v1286 = vpop.f32.mrb[0].mxu0
        %1287 = vmatprep.mubr.bf16.mxu0 0
        %1288 = vmatmul.mubr.bf16.gmra.mrb[0].mxu0 %v974
        %v1289 = vpop.f32.mrb[0].mxu0
        %v1290 = vadd.f32 %v808, %v1289
        %v1291 = vpop.f32.mrb[0].mxu0
        %v1292 = vpop.f32.mrb[0].mxu0
        %v1293 = vadd.f32 %v813, %v1292
        %v1294 = vpop.f32.mrb[0].mxu0
        %1295 = vdwg.mxu0
        %v1296 = vmax.f32 %v1042, 0.0
        %v1297 = vmax.f32 %v1045, 0.0
        %v1298 = vmax.f32 %v1050, 0.0
        %v1299 = vmax.f32 %v1053, 0.0
        %v1300 = vmax.f32 %v1058, 0.0
        %v1301 = vmax.f32 %v1061, 0.0
        %v1302 = vmax.f32 %v1066, 0.0
        %v1303 = vmax.f32 %v1069, 0.0
        %v1304 = vmax.f32 %v1074, 0.0
        %v1305 = vmax.f32 %v1077, 0.0
        %v1306 = vmax.f32 %v1082, 0.0
        %v1307 = vmax.f32 %v1085, 0.0
        %v1308 = vmax.f32 %v1090, 0.0
        %v1309 = vmax.f32 %v1093, 0.0
        %v1310 = vmax.f32 %v1098, 0.0
        %v1311 = vmax.f32 %v1101, 0.0
        %v1312 = vmax.f32 %v1106, 0.0
        %v1313 = vmax.f32 %v1109, 0.0
        %v1314 = vmax.f32 %v1114, 0.0
        %v1315 = vmax.f32 %v1117, 0.0
        %v1316 = vmax.f32 %v1122, 0.0
        %v1317 = vmax.f32 %v1125, 0.0
        %v1318 = vmax.f32 %v1130, 0.0
        %v1319 = vmax.f32 %v1133, 0.0
        %v1320 = vmax.f32 %v1138, 0.0
        %v1321 = vmax.f32 %v1141, 0.0
        %v1322 = vmax.f32 %v1146, 0.0
        %v1323 = vmax.f32 %v1149, 0.0
        %v1324 = vmax.f32 %v1154, 0.0
        %v1325 = vmax.f32 %v1157, 0.0
        %v1326 = vmax.f32 %v1162, 0.0
        %v1327 = vmax.f32 %v1165, 0.0
        %v1328 = vmax.f32 %v1170, 0.0
        %v1329 = vmax.f32 %v1173, 0.0
        %v1330 = vmax.f32 %v1178, 0.0
        %v1331 = vmax.f32 %v1181, 0.0
        %v1332 = vmax.f32 %v1186, 0.0
        %v1333 = vmax.f32 %v1189, 0.0
        %v1334 = vmax.f32 %v1194, 0.0
        %v1335 = vmax.f32 %v1197, 0.0
        %v1336 = vmax.f32 %v1202, 0.0
        %v1337 = vmax.f32 %v1205, 0.0
        %v1338 = vmax.f32 %v1210, 0.0
        %v1339 = vmax.f32 %v1213, 0.0
        %v1340 = vmax.f32 %v1218, 0.0
        %v1341 = vmax.f32 %v1221, 0.0
        %v1342 = vmax.f32 %v1226, 0.0
        %v1343 = vmax.f32 %v1229, 0.0
        %v1344 = vmax.f32 %v1234, 0.0
        %v1345 = vmax.f32 %v1237, 0.0
        %v1346 = vmax.f32 %v1242, 0.0
        %v1347 = vmax.f32 %v1245, 0.0
        %v1348 = vmax.f32 %v1250, 0.0
        %v1349 = vmax.f32 %v1253, 0.0
        %v1350 = vmax.f32 %v1258, 0.0
        %v1351 = vmax.f32 %v1261, 0.0
        %v1352 = vmax.f32 %v1266, 0.0
        %v1353 = vmax.f32 %v1269, 0.0
        %v1354 = vmax.f32 %v1274, 0.0
        %v1355 = vmax.f32 %v1277, 0.0
        %v1356 = vmax.f32 %v1282, 0.0
        %v1357 = vmax.f32 %v1285, 0.0
        %v1358 = vmax.f32 %v1290, 0.0
        %v1359 = vmax.f32 %v1293, 0.0
        %1360 = vst [vmem:[%s325 + $0x80] sm:$0xff] %v1296
        %1361 = vst [vmem:[%s325 + $0x88] sm:$0xff] %v1297
        %1362 = vst [vmem:[%s325 + $0x90] sm:$0xff] %v1298
        %1363 = vst [vmem:[%s325 + $0x98] sm:$0xff] %v1299
        %1364 = vst [vmem:[%s325 + $0xa0] sm:$0xff] %v1300
        %1365 = vst [vmem:[%s325 + $0xa8] sm:$0xff] %v1301
        %1366 = vst [vmem:[%s325 + $0xb0] sm:$0xff] %v1302
        %1367 = vst [vmem:[%s325 + $0xb8] sm:$0xff] %v1303
        %1368 = vst [vmem:[%s325 + $0xc0] sm:$0xff] %v1304
        %1369 = vst [vmem:[%s325 + $0xc8] sm:$0xff] %v1305
        %1370 = vst [vmem:[%s325 + $0xd0] sm:$0xff] %v1306
        %1371 = vst [vmem:[%s325 + $0xd8] sm:$0xff] %v1307
        %1372 = vst [vmem:[%s325 + $0xe0] sm:$0xff] %v1308
        %1373 = vst [vmem:[%s325 + $0xe8] sm:$0xff] %v1309
        %1374 = vst [vmem:[%s325 + $0xf0] sm:$0xff] %v1310
        %1375 = vst [vmem:[%s325 + $0xf8] sm:$0xff] %v1311
        %1376 = vst [vmem:[%s325 + $0x100] sm:$0xff] %v1312
        %1377 = vst [vmem:[%s325 + $0x108] sm:$0xff] %v1313
        %1378 = vst [vmem:[%s325 + $0x110] sm:$0xff] %v1314
        %1379 = vst [vmem:[%s325 + $0x118] sm:$0xff] %v1315
        %1380 = vst [vmem:[%s325 + $0x120] sm:$0xff] %v1316
        %1381 = vst [vmem:[%s325 + $0x128] sm:$0xff] %v1317
        %1382 = vst [vmem:[%s325 + $0x130] sm:$0xff] %v1318
        %1383 = vst [vmem:[%s325 + $0x138] sm:$0xff] %v1319
        %1384 = vst [vmem:[%s325 + $0x140] sm:$0xff] %v1320
        %1385 = vst [vmem:[%s325 + $0x148] sm:$0xff] %v1321
        %1386 = vst [vmem:[%s325 + $0x150] sm:$0xff] %v1322
        %1387 = vst [vmem:[%s325 + $0x158] sm:$0xff] %v1323
        %1388 = vst [vmem:[%s325 + $0x160] sm:$0xff] %v1324
        %1389 = vst [vmem:[%s325 + $0x168] sm:$0xff] %v1325
        %1390 = vst [vmem:[%s325 + $0x170] sm:$0xff] %v1326
        %1391 = vst [vmem:[%s325 + $0x178] sm:$0xff] %v1327
        %1392 = vst [vmem:[%s325 + $0x180] sm:$0xff] %v1328
        %1393 = vst [vmem:[%s325 + $0x188] sm:$0xff] %v1329
        %1394 = vst [vmem:[%s325 + $0x190] sm:$0xff] %v1330
        %1395 = vst [vmem:[%s325 + $0x198] sm:$0xff] %v1331
        %1396 = vst [vmem:[%s325 + $0x1a0] sm:$0xff] %v1332
        %1397 = vst [vmem:[%s325 + $0x1a8] sm:$0xff] %v1333
        %1398 = vst [vmem:[%s325 + $0x1b0] sm:$0xff] %v1334
        %1399 = vst [vmem:[%s325 + $0x1b8] sm:$0xff] %v1335
        %1400 = vst [vmem:[%s325 + $0x1c0] sm:$0xff] %v1336
        %1401 = vst [vmem:[%s325 + $0x1c8] sm:$0xff] %v1337
        %1402 = vst [vmem:[%s325 + $0x1d0] sm:$0xff] %v1338
        %1403 = vst [vmem:[%s325 + $0x1d8] sm:$0xff] %v1339
        %1404 = vst [vmem:[%s325 + $0x1e0] sm:$0xff] %v1340
        %1405 = vst [vmem:[%s325 + $0x1e8] sm:$0xff] %v1341
        %1406 = vst [vmem:[%s325 + $0x1f0] sm:$0xff] %v1342
        %1407 = vst [vmem:[%s325 + $0x1f8] sm:$0xff] %v1343
        %1408 = vst [vmem:[%s325 + $0x200] sm:$0xff] %v1344
        %1409 = vst [vmem:[%s325 + $0x208] sm:$0xff] %v1345
        %1410 = vst [vmem:[%s325 + $0x210] sm:$0xff] %v1346
        %1411 = vst [vmem:[%s325 + $0x218] sm:$0xff] %v1347
        %1412 = vst [vmem:[%s325 + $0x220] sm:$0xff] %v1348
        %1413 = vst [vmem:[%s325 + $0x228] sm:$0xff] %v1349
        %1414 = vst [vmem:[%s325 + $0x230] sm:$0xff] %v1350
        %1415 = vst [vmem:[%s325 + $0x238] sm:$0xff] %v1351
        %1416 = vst [vmem:[%s325 + $0x240] sm:$0xff] %v1352
        %1417 = vst [vmem:[%s325 + $0x248] sm:$0xff] %v1353
        %1418 = vst [vmem:[%s325 + $0x250] sm:$0xff] %v1354
        %1419 = vst [vmem:[%s325 + $0x258] sm:$0xff] %v1355
        %1420 = vst [vmem:[%s325 + $0x260] sm:$0xff] %v1356
        %1421 = vst [vmem:[%s325 + $0x268] sm:$0xff] %v1357
        %1422 = vst [vmem:[%s325 + $0x270] sm:$0xff] %v1358
        %1423 = vst [vmem:[%s325 + $0x278] sm:$0xff] %v1359
        %v1424 = vld [vmem:[#allocation7] sm:$0xf]
        %v1425 = vld [vmem:[#allocation7 + $0x4] sm:$0xf]
        %v1426 = vld [vmem:[#allocation7 + $0x8] sm:$0xf]
        %v1427 = vld [vmem:[#allocation7 + $0xc] sm:$0xf]
        %v1428 = vld [vmem:[#allocation7 + $0x10] sm:$0xf]
        %v1429 = vld [vmem:[#allocation7 + $0x14] sm:$0xf]
        %v1430 = vld [vmem:[#allocation7 + $0x18] sm:$0xf]
        %v1431 = vld [vmem:[#allocation7 + $0x1c] sm:$0xf]
        %v1432 = vld [vmem:[#allocation7 + $0x20] sm:$0xf]
        %v1433 = vld [vmem:[#allocation7 + $0x24] sm:$0xf]
        %v1434 = vld [vmem:[#allocation7 + $0x28] sm:$0xf]
        %v1435 = vld [vmem:[#allocation7 + $0x2c] sm:$0xf]
        %v1436 = vld [vmem:[#allocation7 + $0x30] sm:$0xf]
        %v1437 = vld [vmem:[#allocation7 + $0x34] sm:$0xf]
        %v1438 = vld [vmem:[#allocation7 + $0x38] sm:$0xf]
        %v1439 = vld [vmem:[#allocation7 + $0x3c] sm:$0xf]
        %v1440 = vld [vmem:[#allocation7 + $0x40] sm:$0xf]
        %v1441 = vld [vmem:[#allocation7 + $0x44] sm:$0xf]
        %v1442 = vld [vmem:[#allocation7 + $0x48] sm:$0xf]
        %v1443 = vld [vmem:[#allocation7 + $0x4c] sm:$0xf]
        %v1444 = vld [vmem:[#allocation7 + $0x50] sm:$0xf]
        %v1445 = vld [vmem:[#allocation7 + $0x54] sm:$0xf]
        %v1446 = vld [vmem:[#allocation7 + $0x58] sm:$0xf]
        %v1447 = vld [vmem:[#allocation7 + $0x5c] sm:$0xf]
        %v1448 = vld [vmem:[#allocation7 + $0x60] sm:$0xf]
        %v1449 = vld [vmem:[#allocation7 + $0x64] sm:$0xf]
        %v1450 = vld [vmem:[#allocation7 + $0x68] sm:$0xf]
        %v1451 = vld [vmem:[#allocation7 + $0x6c] sm:$0xf]
        %v1452 = vld [vmem:[#allocation7 + $0x70] sm:$0xf]
        %v1453 = vld [vmem:[#allocation7 + $0x74] sm:$0xf]
        %v1454 = vld [vmem:[#allocation7 + $0x78] sm:$0xf]
        %v1455 = vld [vmem:[#allocation7 + $0x7c] sm:$0xf]
        %v1456 = vld [vmem:[#allocation7 + $0x80] sm:$0xf]
        %v1457 = vld [vmem:[#allocation7 + $0x84] sm:$0xf]
        %v1458 = vld [vmem:[#allocation7 + $0x88] sm:$0xf]
        %v1459 = vld [vmem:[#allocation7 + $0x8c] sm:$0xf]
        %v1460 = vld [vmem:[#allocation7 + $0x90] sm:$0xf]
        %v1461 = vld [vmem:[#allocation7 + $0x94] sm:$0xf]
        %v1462 = vld [vmem:[#allocation7 + $0x98] sm:$0xf]
        %v1463 = vld [vmem:[#allocation7 + $0x9c] sm:$0xf]
        %v1464 = vld [vmem:[#allocation7 + $0xa0] sm:$0xf]
        %v1465 = vld [vmem:[#allocation7 + $0xa4] sm:$0xf]
        %v1466 = vld [vmem:[#allocation7 + $0xa8] sm:$0xf]
        %v1467 = vld [vmem:[#allocation7 + $0xac] sm:$0xf]
        %v1468 = vld [vmem:[#allocation7 + $0xb0] sm:$0xf]
        %v1469 = vld [vmem:[#allocation7 + $0xb4] sm:$0xf]
        %v1470 = vld [vmem:[#allocation7 + $0xb8] sm:$0xf]
        %v1471 = vld [vmem:[#allocation7 + $0xbc] sm:$0xf]
        %v1472 = vld [vmem:[#allocation7 + $0xc0] sm:$0xf]
        %v1473 = vld [vmem:[#allocation7 + $0xc4] sm:$0xf]
        %v1474 = vld [vmem:[#allocation7 + $0xc8] sm:$0xf]
        %v1475 = vld [vmem:[#allocation7 + $0xcc] sm:$0xf]
        %v1476 = vld [vmem:[#allocation7 + $0xd0] sm:$0xf]
        %v1477 = vld [vmem:[#allocation7 + $0xd4] sm:$0xf]
        %v1478 = vld [vmem:[#allocation7 + $0xd8] sm:$0xf]
        %v1479 = vld [vmem:[#allocation7 + $0xdc] sm:$0xf]
        %v1480 = vld [vmem:[#allocation7 + $0xe0] sm:$0xf]
        %v1481 = vld [vmem:[#allocation7 + $0xe4] sm:$0xf]
        %v1482 = vld [vmem:[#allocation7 + $0xe8] sm:$0xf]
        %v1483 = vld [vmem:[#allocation7 + $0xec] sm:$0xf]
        %v1484 = vld [vmem:[#allocation7 + $0xf0] sm:$0xf]
        %v1485 = vld [vmem:[#allocation7 + $0xf4] sm:$0xf]
        %v1486 = vld [vmem:[#allocation7 + $0xf8] sm:$0xf]
        %v1487 = vld [vmem:[#allocation7 + $0xfc] sm:$0xf]
        %v1488 = vld [vmem:[%s4] sm:$0xff]
        %v1489 = vld [vmem:[%s4 + $0x8] sm:$0xff]
        %v1490 = vld [vmem:[%s4 + $0x10] sm:$0xff]
        %v1491 = vld [vmem:[%s4 + $0x18] sm:$0xff]
        %v1492 = vld [vmem:[%s4 + $0x20] sm:$0xff]
        %v1493 = vld [vmem:[%s4 + $0x28] sm:$0xff]
        %v1494 = vld [vmem:[%s4 + $0x30] sm:$0xff]
        %v1495 = vld [vmem:[%s4 + $0x38] sm:$0xff]
        %v1496 = vld [vmem:[%s4 + $0x40] sm:$0xff]
        %v1497 = vld [vmem:[%s4 + $0x48] sm:$0xff]
        %v1498 = vld [vmem:[%s4 + $0x50] sm:$0xff]
        %v1499 = vld [vmem:[%s4 + $0x58] sm:$0xff]
        %v1500 = vld [vmem:[%s4 + $0x60] sm:$0xff]
        %v1501 = vld [vmem:[%s4 + $0x68] sm:$0xff]
        %v1502 = vld [vmem:[%s4 + $0x70] sm:$0xff]
        %v1503 = vld [vmem:[%s4 + $0x78] sm:$0xff]
        %v1504 = vld [vmem:[%s4 + $0x80] sm:$0xff]
        %v1505 = vld [vmem:[%s4 + $0x88] sm:$0xff]
        %v1506 = vld [vmem:[%s4 + $0x90] sm:$0xff]
        %v1507 = vld [vmem:[%s4 + $0x98] sm:$0xff]
        %v1508 = vld [vmem:[%s4 + $0xa0] sm:$0xff]
        %v1509 = vld [vmem:[%s4 + $0xa8] sm:$0xff]
        %v1510 = vld [vmem:[%s4 + $0xb0] sm:$0xff]
        %v1511 = vld [vmem:[%s4 + $0xb8] sm:$0xff]
        %v1512 = vld [vmem:[%s4 + $0xc0] sm:$0xff]
        %v1513 = vld [vmem:[%s4 + $0xc8] sm:$0xff]
        %v1514 = vld [vmem:[%s4 + $0xd0] sm:$0xff]
        %v1515 = vld [vmem:[%s4 + $0xd8] sm:$0xff]
        %v1516 = vld [vmem:[%s4 + $0xe0] sm:$0xff]
        %v1517 = vld [vmem:[%s4 + $0xe8] sm:$0xff]
        %v1518 = vld [vmem:[%s4 + $0xf0] sm:$0xff]
        %v1519 = vld [vmem:[%s4 + $0xf8] sm:$0xff]
        %v1520 = vld [vmem:[%s4 + $0x100] sm:$0xff]
        %v1521 = vld [vmem:[%s4 + $0x108] sm:$0xff]
        %v1522 = vld [vmem:[%s4 + $0x110] sm:$0xff]
        %v1523 = vld [vmem:[%s4 + $0x118] sm:$0xff]
        %v1524 = vld [vmem:[%s4 + $0x120] sm:$0xff]
        %v1525 = vld [vmem:[%s4 + $0x128] sm:$0xff]
        %v1526 = vld [vmem:[%s4 + $0x130] sm:$0xff]
        %v1527 = vld [vmem:[%s4 + $0x138] sm:$0xff]
        %v1528 = vld [vmem:[%s4 + $0x140] sm:$0xff]
        %v1529 = vld [vmem:[%s4 + $0x148] sm:$0xff]
        %v1530 = vld [vmem:[%s4 + $0x150] sm:$0xff]
        %v1531 = vld [vmem:[%s4 + $0x158] sm:$0xff]
        %v1532 = vld [vmem:[%s4 + $0x160] sm:$0xff]
        %v1533 = vld [vmem:[%s4 + $0x168] sm:$0xff]
        %v1534 = vld [vmem:[%s4 + $0x170] sm:$0xff]
        %v1535 = vld [vmem:[%s4 + $0x178] sm:$0xff]
        %v1536 = vld [vmem:[%s4 + $0x180] sm:$0xff]
        %v1537 = vld [vmem:[%s4 + $0x188] sm:$0xff]
        %v1538 = vld [vmem:[%s4 + $0x190] sm:$0xff]
        %v1539 = vld [vmem:[%s4 + $0x198] sm:$0xff]
        %v1540 = vld [vmem:[%s4 + $0x1a0] sm:$0xff]
        %v1541 = vld [vmem:[%s4 + $0x1a8] sm:$0xff]
        %v1542 = vld [vmem:[%s4 + $0x1b0] sm:$0xff]
        %v1543 = vld [vmem:[%s4 + $0x1b8] sm:$0xff]
        %v1544 = vld [vmem:[%s4 + $0x1c0] sm:$0xff]
        %v1545 = vld [vmem:[%s4 + $0x1c8] sm:$0xff]
        %v1546 = vld [vmem:[%s4 + $0x1d0] sm:$0xff]
        %v1547 = vld [vmem:[%s4 + $0x1d8] sm:$0xff]
        %v1548 = vld [vmem:[%s4 + $0x1e0] sm:$0xff]
        %v1549 = vld [vmem:[%s4 + $0x1e8] sm:$0xff]
        %v1550 = vld [vmem:[%s4 + $0x1f0] sm:$0xff]
        %v1551 = vld [vmem:[%s4 + $0x1f8] sm:$0xff]
        %1553 = vset.pattern.permute.xlu0 0
        %1554 = vperm.xlu0 %1553, %v1488
        %v1555 = vpop.permute.xlu0 %1554
        %1558 = vset.pattern.permute.xlu0 0
        %1559 = vperm.xlu0 %1558, %v1489
        %v1560 = vpop.permute.xlu0 %1559
        %1563 = vset.pattern.permute.xlu0 0
        %1564 = vperm.xlu0 %1563, %v1490
        %v1565 = vpop.permute.xlu0 %1564
        %1568 = vset.pattern.permute.xlu0 0
        %1569 = vperm.xlu0 %1568, %v1491
        %v1570 = vpop.permute.xlu0 %1569
        %1573 = vset.pattern.permute.xlu0 0
        %1574 = vperm.xlu0 %1573, %v1492
        %v1575 = vpop.permute.xlu0 %1574
        %1578 = vset.pattern.permute.xlu0 0
        %1579 = vperm.xlu0 %1578, %v1493
        %v1580 = vpop.permute.xlu0 %1579
        %1583 = vset.pattern.permute.xlu0 0
        %1584 = vperm.xlu0 %1583, %v1494
        %v1585 = vpop.permute.xlu0 %1584
        %1588 = vset.pattern.permute.xlu0 0
        %1589 = vperm.xlu0 %1588, %v1495
        %v1590 = vpop.permute.xlu0 %1589
        %1593 = vset.pattern.permute.xlu0 0
        %1594 = vperm.xlu0 %1593, %v1496
        %v1595 = vpop.permute.xlu0 %1594
        %1598 = vset.pattern.permute.xlu0 0
        %1599 = vperm.xlu0 %1598, %v1497
        %v1600 = vpop.permute.xlu0 %1599
        %1603 = vset.pattern.permute.xlu0 0
        %1604 = vperm.xlu0 %1603, %v1498
        %v1605 = vpop.permute.xlu0 %1604
        %1608 = vset.pattern.permute.xlu0 0
        %1609 = vperm.xlu0 %1608, %v1499
        %v1610 = vpop.permute.xlu0 %1609
        %1613 = vset.pattern.permute.xlu0 0
        %1614 = vperm.xlu0 %1613, %v1500
        %v1615 = vpop.permute.xlu0 %1614
        %1618 = vset.pattern.permute.xlu0 0
        %1619 = vperm.xlu0 %1618, %v1501
        %v1620 = vpop.permute.xlu0 %1619
        %1623 = vset.pattern.permute.xlu0 0
        %1624 = vperm.xlu0 %1623, %v1502
        %v1625 = vpop.permute.xlu0 %1624
        %1628 = vset.pattern.permute.xlu0 0
        %1629 = vperm.xlu0 %1628, %v1503
        %v1630 = vpop.permute.xlu0 %1629
        %1633 = vset.pattern.permute.xlu0 0
        %1634 = vperm.xlu0 %1633, %v1504
        %v1635 = vpop.permute.xlu0 %1634
        %1638 = vset.pattern.permute.xlu0 0
        %1639 = vperm.xlu0 %1638, %v1505
        %v1640 = vpop.permute.xlu0 %1639
        %1643 = vset.pattern.permute.xlu0 0
        %1644 = vperm.xlu0 %1643, %v1506
        %v1645 = vpop.permute.xlu0 %1644
        %1648 = vset.pattern.permute.xlu0 0
        %1649 = vperm.xlu0 %1648, %v1507
        %v1650 = vpop.permute.xlu0 %1649
        %1653 = vset.pattern.permute.xlu0 0
        %1654 = vperm.xlu0 %1653, %v1508
        %v1655 = vpop.permute.xlu0 %1654
        %1658 = vset.pattern.permute.xlu0 0
        %1659 = vperm.xlu0 %1658, %v1509
        %v1660 = vpop.permute.xlu0 %1659
        %1663 = vset.pattern.permute.xlu0 0
        %1664 = vperm.xlu0 %1663, %v1510
        %v1665 = vpop.permute.xlu0 %1664
        %1668 = vset.pattern.permute.xlu0 0
        %1669 = vperm.xlu0 %1668, %v1511
        %v1670 = vpop.permute.xlu0 %1669
        %1673 = vset.pattern.permute.xlu0 0
        %1674 = vperm.xlu0 %1673, %v1512
        %v1675 = vpop.permute.xlu0 %1674
        %1678 = vset.pattern.permute.xlu0 0
        %1679 = vperm.xlu0 %1678, %v1513
        %v1680 = vpop.permute.xlu0 %1679
        %1683 = vset.pattern.permute.xlu0 0
        %1684 = vperm.xlu0 %1683, %v1514
        %v1685 = vpop.permute.xlu0 %1684
        %1688 = vset.pattern.permute.xlu0 0
        %1689 = vperm.xlu0 %1688, %v1515
        %v1690 = vpop.permute.xlu0 %1689
        %1693 = vset.pattern.permute.xlu0 0
        %1694 = vperm.xlu0 %1693, %v1516
        %v1695 = vpop.permute.xlu0 %1694
        %1698 = vset.pattern.permute.xlu0 0
        %1699 = vperm.xlu0 %1698, %v1517
        %v1700 = vpop.permute.xlu0 %1699
        %1703 = vset.pattern.permute.xlu0 0
        %1704 = vperm.xlu0 %1703, %v1518
        %v1705 = vpop.permute.xlu0 %1704
        %1708 = vset.pattern.permute.xlu0 0
        %1709 = vperm.xlu0 %1708, %v1519
        %v1710 = vpop.permute.xlu0 %1709
        %1713 = vset.pattern.permute.xlu0 0
        %1714 = vperm.xlu0 %1713, %v1520
        %v1715 = vpop.permute.xlu0 %1714
        %1718 = vset.pattern.permute.xlu0 0
        %1719 = vperm.xlu0 %1718, %v1521
        %v1720 = vpop.permute.xlu0 %1719
        %1723 = vset.pattern.permute.xlu0 0
        %1724 = vperm.xlu0 %1723, %v1522
        %v1725 = vpop.permute.xlu0 %1724
        %1728 = vset.pattern.permute.xlu0 0
        %1729 = vperm.xlu0 %1728, %v1523
        %v1730 = vpop.permute.xlu0 %1729
        %1733 = vset.pattern.permute.xlu0 0
        %1734 = vperm.xlu0 %1733, %v1524
        %v1735 = vpop.permute.xlu0 %1734
        %1738 = vset.pattern.permute.xlu0 0
        %1739 = vperm.xlu0 %1738, %v1525
        %v1740 = vpop.permute.xlu0 %1739
        %1743 = vset.pattern.permute.xlu0 0
        %1744 = vperm.xlu0 %1743, %v1526
        %v1745 = vpop.permute.xlu0 %1744
        %1748 = vset.pattern.permute.xlu0 0
        %1749 = vperm.xlu0 %1748, %v1527
        %v1750 = vpop.permute.xlu0 %1749
        %1753 = vset.pattern.permute.xlu0 0
        %1754 = vperm.xlu0 %1753, %v1528
        %v1755 = vpop.permute.xlu0 %1754
        %1758 = vset.pattern.permute.xlu0 0
        %1759 = vperm.xlu0 %1758, %v1529
        %v1760 = vpop.permute.xlu0 %1759
        %1763 = vset.pattern.permute.xlu0 0
        %1764 = vperm.xlu0 %1763, %v1530
        %v1765 = vpop.permute.xlu0 %1764
        %1768 = vset.pattern.permute.xlu0 0
        %1769 = vperm.xlu0 %1768, %v1531
        %v1770 = vpop.permute.xlu0 %1769
        %1773 = vset.pattern.permute.xlu0 0
        %1774 = vperm.xlu0 %1773, %v1532
        %v1775 = vpop.permute.xlu0 %1774
        %1778 = vset.pattern.permute.xlu0 0
        %1779 = vperm.xlu0 %1778, %v1533
        %v1780 = vpop.permute.xlu0 %1779
        %1783 = vset.pattern.permute.xlu0 0
        %1784 = vperm.xlu0 %1783, %v1534
        %v1785 = vpop.permute.xlu0 %1784
        %1788 = vset.pattern.permute.xlu0 0
        %1789 = vperm.xlu0 %1788, %v1535
        %v1790 = vpop.permute.xlu0 %1789
        %1793 = vset.pattern.permute.xlu0 0
        %1794 = vperm.xlu0 %1793, %v1536
        %v1795 = vpop.permute.xlu0 %1794
        %1798 = vset.pattern.permute.xlu0 0
        %1799 = vperm.xlu0 %1798, %v1537
        %v1800 = vpop.permute.xlu0 %1799
        %1803 = vset.pattern.permute.xlu0 0
        %1804 = vperm.xlu0 %1803, %v1538
        %v1805 = vpop.permute.xlu0 %1804
        %1808 = vset.pattern.permute.xlu0 0
        %1809 = vperm.xlu0 %1808, %v1539
        %v1810 = vpop.permute.xlu0 %1809
        %1813 = vset.pattern.permute.xlu0 0
        %1814 = vperm.xlu0 %1813, %v1540
        %v1815 = vpop.permute.xlu0 %1814
        %1818 = vset.pattern.permute.xlu0 0
        %1819 = vperm.xlu0 %1818, %v1541
        %v1820 = vpop.permute.xlu0 %1819
        %1823 = vset.pattern.permute.xlu0 0
        %1824 = vperm.xlu0 %1823, %v1542
        %v1825 = vpop.permute.xlu0 %1824
        %1828 = vset.pattern.permute.xlu0 0
        %1829 = vperm.xlu0 %1828, %v1543
        %v1830 = vpop.permute.xlu0 %1829
        %1833 = vset.pattern.permute.xlu0 0
        %1834 = vperm.xlu0 %1833, %v1544
        %v1835 = vpop.permute.xlu0 %1834
        %1838 = vset.pattern.permute.xlu0 0
        %1839 = vperm.xlu0 %1838, %v1545
        %v1840 = vpop.permute.xlu0 %1839
        %1843 = vset.pattern.permute.xlu0 0
        %1844 = vperm.xlu0 %1843, %v1546
        %v1845 = vpop.permute.xlu0 %1844
        %1848 = vset.pattern.permute.xlu0 0
        %1849 = vperm.xlu0 %1848, %v1547
        %v1850 = vpop.permute.xlu0 %1849
        %1853 = vset.pattern.permute.xlu0 0
        %1854 = vperm.xlu0 %1853, %v1548
        %v1855 = vpop.permute.xlu0 %1854
        %1858 = vset.pattern.permute.xlu0 0
        %1859 = vperm.xlu0 %1858, %v1549
        %v1860 = vpop.permute.xlu0 %1859
        %1863 = vset.pattern.permute.xlu0 0
        %1864 = vperm.xlu0 %1863, %v1550
        %v1865 = vpop.permute.xlu0 %1864
        %1868 = vset.pattern.permute.xlu0 0
        %1869 = vperm.xlu0 %1868, %v1551
        %v1870 = vpop.permute.xlu0 %1869
        %v1936 = vunpack.c.l.b16 %v1424
        %v1937 = vunpack.c.l.b16 %v1425
        %v1938 = vunpack.c.l.b16 %v1426
        %v1939 = vunpack.c.l.b16 %v1427
        %v1940 = vunpack.c.l.b16 %v1428
        %v1941 = vunpack.c.l.b16 %v1429
        %v1942 = vunpack.c.l.b16 %v1430
        %v1943 = vunpack.c.l.b16 %v1431
        %v1944 = vunpack.c.l.b16 %v1432
        %v1945 = vunpack.c.l.b16 %v1433
        %v1946 = vunpack.c.l.b16 %v1434
        %v1947 = vunpack.c.l.b16 %v1435
        %v1948 = vunpack.c.l.b16 %v1436
        %v1949 = vunpack.c.l.b16 %v1437
        %v1950 = vunpack.c.l.b16 %v1438
        %v1951 = vunpack.c.l.b16 %v1439
        %v1952 = vunpack.c.l.b16 %v1440
        %v1953 = vunpack.c.l.b16 %v1441
        %v1954 = vunpack.c.l.b16 %v1442
        %v1955 = vunpack.c.l.b16 %v1443
        %v1956 = vunpack.c.l.b16 %v1444
        %v1957 = vunpack.c.l.b16 %v1445
        %v1958 = vunpack.c.l.b16 %v1446
        %v1959 = vunpack.c.l.b16 %v1447
        %v1960 = vunpack.c.l.b16 %v1448
        %v1961 = vunpack.c.l.b16 %v1449
        %v1962 = vunpack.c.l.b16 %v1450
        %v1963 = vunpack.c.l.b16 %v1451
        %v1964 = vunpack.c.l.b16 %v1452
        %v1965 = vunpack.c.l.b16 %v1453
        %v1966 = vunpack.c.l.b16 %v1454
        %v1967 = vunpack.c.l.b16 %v1455
        %v1968 = vunpack.c.l.b16 %v1456
        %v1969 = vunpack.c.l.b16 %v1457
        %v1970 = vunpack.c.l.b16 %v1458
        %v1971 = vunpack.c.l.b16 %v1459
        %v1972 = vunpack.c.l.b16 %v1460
        %v1973 = vunpack.c.l.b16 %v1461
        %v1974 = vunpack.c.l.b16 %v1462
        %v1975 = vunpack.c.l.b16 %v1463
        %v1976 = vunpack.c.l.b16 %v1464
        %v1977 = vunpack.c.l.b16 %v1465
        %v1978 = vunpack.c.l.b16 %v1466
        %v1979 = vunpack.c.l.b16 %v1467
        %v1980 = vunpack.c.l.b16 %v1468
        %v1981 = vunpack.c.l.b16 %v1469
        %v1982 = vunpack.c.l.b16 %v1470
        %v1983 = vunpack.c.l.b16 %v1471
        %v1984 = vunpack.c.l.b16 %v1472
        %v1985 = vunpack.c.l.b16 %v1473
        %v1986 = vunpack.c.l.b16 %v1474
        %v1987 = vunpack.c.l.b16 %v1475
        %v1988 = vunpack.c.l.b16 %v1476
        %v1989 = vunpack.c.l.b16 %v1477
        %v1990 = vunpack.c.l.b16 %v1478
        %v1991 = vunpack.c.l.b16 %v1479
        %v1992 = vunpack.c.l.b16 %v1480
        %v1993 = vunpack.c.l.b16 %v1481
        %v1994 = vunpack.c.l.b16 %v1482
        %v1995 = vunpack.c.l.b16 %v1483
        %v1996 = vunpack.c.l.b16 %v1484
        %v1997 = vunpack.c.l.b16 %v1485
        %v1998 = vunpack.c.l.b16 %v1486
        %v1999 = vunpack.c.l.b16 %v1487
        %v2000 = vpack.c.b16 %v1937, %v1936
        %v2001 = vpack.c.b16 %v1939, %v1938
        %v2002 = vpack.c.b16 %v1941, %v1940
        %v2003 = vpack.c.b16 %v1943, %v1942
        %v2004 = vpack.c.b16 %v1945, %v1944
        %v2005 = vpack.c.b16 %v1947, %v1946
        %v2006 = vpack.c.b16 %v1949, %v1948
        %v2007 = vpack.c.b16 %v1951, %v1950
        %v2008 = vpack.c.b16 %v1953, %v1952
        %v2009 = vpack.c.b16 %v1955, %v1954
        %v2010 = vpack.c.b16 %v1957, %v1956
        %v2011 = vpack.c.b16 %v1959, %v1958
        %v2012 = vpack.c.b16 %v1961, %v1960
        %v2013 = vpack.c.b16 %v1963, %v1962
        %v2014 = vpack.c.b16 %v1965, %v1964
        %v2015 = vpack.c.b16 %v1967, %v1966
        %v2016 = vpack.c.b16 %v1969, %v1968
        %v2017 = vpack.c.b16 %v1971, %v1970
        %v2018 = vpack.c.b16 %v1973, %v1972
        %v2019 = vpack.c.b16 %v1975, %v1974
        %v2020 = vpack.c.b16 %v1977, %v1976
        %v2021 = vpack.c.b16 %v1979, %v1978
        %v2022 = vpack.c.b16 %v1981, %v1980
        %v2023 = vpack.c.b16 %v1983, %v1982
        %v2024 = vpack.c.b16 %v1985, %v1984
        %v2025 = vpack.c.b16 %v1987, %v1986
        %v2026 = vpack.c.b16 %v1989, %v1988
        %v2027 = vpack.c.b16 %v1991, %v1990
        %v2028 = vpack.c.b16 %v1993, %v1992
        %v2029 = vpack.c.b16 %v1995, %v1994
        %v2030 = vpack.c.b16 %v1997, %v1996
        %v2031 = vpack.c.b16 %v1999, %v1998
        %2064 = vmatprep.subr.bf16.mxu0 0
        %2065 = vmatpush1.bf16.msra.mxu0 %v359
        %2066 = vmatprep.subr.bf16.mxu0 0
        %2067 = vmatpush1.bf16.msra.mxu0 %v360
        %2068 = vmatprep.subr.bf16.mxu0 0
        %2069 = vmatpush1.bf16.msra.mxu0 %v361
        %2070 = vmatprep.subr.bf16.mxu0 0
        %2071 = vmatpush1.bf16.msra.mxu0 %v362
        %2072 = vmatprep.subr.bf16.mxu0 0
        %2073 = vmatpush1.bf16.msra.mxu0 %v363
        %2074 = vmatprep.subr.bf16.mxu0 0
        %2075 = vmatpush1.bf16.msra.mxu0 %v364
        %2076 = vmatprep.subr.bf16.mxu0 0
        %2077 = vmatpush1.bf16.msra.mxu0 %v365
        %2078 = vmatprep.subr.bf16.mxu0 0
        %2079 = vmatpush1.bf16.msra.mxu0 %v366
        %2080 = vmatprep.subr.bf16.mxu0 0
        %2081 = vmatpush1.bf16.msra.mxu0 0
        %2082 = vmatprep.subr.bf16.mxu0 0
        %2083 = vmatpush1.bf16.msra.mxu0 0
        %2084 = vmatprep.subr.bf16.mxu0 0
        %2085 = vmatpush1.bf16.msra.mxu0 0
        %2086 = vmatprep.subr.bf16.mxu0 0
        %2087 = vmatpush1.bf16.msra.mxu0 0
        %2088 = vmatprep.subr.bf16.mxu0 0
        %2089 = vmatpush1.bf16.msra.mxu0 0
        %2090 = vmatprep.subr.bf16.mxu0 0
        %2091 = vmatpush1.bf16.msra.mxu0 0
        %2092 = vmatprep.subr.bf16.mxu0 0
        %2093 = vmatpush1.bf16.msra.mxu0 0
        %2094 = vmatprep.subr.bf16.mxu0 0
        %2095 = vmatpush1.bf16.msra.mxu0 0
        %2096 = vmatprep.mubr.bf16.mxu0 0
        %2097 = vmatmul.mubr.bf16.gmra.mrb[0].mxu0 %v2000
        %v2098 = vpop.f32.mrb[0].mxu0
        %v2099 = vadd.f32 %v1555, %v2098
        %v2100 = vpop.f32.mrb[0].mxu0
        %v2101 = vpop.f32.mrb[0].mxu0
        %v2102 = vadd.f32 %v1560, %v2101
        %v2103 = vpop.f32.mrb[0].mxu0
        %2104 = vmatprep.mubr.bf16.mxu0 0
        %2105 = vmatmul.mubr.bf16.gmra.mrb[0].mxu0 %v2001
        %v2106 = vpop.f32.mrb[0].mxu0
        %v2107 = vadd.f32 %v1565, %v2106
        %v2108 = vpop.f32.mrb[0].mxu0
        %v2109 = vpop.f32.mrb[0].mxu0
        %v2110 = vadd.f32 %v1570, %v2109
        %v2111 = vpop.f32.mrb[0].mxu0
        %2112 = vmatprep.mubr.bf16.mxu0 0
        %2113 = vmatmul.mubr.bf16.gmra.mrb[0].mxu0 %v2002
        %v2114 = vpop.f32.mrb[0].mxu0
        %v2115 = vadd.f32 %v1575, %v2114
        %v2116 = vpop.f32.mrb[0].mxu0
        %v2117 = vpop.f32.mrb[0].mxu0
        %v2118 = vadd.f32 %v1580, %v2117
        %v2119 = vpop.f32.mrb[0].mxu0
        %2120 = vmatprep.mubr.bf16.mxu0 0
        %2121 = vmatmul.mubr.bf16.gmra.mrb[0].mxu0 %v2003
        %v2122 = vpop.f32.mrb[0].mxu0
        %v2123 = vadd.f32 %v1585, %v2122
        %v2124 = vpop.f32.mrb[0].mxu0
        %v2125 = vpop.f32.mrb[0].mxu0
        %v2126 = vadd.f32 %v1590, %v2125
        %v2127 = vpop.f32.mrb[0].mxu0
        %2128 = vmatprep.mubr.bf16.mxu0 0
        %2129 = vmatmul.mubr.bf16.gmra.mrb[0].mxu0 %v2004
        %v2130 = vpop.f32.mrb[0].mxu0
        %v2131 = vadd.f32 %v1595, %v2130
        %v2132 = vpop.f32.mrb[0].mxu0
        %v2133 = vpop.f32.mrb[0].mxu0
        %v2134 = vadd.f32 %v1600, %v2133
        %v2135 = vpop.f32.mrb[0].mxu0
        %2136 = vmatprep.mubr.bf16.mxu0 0
        %2137 = vmatmul.mubr.bf16.gmra.mrb[0].mxu0 %v2005
        %v2138 = vpop.f32.mrb[0].mxu0
        %v2139 = vadd.f32 %v1605, %v2138
        %v2140 = vpop.f32.mrb[0].mxu0
        %v2141 = vpop.f32.mrb[0].mxu0
        %v2142 = vadd.f32 %v1610, %v2141
        %v2143 = vpop.f32.mrb[0].mxu0
        %2144 = vmatprep.mubr.bf16.mxu0 0
        %2145 = vmatmul.mubr.bf16.gmra.mrb[0].mxu0 %v2006
        %v2146 = vpop.f32.mrb[0].mxu0
        %v2147 = vadd.f32 %v1615, %v2146
        %v2148 = vpop.f32.mrb[0].mxu0
        %v2149 = vpop.f32.mrb[0].mxu0
        %v2150 = vadd.f32 %v1620, %v2149
        %v2151 = vpop.f32.mrb[0].mxu0
        %2152 = vmatprep.mubr.bf16.mxu0 0
        %2153 = vmatmul.mubr.bf16.gmra.mrb[0].mxu0 %v2007
        %v2154 = vpop.f32.mrb[0].mxu0
        %v2155 = vadd.f32 %v1625, %v2154
        %v2156 = vpop.f32.mrb[0].mxu0
        %v2157 = vpop.f32.mrb[0].mxu0
        %v2158 = vadd.f32 %v1630, %v2157
        %v2159 = vpop.f32.mrb[0].mxu0
        %2160 = vmatprep.mubr.bf16.mxu0 0
        %2161 = vmatmul.mubr.bf16.gmra.mrb[0].mxu0 %v2008
        %v2162 = vpop.f32.mrb[0].mxu0
        %v2163 = vadd.f32 %v1635, %v2162
        %v2164 = vpop.f32.mrb[0].mxu0
        %v2165 = vpop.f32.mrb[0].mxu0
        %v2166 = vadd.f32 %v1640, %v2165
        %v2167 = vpop.f32.mrb[0].mxu0
        %2168 = vmatprep.mubr.bf16.mxu0 0
        %2169 = vmatmul.mubr.bf16.gmra.mrb[0].mxu0 %v2009
        %v2170 = vpop.f32.mrb[0].mxu0
        %v2171 = vadd.f32 %v1645, %v2170
        %v2172 = vpop.f32.mrb[0].mxu0
        %v2173 = vpop.f32.mrb[0].mxu0
        %v2174 = vadd.f32 %v1650, %v2173
        %v2175 = vpop.f32.mrb[0].mxu0
        %2176 = vmatprep.mubr.bf16.mxu0 0
        %2177 = vmatmul.mubr.bf16.gmra.mrb[0].mxu0 %v2010
        %v2178 = vpop.f32.mrb[0].mxu0
        %v2179 = vadd.f32 %v1655, %v2178
        %v2180 = vpop.f32.mrb[0].mxu0
        %v2181 = vpop.f32.mrb[0].mxu0
        %v2182 = vadd.f32 %v1660, %v2181
        %v2183 = vpop.f32.mrb[0].mxu0
        %2184 = vmatprep.mubr.bf16.mxu0 0
        %2185 = vmatmul.mubr.bf16.gmra.mrb[0].mxu0 %v2011
        %v2186 = vpop.f32.mrb[0].mxu0
        %v2187 = vadd.f32 %v1665, %v2186
        %v2188 = vpop.f32.mrb[0].mxu0
        %v2189 = vpop.f32.mrb[0].mxu0
        %v2190 = vadd.f32 %v1670, %v2189
        %v2191 = vpop.f32.mrb[0].mxu0
        %2192 = vmatprep.mubr.bf16.mxu0 0
        %2193 = vmatmul.mubr.bf16.gmra.mrb[0].mxu0 %v2012
        %v2194 = vpop.f32.mrb[0].mxu0
        %v2195 = vadd.f32 %v1675, %v2194
        %v2196 = vpop.f32.mrb[0].mxu0
        %v2197 = vpop.f32.mrb[0].mxu0
        %v2198 = vadd.f32 %v1680, %v2197
        %v2199 = vpop.f32.mrb[0].mxu0
        %2200 = vmatprep.mubr.bf16.mxu0 0
        %2201 = vmatmul.mubr.bf16.gmra.mrb[0].mxu0 %v2013
        %v2202 = vpop.f32.mrb[0].mxu0
        %v2203 = vadd.f32 %v1685, %v2202
        %v2204 = vpop.f32.mrb[0].mxu0
        %v2205 = vpop.f32.mrb[0].mxu0
        %v2206 = vadd.f32 %v1690, %v2205
        %v2207 = vpop.f32.mrb[0].mxu0
        %2208 = vmatprep.mubr.bf16.mxu0 0
        %2209 = vmatmul.mubr.bf16.gmra.mrb[0].mxu0 %v2014
        %v2210 = vpop.f32.mrb[0].mxu0
        %v2211 = vadd.f32 %v1695, %v2210
        %v2212 = vpop.f32.mrb[0].mxu0
        %v2213 = vpop.f32.mrb[0].mxu0
        %v2214 = vadd.f32 %v1700, %v2213
        %v2215 = vpop.f32.mrb[0].mxu0
        %2216 = vmatprep.mubr.bf16.mxu0 0
        %2217 = vmatmul.mubr.bf16.gmra.mrb[0].mxu0 %v2015
        %v2218 = vpop.f32.mrb[0].mxu0
        %v2219 = vadd.f32 %v1705, %v2218
        %v2220 = vpop.f32.mrb[0].mxu0
        %v2221 = vpop.f32.mrb[0].mxu0
        %v2222 = vadd.f32 %v1710, %v2221
        %v2223 = vpop.f32.mrb[0].mxu0
        %2224 = vmatprep.mubr.bf16.mxu0 0
        %2225 = vmatmul.mubr.bf16.gmra.mrb[0].mxu0 %v2016
        %v2226 = vpop.f32.mrb[0].mxu0
        %v2227 = vadd.f32 %v1715, %v2226
        %v2228 = vpop.f32.mrb[0].mxu0
        %v2229 = vpop.f32.mrb[0].mxu0
        %v2230 = vadd.f32 %v1720, %v2229
        %v2231 = vpop.f32.mrb[0].mxu0
        %2232 = vmatprep.mubr.bf16.mxu0 0
        %2233 = vmatmul.mubr.bf16.gmra.mrb[0].mxu0 %v2017
        %v2234 = vpop.f32.mrb[0].mxu0
        %v2235 = vadd.f32 %v1725, %v2234
        %v2236 = vpop.f32.mrb[0].mxu0
        %v2237 = vpop.f32.mrb[0].mxu0
        %v2238 = vadd.f32 %v1730, %v2237
        %v2239 = vpop.f32.mrb[0].mxu0
        %2240 = vmatprep.mubr.bf16.mxu0 0
        %2241 = vmatmul.mubr.bf16.gmra.mrb[0].mxu0 %v2018
        %v2242 = vpop.f32.mrb[0].mxu0
        %v2243 = vadd.f32 %v1735, %v2242
        %v2244 = vpop.f32.mrb[0].mxu0
        %v2245 = vpop.f32.mrb[0].mxu0
        %v2246 = vadd.f32 %v1740, %v2245
        %v2247 = vpop.f32.mrb[0].mxu0
        %2248 = vmatprep.mubr.bf16.mxu0 0
        %2249 = vmatmul.mubr.bf16.gmra.mrb[0].mxu0 %v2019
        %v2250 = vpop.f32.mrb[0].mxu0
        %v2251 = vadd.f32 %v1745, %v2250
        %v2252 = vpop.f32.mrb[0].mxu0
        %v2253 = vpop.f32.mrb[0].mxu0
        %v2254 = vadd.f32 %v1750, %v2253
        %v2255 = vpop.f32.mrb[0].mxu0
        %2256 = vmatprep.mubr.bf16.mxu0 0
        %2257 = vmatmul.mubr.bf16.gmra.mrb[0].mxu0 %v2020
        %v2258 = vpop.f32.mrb[0].mxu0
        %v2259 = vadd.f32 %v1755, %v2258
        %v2260 = vpop.f32.mrb[0].mxu0
        %v2261 = vpop.f32.mrb[0].mxu0
        %v2262 = vadd.f32 %v1760, %v2261
        %v2263 = vpop.f32.mrb[0].mxu0
        %2264 = vmatprep.mubr.bf16.mxu0 0
        %2265 = vmatmul.mubr.bf16.gmra.mrb[0].mxu0 %v2021
        %v2266 = vpop.f32.mrb[0].mxu0
        %v2267 = vadd.f32 %v1765, %v2266
        %v2268 = vpop.f32.mrb[0].mxu0
        %v2269 = vpop.f32.mrb[0].mxu0
        %v2270 = vadd.f32 %v1770, %v2269
        %v2271 = vpop.f32.mrb[0].mxu0
        %2272 = vmatprep.mubr.bf16.mxu0 0
        %2273 = vmatmul.mubr.bf16.gmra.mrb[0].mxu0 %v2022
        %v2274 = vpop.f32.mrb[0].mxu0
        %v2275 = vadd.f32 %v1775, %v2274
        %v2276 = vpop.f32.mrb[0].mxu0
        %v2277 = vpop.f32.mrb[0].mxu0
        %v2278 = vadd.f32 %v1780, %v2277
        %v2279 = vpop.f32.mrb[0].mxu0
        %2280 = vmatprep.mubr.bf16.mxu0 0
        %2281 = vmatmul.mubr.bf16.gmra.mrb[0].mxu0 %v2023
        %v2282 = vpop.f32.mrb[0].mxu0
        %v2283 = vadd.f32 %v1785, %v2282
        %v2284 = vpop.f32.mrb[0].mxu0
        %v2285 = vpop.f32.mrb[0].mxu0
        %v2286 = vadd.f32 %v1790, %v2285
        %v2287 = vpop.f32.mrb[0].mxu0
        %2288 = vmatprep.mubr.bf16.mxu0 0
        %2289 = vmatmul.mubr.bf16.gmra.mrb[0].mxu0 %v2024
        %v2290 = vpop.f32.mrb[0].mxu0
        %v2291 = vadd.f32 %v1795, %v2290
        %v2292 = vpop.f32.mrb[0].mxu0
        %v2293 = vpop.f32.mrb[0].mxu0
        %v2294 = vadd.f32 %v1800, %v2293
        %v2295 = vpop.f32.mrb[0].mxu0
        %2296 = vmatprep.mubr.bf16.mxu0 0
        %2297 = vmatmul.mubr.bf16.gmra.mrb[0].mxu0 %v2025
        %v2298 = vpop.f32.mrb[0].mxu0
        %v2299 = vadd.f32 %v1805, %v2298
        %v2300 = vpop.f32.mrb[0].mxu0
        %v2301 = vpop.f32.mrb[0].mxu0
        %v2302 = vadd.f32 %v1810, %v2301
        %v2303 = vpop.f32.mrb[0].mxu0
        %2304 = vmatprep.mubr.bf16.mxu0 0
        %2305 = vmatmul.mubr.bf16.gmra.mrb[0].mxu0 %v2026
        %v2306 = vpop.f32.mrb[0].mxu0
        %v2307 = vadd.f32 %v1815, %v2306
        %v2308 = vpop.f32.mrb[0].mxu0
        %v2309 = vpop.f32.mrb[0].mxu0
        %v2310 = vadd.f32 %v1820, %v2309
        %v2311 = vpop.f32.mrb[0].mxu0
        %2312 = vmatprep.mubr.bf16.mxu0 0
        %2313 = vmatmul.mubr.bf16.gmra.mrb[0].mxu0 %v2027
        %v2314 = vpop.f32.mrb[0].mxu0
        %v2315 = vadd.f32 %v1825, %v2314
        %v2316 = vpop.f32.mrb[0].mxu0
        %v2317 = vpop.f32.mrb[0].mxu0
        %v2318 = vadd.f32 %v1830, %v2317
        %v2319 = vpop.f32.mrb[0].mxu0
        %2320 = vmatprep.mubr.bf16.mxu0 0
        %2321 = vmatmul.mubr.bf16.gmra.mrb[0].mxu0 %v2028
        %v2322 = vpop.f32.mrb[0].mxu0
        %v2323 = vadd.f32 %v1835, %v2322
        %v2324 = vpop.f32.mrb[0].mxu0
        %v2325 = vpop.f32.mrb[0].mxu0
        %v2326 = vadd.f32 %v1840, %v2325
        %v2327 = vpop.f32.mrb[0].mxu0
        %2328 = vmatprep.mubr.bf16.mxu0 0
        %2329 = vmatmul.mubr.bf16.gmra.mrb[0].mxu0 %v2029
        %v2330 = vpop.f32.mrb[0].mxu0
        %v2331 = vadd.f32 %v1845, %v2330
        %v2332 = vpop.f32.mrb[0].mxu0
        %v2333 = vpop.f32.mrb[0].mxu0
        %v2334 = vadd.f32 %v1850, %v2333
        %v2335 = vpop.f32.mrb[0].mxu0
        %2336 = vmatprep.mubr.bf16.mxu0 0
        %2337 = vmatmul.mubr.bf16.gmra.mrb[0].mxu0 %v2030
        %v2338 = vpop.f32.mrb[0].mxu0
        %v2339 = vadd.f32 %v1855, %v2338
        %v2340 = vpop.f32.mrb[0].mxu0
        %v2341 = vpop.f32.mrb[0].mxu0
        %v2342 = vadd.f32 %v1860, %v2341
        %v2343 = vpop.f32.mrb[0].mxu0
        %2344 = vmatprep.mubr.bf16.mxu0 0
        %2345 = vmatmul.mubr.bf16.gmra.mrb[0].mxu0 %v2031
        %v2346 = vpop.f32.mrb[0].mxu0
        %v2347 = vadd.f32 %v1865, %v2346
        %v2348 = vpop.f32.mrb[0].mxu0
        %v2349 = vpop.f32.mrb[0].mxu0
        %v2350 = vadd.f32 %v1870, %v2349
        %v2351 = vpop.f32.mrb[0].mxu0
        %2352 = vdwg.mxu0
        %v2353 = vmax.f32 %v2099, 0.0
        %v2354 = vmax.f32 %v2102, 0.0
        %v2355 = vmax.f32 %v2107, 0.0
        %v2356 = vmax.f32 %v2110, 0.0
        %v2357 = vmax.f32 %v2115, 0.0
        %v2358 = vmax.f32 %v2118, 0.0
        %v2359 = vmax.f32 %v2123, 0.0
        %v2360 = vmax.f32 %v2126, 0.0
        %v2361 = vmax.f32 %v2131, 0.0
        %v2362 = vmax.f32 %v2134, 0.0
        %v2363 = vmax.f32 %v2139, 0.0
        %v2364 = vmax.f32 %v2142, 0.0
        %v2365 = vmax.f32 %v2147, 0.0
        %v2366 = vmax.f32 %v2150, 0.0
        %v2367 = vmax.f32 %v2155, 0.0
        %v2368 = vmax.f32 %v2158, 0.0
        %v2369 = vmax.f32 %v2163, 0.0
        %v2370 = vmax.f32 %v2166, 0.0
        %v2371 = vmax.f32 %v2171, 0.0
        %v2372 = vmax.f32 %v2174, 0.0
        %v2373 = vmax.f32 %v2179, 0.0
        %v2374 = vmax.f32 %v2182, 0.0
        %v2375 = vmax.f32 %v2187, 0.0
        %v2376 = vmax.f32 %v2190, 0.0
        %v2377 = vmax.f32 %v2195, 0.0
        %v2378 = vmax.f32 %v2198, 0.0
        %v2379 = vmax.f32 %v2203, 0.0
        %v2380 = vmax.f32 %v2206, 0.0
        %v2381 = vmax.f32 %v2211, 0.0
        %v2382 = vmax.f32 %v2214, 0.0
        %v2383 = vmax.f32 %v2219, 0.0
        %v2384 = vmax.f32 %v2222, 0.0
        %v2385 = vmax.f32 %v2227, 0.0
        %v2386 = vmax.f32 %v2230, 0.0
        %v2387 = vmax.f32 %v2235, 0.0
        %v2388 = vmax.f32 %v2238, 0.0
        %v2389 = vmax.f32 %v2243, 0.0
        %v2390 = vmax.f32 %v2246, 0.0
        %v2391 = vmax.f32 %v2251, 0.0
        %v2392 = vmax.f32 %v2254, 0.0
        %v2393 = vmax.f32 %v2259, 0.0
        %v2394 = vmax.f32 %v2262, 0.0
        %v2395 = vmax.f32 %v2267, 0.0
        %v2396 = vmax.f32 %v2270, 0.0
        %v2397 = vmax.f32 %v2275, 0.0
        %v2398 = vmax.f32 %v2278, 0.0
        %v2399 = vmax.f32 %v2283, 0.0
        %v2400 = vmax.f32 %v2286, 0.0
        %v2401 = vmax.f32 %v2291, 0.0
        %v2402 = vmax.f32 %v2294, 0.0
        %v2403 = vmax.f32 %v2299, 0.0
        %v2404 = vmax.f32 %v2302, 0.0
        %v2405 = vmax.f32 %v2307, 0.0
        %v2406 = vmax.f32 %v2310, 0.0
        %v2407 = vmax.f32 %v2315, 0.0
        %v2408 = vmax.f32 %v2318, 0.0
        %v2409 = vmax.f32 %v2323, 0.0
        %v2410 = vmax.f32 %v2326, 0.0
        %v2411 = vmax.f32 %v2331, 0.0
        %v2412 = vmax.f32 %v2334, 0.0
        %v2413 = vmax.f32 %v2339, 0.0
        %v2414 = vmax.f32 %v2342, 0.0
        %v2415 = vmax.f32 %v2347, 0.0
        %v2416 = vmax.f32 %v2350, 0.0
        %v2417 = vpack.c.bf16 %v2354, %v2353
        %v2418 = vpack.c.bf16 %v2356, %v2355
        %v2419 = vpack.c.bf16 %v2358, %v2357
        %v2420 = vpack.c.bf16 %v2360, %v2359
        %v2421 = vpack.c.bf16 %v2362, %v2361
        %v2422 = vpack.c.bf16 %v2364, %v2363
        %v2423 = vpack.c.bf16 %v2366, %v2365
        %v2424 = vpack.c.bf16 %v2368, %v2367
        %v2425 = vpack.c.bf16 %v2370, %v2369
        %v2426 = vpack.c.bf16 %v2372, %v2371
        %v2427 = vpack.c.bf16 %v2374, %v2373
        %v2428 = vpack.c.bf16 %v2376, %v2375
        %v2429 = vpack.c.bf16 %v2378, %v2377
        %v2430 = vpack.c.bf16 %v2380, %v2379
        %v2431 = vpack.c.bf16 %v2382, %v2381
        %v2432 = vpack.c.bf16 %v2384, %v2383
        %v2433 = vpack.c.bf16 %v2386, %v2385
        %v2434 = vpack.c.bf16 %v2388, %v2387
        %v2435 = vpack.c.bf16 %v2390, %v2389
        %v2436 = vpack.c.bf16 %v2392, %v2391
        %v2437 = vpack.c.bf16 %v2394, %v2393
        %v2438 = vpack.c.bf16 %v2396, %v2395
        %v2439 = vpack.c.bf16 %v2398, %v2397
        %v2440 = vpack.c.bf16 %v2400, %v2399
        %v2441 = vpack.c.bf16 %v2402, %v2401
        %v2442 = vpack.c.bf16 %v2404, %v2403
        %v2443 = vpack.c.bf16 %v2406, %v2405
        %v2444 = vpack.c.bf16 %v2408, %v2407
        %v2445 = vpack.c.bf16 %v2410, %v2409
        %v2446 = vpack.c.bf16 %v2412, %v2411
        %v2447 = vpack.c.bf16 %v2414, %v2413
        %v2448 = vpack.c.bf16 %v2416, %v2415
        %v2449 = vld [vmem:[%s5] sm:$0xff]
        %v2450 = vld [vmem:[%s5 + $0x8] sm:$0xff]
        %v2451 = vld [vmem:[%s5 + $0x10] sm:$0xff]
        %v2452 = vld [vmem:[%s5 + $0x18] sm:$0xff]
        %v2453 = vld [vmem:[%s5 + $0x20] sm:$0xff]
        %v2454 = vld [vmem:[%s5 + $0x28] sm:$0xff]
        %v2455 = vld [vmem:[%s5 + $0x30] sm:$0xff]
        %v2456 = vld [vmem:[%s5 + $0x38] sm:$0xff]
        %v2457 = vld [vmem:[%s5 + $0x40] sm:$0xff]
        %v2458 = vld [vmem:[%s5 + $0x48] sm:$0xff]
        %v2459 = vld [vmem:[%s5 + $0x50] sm:$0xff]
        %v2460 = vld [vmem:[%s5 + $0x58] sm:$0xff]
        %v2461 = vld [vmem:[%s5 + $0x60] sm:$0xff]
        %v2462 = vld [vmem:[%s5 + $0x68] sm:$0xff]
        %v2463 = vld [vmem:[%s5 + $0x70] sm:$0xff]
        %v2464 = vld [vmem:[%s5 + $0x78] sm:$0xff]
        %v2465 = vld [vmem:[%s5 + $0x80] sm:$0xff]
        %v2466 = vld [vmem:[%s5 + $0x88] sm:$0xff]
        %v2467 = vld [vmem:[%s5 + $0x90] sm:$0xff]
        %v2468 = vld [vmem:[%s5 + $0x98] sm:$0xff]
        %v2469 = vld [vmem:[%s5 + $0xa0] sm:$0xff]
        %v2470 = vld [vmem:[%s5 + $0xa8] sm:$0xff]
        %v2471 = vld [vmem:[%s5 + $0xb0] sm:$0xff]
        %v2472 = vld [vmem:[%s5 + $0xb8] sm:$0xff]
        %v2473 = vld [vmem:[%s5 + $0xc0] sm:$0xff]
        %v2474 = vld [vmem:[%s5 + $0xc8] sm:$0xff]
        %v2475 = vld [vmem:[%s5 + $0xd0] sm:$0xff]
        %v2476 = vld [vmem:[%s5 + $0xd8] sm:$0xff]
        %v2477 = vld [vmem:[%s5 + $0xe0] sm:$0xff]
        %v2478 = vld [vmem:[%s5 + $0xe8] sm:$0xff]
        %v2479 = vld [vmem:[%s5 + $0xf0] sm:$0xff]
        %v2480 = vld [vmem:[%s5 + $0xf8] sm:$0xff]
        %v2481 = vld [vmem:[%s5 + $0x100] sm:$0xff]
        %v2482 = vld [vmem:[%s5 + $0x108] sm:$0xff]
        %v2483 = vld [vmem:[%s5 + $0x110] sm:$0xff]
        %v2484 = vld [vmem:[%s5 + $0x118] sm:$0xff]
        %v2485 = vld [vmem:[%s5 + $0x120] sm:$0xff]
        %v2486 = vld [vmem:[%s5 + $0x128] sm:$0xff]
        %v2487 = vld [vmem:[%s5 + $0x130] sm:$0xff]
        %v2488 = vld [vmem:[%s5 + $0x138] sm:$0xff]
        %v2489 = vld [vmem:[%s5 + $0x140] sm:$0xff]
        %v2490 = vld [vmem:[%s5 + $0x148] sm:$0xff]
        %v2491 = vld [vmem:[%s5 + $0x150] sm:$0xff]
        %v2492 = vld [vmem:[%s5 + $0x158] sm:$0xff]
        %v2493 = vld [vmem:[%s5 + $0x160] sm:$0xff]
        %v2494 = vld [vmem:[%s5 + $0x168] sm:$0xff]
        %v2495 = vld [vmem:[%s5 + $0x170] sm:$0xff]
        %v2496 = vld [vmem:[%s5 + $0x178] sm:$0xff]
        %v2497 = vld [vmem:[%s5 + $0x180] sm:$0xff]
        %v2498 = vld [vmem:[%s5 + $0x188] sm:$0xff]
        %v2499 = vld [vmem:[%s5 + $0x190] sm:$0xff]
        %v2500 = vld [vmem:[%s5 + $0x198] sm:$0xff]
        %v2501 = vld [vmem:[%s5 + $0x1a0] sm:$0xff]
        %v2502 = vld [vmem:[%s5 + $0x1a8] sm:$0xff]
        %v2503 = vld [vmem:[%s5 + $0x1b0] sm:$0xff]
        %v2504 = vld [vmem:[%s5 + $0x1b8] sm:$0xff]
        %v2505 = vld [vmem:[%s5 + $0x1c0] sm:$0xff]
        %v2506 = vld [vmem:[%s5 + $0x1c8] sm:$0xff]
        %v2507 = vld [vmem:[%s5 + $0x1d0] sm:$0xff]
        %v2508 = vld [vmem:[%s5 + $0x1d8] sm:$0xff]
        %v2509 = vld [vmem:[%s5 + $0x1e0] sm:$0xff]
        %v2510 = vld [vmem:[%s5 + $0x1e8] sm:$0xff]
        %v2511 = vld [vmem:[%s5 + $0x1f0] sm:$0xff]
        %v2512 = vld [vmem:[%s5 + $0x1f8] sm:$0xff]
        %v2513 = vld [vmem:[%s5 + $0x200] sm:$0xff]
        %v2514 = vld [vmem:[%s5 + $0x208] sm:$0xff]
        %v2515 = vld [vmem:[%s5 + $0x210] sm:$0xff]
        %v2516 = vld [vmem:[%s5 + $0x218] sm:$0xff]
        %v2517 = vld [vmem:[%s5 + $0x220] sm:$0xff]
        %v2518 = vld [vmem:[%s5 + $0x228] sm:$0xff]
        %v2519 = vld [vmem:[%s5 + $0x230] sm:$0xff]
        %v2520 = vld [vmem:[%s5 + $0x238] sm:$0xff]
        %v2521 = vld [vmem:[%s5 + $0x240] sm:$0xff]
        %v2522 = vld [vmem:[%s5 + $0x248] sm:$0xff]
        %v2523 = vld [vmem:[%s5 + $0x250] sm:$0xff]
        %v2524 = vld [vmem:[%s5 + $0x258] sm:$0xff]
        %v2525 = vld [vmem:[%s5 + $0x260] sm:$0xff]
        %v2526 = vld [vmem:[%s5 + $0x268] sm:$0xff]
        %v2527 = vld [vmem:[%s5 + $0x270] sm:$0xff]
        %v2528 = vld [vmem:[%s5 + $0x278] sm:$0xff]
        %v2529 = vld [vmem:[%s5 + $0x280] sm:$0xff]
        %v2530 = vld [vmem:[%s5 + $0x288] sm:$0xff]
        %v2531 = vld [vmem:[%s5 + $0x290] sm:$0xff]
        %v2532 = vld [vmem:[%s5 + $0x298] sm:$0xff]
        %v2533 = vld [vmem:[%s5 + $0x2a0] sm:$0xff]
        %v2534 = vld [vmem:[%s5 + $0x2a8] sm:$0xff]
        %v2535 = vld [vmem:[%s5 + $0x2b0] sm:$0xff]
        %v2536 = vld [vmem:[%s5 + $0x2b8] sm:$0xff]
        %v2537 = vld [vmem:[%s5 + $0x2c0] sm:$0xff]
        %v2538 = vld [vmem:[%s5 + $0x2c8] sm:$0xff]
        %v2539 = vld [vmem:[%s5 + $0x2d0] sm:$0xff]
        %v2540 = vld [vmem:[%s5 + $0x2d8] sm:$0xff]
        %v2541 = vld [vmem:[%s5 + $0x2e0] sm:$0xff]
        %v2542 = vld [vmem:[%s5 + $0x2e8] sm:$0xff]
        %v2543 = vld [vmem:[%s5 + $0x2f0] sm:$0xff]
        %v2544 = vld [vmem:[%s5 + $0x2f8] sm:$0xff]
        %v2545 = vld [vmem:[%s5 + $0x300] sm:$0xff]
        %v2546 = vld [vmem:[%s5 + $0x308] sm:$0xff]
        %v2547 = vld [vmem:[%s5 + $0x310] sm:$0xff]
        %v2548 = vld [vmem:[%s5 + $0x318] sm:$0xff]
        %v2549 = vld [vmem:[%s5 + $0x320] sm:$0xff]
        %v2550 = vld [vmem:[%s5 + $0x328] sm:$0xff]
        %v2551 = vld [vmem:[%s5 + $0x330] sm:$0xff]
        %v2552 = vld [vmem:[%s5 + $0x338] sm:$0xff]
        %v2553 = vld [vmem:[%s5 + $0x340] sm:$0xff]
        %v2554 = vld [vmem:[%s5 + $0x348] sm:$0xff]
        %v2555 = vld [vmem:[%s5 + $0x350] sm:$0xff]
        %v2556 = vld [vmem:[%s5 + $0x358] sm:$0xff]
        %v2557 = vld [vmem:[%s5 + $0x360] sm:$0xff]
        %v2558 = vld [vmem:[%s5 + $0x368] sm:$0xff]
        %v2559 = vld [vmem:[%s5 + $0x370] sm:$0xff]
        %v2560 = vld [vmem:[%s5 + $0x378] sm:$0xff]
        %v2561 = vld [vmem:[%s5 + $0x380] sm:$0xff]
        %v2562 = vld [vmem:[%s5 + $0x388] sm:$0xff]
        %v2563 = vld [vmem:[%s5 + $0x390] sm:$0xff]
        %v2564 = vld [vmem:[%s5 + $0x398] sm:$0xff]
        %v2565 = vld [vmem:[%s5 + $0x3a0] sm:$0xff]
        %v2566 = vld [vmem:[%s5 + $0x3a8] sm:$0xff]
        %v2567 = vld [vmem:[%s5 + $0x3b0] sm:$0xff]
        %v2568 = vld [vmem:[%s5 + $0x3b8] sm:$0xff]
        %v2569 = vld [vmem:[%s5 + $0x3c0] sm:$0xff]
        %v2570 = vld [vmem:[%s5 + $0x3c8] sm:$0xff]
        %v2571 = vld [vmem:[%s5 + $0x3d0] sm:$0xff]
        %v2572 = vld [vmem:[%s5 + $0x3d8] sm:$0xff]
        %v2573 = vld [vmem:[%s5 + $0x3e0] sm:$0xff]
        %v2574 = vld [vmem:[%s5 + $0x3e8] sm:$0xff]
        %v2575 = vld [vmem:[%s5 + $0x3f0] sm:$0xff]
        %v2576 = vld [vmem:[%s5 + $0x3f8] sm:$0xff]
        %v2577 = vld [vmem:[%s5 + $0x400] sm:$0xff]
        %v2578 = vld [vmem:[%s5 + $0x408] sm:$0xff]
        %v2579 = vld [vmem:[%s5 + $0x410] sm:$0xff]
        %v2580 = vld [vmem:[%s5 + $0x418] sm:$0xff]
        %v2581 = vld [vmem:[%s5 + $0x420] sm:$0xff]
        %v2582 = vld [vmem:[%s5 + $0x428] sm:$0xff]
        %v2583 = vld [vmem:[%s5 + $0x430] sm:$0xff]
        %v2584 = vld [vmem:[%s5 + $0x438] sm:$0xff]
        %v2585 = vld [vmem:[%s5 + $0x440] sm:$0xff]
        %v2586 = vld [vmem:[%s5 + $0x448] sm:$0xff]
        %v2587 = vld [vmem:[%s5 + $0x450] sm:$0xff]
        %v2588 = vld [vmem:[%s5 + $0x458] sm:$0xff]
        %v2589 = vld [vmem:[%s5 + $0x460] sm:$0xff]
        %v2590 = vld [vmem:[%s5 + $0x468] sm:$0xff]
        %v2591 = vld [vmem:[%s5 + $0x470] sm:$0xff]
        %v2592 = vld [vmem:[%s5 + $0x478] sm:$0xff]
        %v2593 = vld [vmem:[%s5 + $0x480] sm:$0xff]
        %v2594 = vld [vmem:[%s5 + $0x488] sm:$0xff]
        %v2595 = vld [vmem:[%s5 + $0x490] sm:$0xff]
        %v2596 = vld [vmem:[%s5 + $0x498] sm:$0xff]
        %v2597 = vld [vmem:[%s5 + $0x4a0] sm:$0xff]
        %v2598 = vld [vmem:[%s5 + $0x4a8] sm:$0xff]
        %v2599 = vld [vmem:[%s5 + $0x4b0] sm:$0xff]
        %v2600 = vld [vmem:[%s5 + $0x4b8] sm:$0xff]
        %v2601 = vld [vmem:[%s5 + $0x4c0] sm:$0xff]
        %v2602 = vld [vmem:[%s5 + $0x4c8] sm:$0xff]
        %v2603 = vld [vmem:[%s5 + $0x4d0] sm:$0xff]
        %v2604 = vld [vmem:[%s5 + $0x4d8] sm:$0xff]
        %v2605 = vld [vmem:[%s5 + $0x4e0] sm:$0xff]
        %v2606 = vld [vmem:[%s5 + $0x4e8] sm:$0xff]
        %v2607 = vld [vmem:[%s5 + $0x4f0] sm:$0xff]
        %v2608 = vld [vmem:[%s5 + $0x4f8] sm:$0xff]
        %v2609 = vld [vmem:[%s5 + $0x500] sm:$0xff]
        %v2610 = vld [vmem:[%s5 + $0x508] sm:$0xff]
        %v2611 = vld [vmem:[%s5 + $0x510] sm:$0xff]
        %v2612 = vld [vmem:[%s5 + $0x518] sm:$0xff]
        %v2613 = vld [vmem:[%s5 + $0x520] sm:$0xff]
        %v2614 = vld [vmem:[%s5 + $0x528] sm:$0xff]
        %v2615 = vld [vmem:[%s5 + $0x530] sm:$0xff]
        %v2616 = vld [vmem:[%s5 + $0x538] sm:$0xff]
        %v2617 = vld [vmem:[%s5 + $0x540] sm:$0xff]
        %v2618 = vld [vmem:[%s5 + $0x548] sm:$0xff]
        %v2619 = vld [vmem:[%s5 + $0x550] sm:$0xff]
        %v2620 = vld [vmem:[%s5 + $0x558] sm:$0xff]
        %v2621 = vld [vmem:[%s5 + $0x560] sm:$0xff]
        %v2622 = vld [vmem:[%s5 + $0x568] sm:$0xff]
        %v2623 = vld [vmem:[%s5 + $0x570] sm:$0xff]
        %v2624 = vld [vmem:[%s5 + $0x578] sm:$0xff]
        %v2625 = vld [vmem:[%s5 + $0x580] sm:$0xff]
        %v2626 = vld [vmem:[%s5 + $0x588] sm:$0xff]
        %v2627 = vld [vmem:[%s5 + $0x590] sm:$0xff]
        %v2628 = vld [vmem:[%s5 + $0x598] sm:$0xff]
        %v2629 = vld [vmem:[%s5 + $0x5a0] sm:$0xff]
        %v2630 = vld [vmem:[%s5 + $0x5a8] sm:$0xff]
        %v2631 = vld [vmem:[%s5 + $0x5b0] sm:$0xff]
        %v2632 = vld [vmem:[%s5 + $0x5b8] sm:$0xff]
        %v2633 = vld [vmem:[%s5 + $0x5c0] sm:$0xff]
        %v2634 = vld [vmem:[%s5 + $0x5c8] sm:$0xff]
        %v2635 = vld [vmem:[%s5 + $0x5d0] sm:$0xff]
        %v2636 = vld [vmem:[%s5 + $0x5d8] sm:$0xff]
        %v2637 = vld [vmem:[%s5 + $0x5e0] sm:$0xff]
        %v2638 = vld [vmem:[%s5 + $0x5e8] sm:$0xff]
        %v2639 = vld [vmem:[%s5 + $0x5f0] sm:$0xff]
        %v2640 = vld [vmem:[%s5 + $0x5f8] sm:$0xff]
        %v2641 = vld [vmem:[%s5 + $0x600] sm:$0xff]
        %v2642 = vld [vmem:[%s5 + $0x608] sm:$0xff]
        %v2643 = vld [vmem:[%s5 + $0x610] sm:$0xff]
        %v2644 = vld [vmem:[%s5 + $0x618] sm:$0xff]
        %v2645 = vld [vmem:[%s5 + $0x620] sm:$0xff]
        %v2646 = vld [vmem:[%s5 + $0x628] sm:$0xff]
        %v2647 = vld [vmem:[%s5 + $0x630] sm:$0xff]
        %v2648 = vld [vmem:[%s5 + $0x638] sm:$0xff]
        %v2649 = vld [vmem:[%s5 + $0x640] sm:$0xff]
        %v2650 = vld [vmem:[%s5 + $0x648] sm:$0xff]
        %v2651 = vld [vmem:[%s5 + $0x650] sm:$0xff]
        %v2652 = vld [vmem:[%s5 + $0x658] sm:$0xff]
        %v2653 = vld [vmem:[%s5 + $0x660] sm:$0xff]
        %v2654 = vld [vmem:[%s5 + $0x668] sm:$0xff]
        %v2655 = vld [vmem:[%s5 + $0x670] sm:$0xff]
        %v2656 = vld [vmem:[%s5 + $0x678] sm:$0xff]
        %v2657 = vld [vmem:[%s5 + $0x680] sm:$0xff]
        %v2658 = vld [vmem:[%s5 + $0x688] sm:$0xff]
        %v2659 = vld [vmem:[%s5 + $0x690] sm:$0xff]
        %v2660 = vld [vmem:[%s5 + $0x698] sm:$0xff]
        %v2661 = vld [vmem:[%s5 + $0x6a0] sm:$0xff]
        %v2662 = vld [vmem:[%s5 + $0x6a8] sm:$0xff]
        %v2663 = vld [vmem:[%s5 + $0x6b0] sm:$0xff]
        %v2664 = vld [vmem:[%s5 + $0x6b8] sm:$0xff]
        %v2665 = vld [vmem:[%s5 + $0x6c0] sm:$0xff]
        %v2666 = vld [vmem:[%s5 + $0x6c8] sm:$0xff]
        %v2667 = vld [vmem:[%s5 + $0x6d0] sm:$0xff]
        %v2668 = vld [vmem:[%s5 + $0x6d8] sm:$0xff]
        %v2669 = vld [vmem:[%s5 + $0x6e0] sm:$0xff]
        %v2670 = vld [vmem:[%s5 + $0x6e8] sm:$0xff]
        %v2671 = vld [vmem:[%s5 + $0x6f0] sm:$0xff]
        %v2672 = vld [vmem:[%s5 + $0x6f8] sm:$0xff]
        %v2673 = vld [vmem:[%s5 + $0x700] sm:$0xff]
        %v2674 = vld [vmem:[%s5 + $0x708] sm:$0xff]
        %v2675 = vld [vmem:[%s5 + $0x710] sm:$0xff]
        %v2676 = vld [vmem:[%s5 + $0x718] sm:$0xff]
        %v2677 = vld [vmem:[%s5 + $0x720] sm:$0xff]
        %v2678 = vld [vmem:[%s5 + $0x728] sm:$0xff]
        %v2679 = vld [vmem:[%s5 + $0x730] sm:$0xff]
        %v2680 = vld [vmem:[%s5 + $0x738] sm:$0xff]
        %v2681 = vld [vmem:[%s5 + $0x740] sm:$0xff]
        %v2682 = vld [vmem:[%s5 + $0x748] sm:$0xff]
        %v2683 = vld [vmem:[%s5 + $0x750] sm:$0xff]
        %v2684 = vld [vmem:[%s5 + $0x758] sm:$0xff]
        %v2685 = vld [vmem:[%s5 + $0x760] sm:$0xff]
        %v2686 = vld [vmem:[%s5 + $0x768] sm:$0xff]
        %v2687 = vld [vmem:[%s5 + $0x770] sm:$0xff]
        %v2688 = vld [vmem:[%s5 + $0x778] sm:$0xff]
        %v2689 = vld [vmem:[%s5 + $0x780] sm:$0xff]
        %v2690 = vld [vmem:[%s5 + $0x788] sm:$0xff]
        %v2691 = vld [vmem:[%s5 + $0x790] sm:$0xff]
        %v2692 = vld [vmem:[%s5 + $0x798] sm:$0xff]
        %v2693 = vld [vmem:[%s5 + $0x7a0] sm:$0xff]
        %v2694 = vld [vmem:[%s5 + $0x7a8] sm:$0xff]
        %v2695 = vld [vmem:[%s5 + $0x7b0] sm:$0xff]
        %v2696 = vld [vmem:[%s5 + $0x7b8] sm:$0xff]
        %v2697 = vld [vmem:[%s5 + $0x7c0] sm:$0xff]
        %v2698 = vld [vmem:[%s5 + $0x7c8] sm:$0xff]
        %v2699 = vld [vmem:[%s5 + $0x7d0] sm:$0xff]
        %v2700 = vld [vmem:[%s5 + $0x7d8] sm:$0xff]
        %v2701 = vld [vmem:[%s5 + $0x7e0] sm:$0xff]
        %v2702 = vld [vmem:[%s5 + $0x7e8] sm:$0xff]
        %v2703 = vld [vmem:[%s5 + $0x7f0] sm:$0xff]
        %v2704 = vld [vmem:[%s5 + $0x7f8] sm:$0xff]
        %v2705 = vld [vmem:[%s6] sm:$0xff]
        %v2706 = vld [vmem:[%s6 + $0x8] sm:$0xff]
        %v2707 = vld [vmem:[%s6 + $0x10] sm:$0xff]
        %v2708 = vld [vmem:[%s6 + $0x18] sm:$0xff]
        %v2709 = vld [vmem:[%s6 + $0x20] sm:$0xff]
        %v2710 = vld [vmem:[%s6 + $0x28] sm:$0xff]
        %v2711 = vld [vmem:[%s6 + $0x30] sm:$0xff]
        %v2712 = vld [vmem:[%s6 + $0x38] sm:$0xff]
        %v2713 = vld [vmem:[%s6 + $0x40] sm:$0xff]
        %v2714 = vld [vmem:[%s6 + $0x48] sm:$0xff]
        %v2715 = vld [vmem:[%s6 + $0x50] sm:$0xff]
        %v2716 = vld [vmem:[%s6 + $0x58] sm:$0xff]
        %v2717 = vld [vmem:[%s6 + $0x60] sm:$0xff]
        %v2718 = vld [vmem:[%s6 + $0x68] sm:$0xff]
        %v2719 = vld [vmem:[%s6 + $0x70] sm:$0xff]
        %v2720 = vld [vmem:[%s6 + $0x78] sm:$0xff]
        %v2721 = vld [vmem:[%s6 + $0x80] sm:$0xff]
        %v2722 = vld [vmem:[%s6 + $0x88] sm:$0xff]
        %v2723 = vld [vmem:[%s6 + $0x90] sm:$0xff]
        %v2724 = vld [vmem:[%s6 + $0x98] sm:$0xff]
        %v2725 = vld [vmem:[%s6 + $0xa0] sm:$0xff]
        %v2726 = vld [vmem:[%s6 + $0xa8] sm:$0xff]
        %v2727 = vld [vmem:[%s6 + $0xb0] sm:$0xff]
        %v2728 = vld [vmem:[%s6 + $0xb8] sm:$0xff]
        %v2729 = vld [vmem:[%s6 + $0xc0] sm:$0xff]
        %v2730 = vld [vmem:[%s6 + $0xc8] sm:$0xff]
        %v2731 = vld [vmem:[%s6 + $0xd0] sm:$0xff]
        %v2732 = vld [vmem:[%s6 + $0xd8] sm:$0xff]
        %v2733 = vld [vmem:[%s6 + $0xe0] sm:$0xff]
        %v2734 = vld [vmem:[%s6 + $0xe8] sm:$0xff]
        %v2735 = vld [vmem:[%s6 + $0xf0] sm:$0xff]
        %v2736 = vld [vmem:[%s6 + $0xf8] sm:$0xff]
        %v2737 = vld [vmem:[%s6 + $0x100] sm:$0xff]
        %v2738 = vld [vmem:[%s6 + $0x108] sm:$0xff]
        %v2739 = vld [vmem:[%s6 + $0x110] sm:$0xff]
        %v2740 = vld [vmem:[%s6 + $0x118] sm:$0xff]
        %v2741 = vld [vmem:[%s6 + $0x120] sm:$0xff]
        %v2742 = vld [vmem:[%s6 + $0x128] sm:$0xff]
        %v2743 = vld [vmem:[%s6 + $0x130] sm:$0xff]
        %v2744 = vld [vmem:[%s6 + $0x138] sm:$0xff]
        %v2745 = vld [vmem:[%s6 + $0x140] sm:$0xff]
        %v2746 = vld [vmem:[%s6 + $0x148] sm:$0xff]
        %v2747 = vld [vmem:[%s6 + $0x150] sm:$0xff]
        %v2748 = vld [vmem:[%s6 + $0x158] sm:$0xff]
        %v2749 = vld [vmem:[%s6 + $0x160] sm:$0xff]
        %v2750 = vld [vmem:[%s6 + $0x168] sm:$0xff]
        %v2751 = vld [vmem:[%s6 + $0x170] sm:$0xff]
        %v2752 = vld [vmem:[%s6 + $0x178] sm:$0xff]
        %v2753 = vld [vmem:[%s6 + $0x180] sm:$0xff]
        %v2754 = vld [vmem:[%s6 + $0x188] sm:$0xff]
        %v2755 = vld [vmem:[%s6 + $0x190] sm:$0xff]
        %v2756 = vld [vmem:[%s6 + $0x198] sm:$0xff]
        %v2757 = vld [vmem:[%s6 + $0x1a0] sm:$0xff]
        %v2758 = vld [vmem:[%s6 + $0x1a8] sm:$0xff]
        %v2759 = vld [vmem:[%s6 + $0x1b0] sm:$0xff]
        %v2760 = vld [vmem:[%s6 + $0x1b8] sm:$0xff]
        %v2761 = vld [vmem:[%s6 + $0x1c0] sm:$0xff]
        %v2762 = vld [vmem:[%s6 + $0x1c8] sm:$0xff]
        %v2763 = vld [vmem:[%s6 + $0x1d0] sm:$0xff]
        %v2764 = vld [vmem:[%s6 + $0x1d8] sm:$0xff]
        %v2765 = vld [vmem:[%s6 + $0x1e0] sm:$0xff]
        %v2766 = vld [vmem:[%s6 + $0x1e8] sm:$0xff]
        %v2767 = vld [vmem:[%s6 + $0x1f0] sm:$0xff]
        %v2768 = vld [vmem:[%s6 + $0x1f8] sm:$0xff]
        %v2769 = vld [vmem:[%s6 + $0x200] sm:$0xff]
        %v2770 = vld [vmem:[%s6 + $0x208] sm:$0xff]
        %v2771 = vld [vmem:[%s6 + $0x210] sm:$0xff]
        %v2772 = vld [vmem:[%s6 + $0x218] sm:$0xff]
        %v2773 = vld [vmem:[%s6 + $0x220] sm:$0xff]
        %v2774 = vld [vmem:[%s6 + $0x228] sm:$0xff]
        %v2775 = vld [vmem:[%s6 + $0x230] sm:$0xff]
        %v2776 = vld [vmem:[%s6 + $0x238] sm:$0xff]
        %v2777 = vld [vmem:[%s6 + $0x240] sm:$0xff]
        %v2778 = vld [vmem:[%s6 + $0x248] sm:$0xff]
        %v2779 = vld [vmem:[%s6 + $0x250] sm:$0xff]
        %v2780 = vld [vmem:[%s6 + $0x258] sm:$0xff]
        %v2781 = vld [vmem:[%s6 + $0x260] sm:$0xff]
        %v2782 = vld [vmem:[%s6 + $0x268] sm:$0xff]
        %v2783 = vld [vmem:[%s6 + $0x270] sm:$0xff]
        %v2784 = vld [vmem:[%s6 + $0x278] sm:$0xff]
        %v2785 = vld [vmem:[%s6 + $0x280] sm:$0xff]
        %v2786 = vld [vmem:[%s6 + $0x288] sm:$0xff]
        %v2787 = vld [vmem:[%s6 + $0x290] sm:$0xff]
        %v2788 = vld [vmem:[%s6 + $0x298] sm:$0xff]
        %v2789 = vld [vmem:[%s6 + $0x2a0] sm:$0xff]
        %v2790 = vld [vmem:[%s6 + $0x2a8] sm:$0xff]
        %v2791 = vld [vmem:[%s6 + $0x2b0] sm:$0xff]
        %v2792 = vld [vmem:[%s6 + $0x2b8] sm:$0xff]
        %v2793 = vld [vmem:[%s6 + $0x2c0] sm:$0xff]
        %v2794 = vld [vmem:[%s6 + $0x2c8] sm:$0xff]
        %v2795 = vld [vmem:[%s6 + $0x2d0] sm:$0xff]
        %v2796 = vld [vmem:[%s6 + $0x2d8] sm:$0xff]
        %v2797 = vld [vmem:[%s6 + $0x2e0] sm:$0xff]
        %v2798 = vld [vmem:[%s6 + $0x2e8] sm:$0xff]
        %v2799 = vld [vmem:[%s6 + $0x2f0] sm:$0xff]
        %v2800 = vld [vmem:[%s6 + $0x2f8] sm:$0xff]
        %v2801 = vld [vmem:[%s6 + $0x300] sm:$0xff]
        %v2802 = vld [vmem:[%s6 + $0x308] sm:$0xff]
        %v2803 = vld [vmem:[%s6 + $0x310] sm:$0xff]
        %v2804 = vld [vmem:[%s6 + $0x318] sm:$0xff]
        %v2805 = vld [vmem:[%s6 + $0x320] sm:$0xff]
        %v2806 = vld [vmem:[%s6 + $0x328] sm:$0xff]
        %v2807 = vld [vmem:[%s6 + $0x330] sm:$0xff]
        %v2808 = vld [vmem:[%s6 + $0x338] sm:$0xff]
        %v2809 = vld [vmem:[%s6 + $0x340] sm:$0xff]
        %v2810 = vld [vmem:[%s6 + $0x348] sm:$0xff]
        %v2811 = vld [vmem:[%s6 + $0x350] sm:$0xff]
        %v2812 = vld [vmem:[%s6 + $0x358] sm:$0xff]
        %v2813 = vld [vmem:[%s6 + $0x360] sm:$0xff]
        %v2814 = vld [vmem:[%s6 + $0x368] sm:$0xff]
        %v2815 = vld [vmem:[%s6 + $0x370] sm:$0xff]
        %v2816 = vld [vmem:[%s6 + $0x378] sm:$0xff]
        %v2817 = vld [vmem:[%s6 + $0x380] sm:$0xff]
        %v2818 = vld [vmem:[%s6 + $0x388] sm:$0xff]
        %v2819 = vld [vmem:[%s6 + $0x390] sm:$0xff]
        %v2820 = vld [vmem:[%s6 + $0x398] sm:$0xff]
        %v2821 = vld [vmem:[%s6 + $0x3a0] sm:$0xff]
        %v2822 = vld [vmem:[%s6 + $0x3a8] sm:$0xff]
        %v2823 = vld [vmem:[%s6 + $0x3b0] sm:$0xff]
        %v2824 = vld [vmem:[%s6 + $0x3b8] sm:$0xff]
        %v2825 = vld [vmem:[%s6 + $0x3c0] sm:$0xff]
        %v2826 = vld [vmem:[%s6 + $0x3c8] sm:$0xff]
        %v2827 = vld [vmem:[%s6 + $0x3d0] sm:$0xff]
        %v2828 = vld [vmem:[%s6 + $0x3d8] sm:$0xff]
        %v2829 = vld [vmem:[%s6 + $0x3e0] sm:$0xff]
        %v2830 = vld [vmem:[%s6 + $0x3e8] sm:$0xff]
        %v2831 = vld [vmem:[%s6 + $0x3f0] sm:$0xff]
        %v2832 = vld [vmem:[%s6 + $0x3f8] sm:$0xff]
        %2834 = vset.pattern.permute.xlu0 0
        %2835 = vperm.xlu0 %2834, %v2705
        %v2836 = vpop.permute.xlu0 %2835
        %2839 = vset.pattern.permute.xlu0 0
        %2840 = vperm.xlu0 %2839, %v2706
        %v2841 = vpop.permute.xlu0 %2840
        %2844 = vset.pattern.permute.xlu0 0
        %2845 = vperm.xlu0 %2844, %v2707
        %v2846 = vpop.permute.xlu0 %2845
        %2849 = vset.pattern.permute.xlu0 0
        %2850 = vperm.xlu0 %2849, %v2708
        %v2851 = vpop.permute.xlu0 %2850
        %2854 = vset.pattern.permute.xlu0 0
        %2855 = vperm.xlu0 %2854, %v2709
        %v2856 = vpop.permute.xlu0 %2855
        %2859 = vset.pattern.permute.xlu0 0
        %2860 = vperm.xlu0 %2859, %v2710
        %v2861 = vpop.permute.xlu0 %2860
        %2864 = vset.pattern.permute.xlu0 0
        %2865 = vperm.xlu0 %2864, %v2711
        %v2866 = vpop.permute.xlu0 %2865
        %2869 = vset.pattern.permute.xlu0 0
        %2870 = vperm.xlu0 %2869, %v2712
        %v2871 = vpop.permute.xlu0 %2870
        %2874 = vset.pattern.permute.xlu0 0
        %2875 = vperm.xlu0 %2874, %v2713
        %v2876 = vpop.permute.xlu0 %2875
        %2879 = vset.pattern.permute.xlu0 0
        %2880 = vperm.xlu0 %2879, %v2714
        %v2881 = vpop.permute.xlu0 %2880
        %2884 = vset.pattern.permute.xlu0 0
        %2885 = vperm.xlu0 %2884, %v2715
        %v2886 = vpop.permute.xlu0 %2885
        %2889 = vset.pattern.permute.xlu0 0
        %2890 = vperm.xlu0 %2889, %v2716
        %v2891 = vpop.permute.xlu0 %2890
        %2894 = vset.pattern.permute.xlu0 0
        %2895 = vperm.xlu0 %2894, %v2717
        %v2896 = vpop.permute.xlu0 %2895
        %2899 = vset.pattern.permute.xlu0 0
        %2900 = vperm.xlu0 %2899, %v2718
        %v2901 = vpop.permute.xlu0 %2900
        %2904 = vset.pattern.permute.xlu0 0
        %2905 = vperm.xlu0 %2904, %v2719
        %v2906 = vpop.permute.xlu0 %2905
        %2909 = vset.pattern.permute.xlu0 0
        %2910 = vperm.xlu0 %2909, %v2720
        %v2911 = vpop.permute.xlu0 %2910
        %2914 = vset.pattern.permute.xlu0 0
        %2915 = vperm.xlu0 %2914, %v2721
        %v2916 = vpop.permute.xlu0 %2915
        %2919 = vset.pattern.permute.xlu0 0
        %2920 = vperm.xlu0 %2919, %v2722
        %v2921 = vpop.permute.xlu0 %2920
        %2924 = vset.pattern.permute.xlu0 0
        %2925 = vperm.xlu0 %2924, %v2723
        %v2926 = vpop.permute.xlu0 %2925
        %2929 = vset.pattern.permute.xlu0 0
        %2930 = vperm.xlu0 %2929, %v2724
        %v2931 = vpop.permute.xlu0 %2930
        %2934 = vset.pattern.permute.xlu0 0
        %2935 = vperm.xlu0 %2934, %v2725
        %v2936 = vpop.permute.xlu0 %2935
        %2939 = vset.pattern.permute.xlu0 0
        %2940 = vperm.xlu0 %2939, %v2726
        %v2941 = vpop.permute.xlu0 %2940
        %2944 = vset.pattern.permute.xlu0 0
        %2945 = vperm.xlu0 %2944, %v2727
        %v2946 = vpop.permute.xlu0 %2945
        %2949 = vset.pattern.permute.xlu0 0
        %2950 = vperm.xlu0 %2949, %v2728
        %v2951 = vpop.permute.xlu0 %2950
        %2954 = vset.pattern.permute.xlu0 0
        %2955 = vperm.xlu0 %2954, %v2729
        %v2956 = vpop.permute.xlu0 %2955
        %2959 = vset.pattern.permute.xlu0 0
        %2960 = vperm.xlu0 %2959, %v2730
        %v2961 = vpop.permute.xlu0 %2960
        %2964 = vset.pattern.permute.xlu0 0
        %2965 = vperm.xlu0 %2964, %v2731
        %v2966 = vpop.permute.xlu0 %2965
        %2969 = vset.pattern.permute.xlu0 0
        %2970 = vperm.xlu0 %2969, %v2732
        %v2971 = vpop.permute.xlu0 %2970
        %2974 = vset.pattern.permute.xlu0 0
        %2975 = vperm.xlu0 %2974, %v2733
        %v2976 = vpop.permute.xlu0 %2975
        %2979 = vset.pattern.permute.xlu0 0
        %2980 = vperm.xlu0 %2979, %v2734
        %v2981 = vpop.permute.xlu0 %2980
        %2984 = vset.pattern.permute.xlu0 0
        %2985 = vperm.xlu0 %2984, %v2735
        %v2986 = vpop.permute.xlu0 %2985
        %2989 = vset.pattern.permute.xlu0 0
        %2990 = vperm.xlu0 %2989, %v2736
        %v2991 = vpop.permute.xlu0 %2990
        %2994 = vset.pattern.permute.xlu0 0
        %2995 = vperm.xlu0 %2994, %v2737
        %v2996 = vpop.permute.xlu0 %2995
        %2999 = vset.pattern.permute.xlu0 0
        %3000 = vperm.xlu0 %2999, %v2738
        %v3001 = vpop.permute.xlu0 %3000
        %3004 = vset.pattern.permute.xlu0 0
        %3005 = vperm.xlu0 %3004, %v2739
        %v3006 = vpop.permute.xlu0 %3005
        %3009 = vset.pattern.permute.xlu0 0
        %3010 = vperm.xlu0 %3009, %v2740
        %v3011 = vpop.permute.xlu0 %3010
        %3014 = vset.pattern.permute.xlu0 0
        %3015 = vperm.xlu0 %3014, %v2741
        %v3016 = vpop.permute.xlu0 %3015
        %3019 = vset.pattern.permute.xlu0 0
        %3020 = vperm.xlu0 %3019, %v2742
        %v3021 = vpop.permute.xlu0 %3020
        %3024 = vset.pattern.permute.xlu0 0
        %3025 = vperm.xlu0 %3024, %v2743
        %v3026 = vpop.permute.xlu0 %3025
        %3029 = vset.pattern.permute.xlu0 0
        %3030 = vperm.xlu0 %3029, %v2744
        %v3031 = vpop.permute.xlu0 %3030
        %3034 = vset.pattern.permute.xlu0 0
        %3035 = vperm.xlu0 %3034, %v2745
        %v3036 = vpop.permute.xlu0 %3035
        %3039 = vset.pattern.permute.xlu0 0
        %3040 = vperm.xlu0 %3039, %v2746
        %v3041 = vpop.permute.xlu0 %3040
        %3044 = vset.pattern.permute.xlu0 0
        %3045 = vperm.xlu0 %3044, %v2747
        %v3046 = vpop.permute.xlu0 %3045
        %3049 = vset.pattern.permute.xlu0 0
        %3050 = vperm.xlu0 %3049, %v2748
        %v3051 = vpop.permute.xlu0 %3050
        %3054 = vset.pattern.permute.xlu0 0
        %3055 = vperm.xlu0 %3054, %v2749
        %v3056 = vpop.permute.xlu0 %3055
        %3059 = vset.pattern.permute.xlu0 0
        %3060 = vperm.xlu0 %3059, %v2750
        %v3061 = vpop.permute.xlu0 %3060
        %3064 = vset.pattern.permute.xlu0 0
        %3065 = vperm.xlu0 %3064, %v2751
        %v3066 = vpop.permute.xlu0 %3065
        %3069 = vset.pattern.permute.xlu0 0
        %3070 = vperm.xlu0 %3069, %v2752
        %v3071 = vpop.permute.xlu0 %3070
        %3074 = vset.pattern.permute.xlu0 0
        %3075 = vperm.xlu0 %3074, %v2753
        %v3076 = vpop.permute.xlu0 %3075
        %3079 = vset.pattern.permute.xlu0 0
        %3080 = vperm.xlu0 %3079, %v2754
        %v3081 = vpop.permute.xlu0 %3080
        %3084 = vset.pattern.permute.xlu0 0
        %3085 = vperm.xlu0 %3084, %v2755
        %v3086 = vpop.permute.xlu0 %3085
        %3089 = vset.pattern.permute.xlu0 0
        %3090 = vperm.xlu0 %3089, %v2756
        %v3091 = vpop.permute.xlu0 %3090
        %3094 = vset.pattern.permute.xlu0 0
        %3095 = vperm.xlu0 %3094, %v2757
        %v3096 = vpop.permute.xlu0 %3095
        %3099 = vset.pattern.permute.xlu0 0
        %3100 = vperm.xlu0 %3099, %v2758
        %v3101 = vpop.permute.xlu0 %3100
        %3104 = vset.pattern.permute.xlu0 0
        %3105 = vperm.xlu0 %3104, %v2759
        %v3106 = vpop.permute.xlu0 %3105
        %3109 = vset.pattern.permute.xlu0 0
        %3110 = vperm.xlu0 %3109, %v2760
        %v3111 = vpop.permute.xlu0 %3110
        %3114 = vset.pattern.permute.xlu0 0
        %3115 = vperm.xlu0 %3114, %v2761
        %v3116 = vpop.permute.xlu0 %3115
        %3119 = vset.pattern.permute.xlu0 0
        %3120 = vperm.xlu0 %3119, %v2762
        %v3121 = vpop.permute.xlu0 %3120
        %3124 = vset.pattern.permute.xlu0 0
        %3125 = vperm.xlu0 %3124, %v2763
        %v3126 = vpop.permute.xlu0 %3125
        %3129 = vset.pattern.permute.xlu0 0
        %3130 = vperm.xlu0 %3129, %v2764
        %v3131 = vpop.permute.xlu0 %3130
        %3134 = vset.pattern.permute.xlu0 0
        %3135 = vperm.xlu0 %3134, %v2765
        %v3136 = vpop.permute.xlu0 %3135
        %3139 = vset.pattern.permute.xlu0 0
        %3140 = vperm.xlu0 %3139, %v2766
        %v3141 = vpop.permute.xlu0 %3140
        %3144 = vset.pattern.permute.xlu0 0
        %3145 = vperm.xlu0 %3144, %v2767
        %v3146 = vpop.permute.xlu0 %3145
        %3149 = vset.pattern.permute.xlu0 0
        %3150 = vperm.xlu0 %3149, %v2768
        %v3151 = vpop.permute.xlu0 %3150
        %3154 = vset.pattern.permute.xlu0 0
        %3155 = vperm.xlu0 %3154, %v2769
        %v3156 = vpop.permute.xlu0 %3155
        %3159 = vset.pattern.permute.xlu0 0
        %3160 = vperm.xlu0 %3159, %v2770
        %v3161 = vpop.permute.xlu0 %3160
        %3164 = vset.pattern.permute.xlu0 0
        %3165 = vperm.xlu0 %3164, %v2771
        %v3166 = vpop.permute.xlu0 %3165
        %3169 = vset.pattern.permute.xlu0 0
        %3170 = vperm.xlu0 %3169, %v2772
        %v3171 = vpop.permute.xlu0 %3170
        %3174 = vset.pattern.permute.xlu0 0
        %3175 = vperm.xlu0 %3174, %v2773
        %v3176 = vpop.permute.xlu0 %3175
        %3179 = vset.pattern.permute.xlu0 0
        %3180 = vperm.xlu0 %3179, %v2774
        %v3181 = vpop.permute.xlu0 %3180
        %3184 = vset.pattern.permute.xlu0 0
        %3185 = vperm.xlu0 %3184, %v2775
        %v3186 = vpop.permute.xlu0 %3185
        %3189 = vset.pattern.permute.xlu0 0
        %3190 = vperm.xlu0 %3189, %v2776
        %v3191 = vpop.permute.xlu0 %3190
        %3194 = vset.pattern.permute.xlu0 0
        %3195 = vperm.xlu0 %3194, %v2777
        %v3196 = vpop.permute.xlu0 %3195
        %3199 = vset.pattern.permute.xlu0 0
        %3200 = vperm.xlu0 %3199, %v2778
        %v3201 = vpop.permute.xlu0 %3200
        %3204 = vset.pattern.permute.xlu0 0
        %3205 = vperm.xlu0 %3204, %v2779
        %v3206 = vpop.permute.xlu0 %3205
        %3209 = vset.pattern.permute.xlu0 0
        %3210 = vperm.xlu0 %3209, %v2780
        %v3211 = vpop.permute.xlu0 %3210
        %3214 = vset.pattern.permute.xlu0 0
        %3215 = vperm.xlu0 %3214, %v2781
        %v3216 = vpop.permute.xlu0 %3215
        %3219 = vset.pattern.permute.xlu0 0
        %3220 = vperm.xlu0 %3219, %v2782
        %v3221 = vpop.permute.xlu0 %3220
        %3224 = vset.pattern.permute.xlu0 0
        %3225 = vperm.xlu0 %3224, %v2783
        %v3226 = vpop.permute.xlu0 %3225
        %3229 = vset.pattern.permute.xlu0 0
        %3230 = vperm.xlu0 %3229, %v2784
        %v3231 = vpop.permute.xlu0 %3230
        %3234 = vset.pattern.permute.xlu0 0
        %3235 = vperm.xlu0 %3234, %v2785
        %v3236 = vpop.permute.xlu0 %3235
        %3239 = vset.pattern.permute.xlu0 0
        %3240 = vperm.xlu0 %3239, %v2786
        %v3241 = vpop.permute.xlu0 %3240
        %3244 = vset.pattern.permute.xlu0 0
        %3245 = vperm.xlu0 %3244, %v2787
        %v3246 = vpop.permute.xlu0 %3245
        %3249 = vset.pattern.permute.xlu0 0
        %3250 = vperm.xlu0 %3249, %v2788
        %v3251 = vpop.permute.xlu0 %3250
        %3254 = vset.pattern.permute.xlu0 0
        %3255 = vperm.xlu0 %3254, %v2789
        %v3256 = vpop.permute.xlu0 %3255
        %3259 = vset.pattern.permute.xlu0 0
        %3260 = vperm.xlu0 %3259, %v2790
        %v3261 = vpop.permute.xlu0 %3260
        %3264 = vset.pattern.permute.xlu0 0
        %3265 = vperm.xlu0 %3264, %v2791
        %v3266 = vpop.permute.xlu0 %3265
        %3269 = vset.pattern.permute.xlu0 0
        %3270 = vperm.xlu0 %3269, %v2792
        %v3271 = vpop.permute.xlu0 %3270
        %3274 = vset.pattern.permute.xlu0 0
        %3275 = vperm.xlu0 %3274, %v2793
        %v3276 = vpop.permute.xlu0 %3275
        %3279 = vset.pattern.permute.xlu0 0
        %3280 = vperm.xlu0 %3279, %v2794
        %v3281 = vpop.permute.xlu0 %3280
        %3284 = vset.pattern.permute.xlu0 0
        %3285 = vperm.xlu0 %3284, %v2795
        %v3286 = vpop.permute.xlu0 %3285
        %3289 = vset.pattern.permute.xlu0 0
        %3290 = vperm.xlu0 %3289, %v2796
        %v3291 = vpop.permute.xlu0 %3290
        %3294 = vset.pattern.permute.xlu0 0
        %3295 = vperm.xlu0 %3294, %v2797
        %v3296 = vpop.permute.xlu0 %3295
        %3299 = vset.pattern.permute.xlu0 0
        %3300 = vperm.xlu0 %3299, %v2798
        %v3301 = vpop.permute.xlu0 %3300
        %3304 = vset.pattern.permute.xlu0 0
        %3305 = vperm.xlu0 %3304, %v2799
        %v3306 = vpop.permute.xlu0 %3305
        %3309 = vset.pattern.permute.xlu0 0
        %3310 = vperm.xlu0 %3309, %v2800
        %v3311 = vpop.permute.xlu0 %3310
        %3314 = vset.pattern.permute.xlu0 0
        %3315 = vperm.xlu0 %3314, %v2801
        %v3316 = vpop.permute.xlu0 %3315
        %3319 = vset.pattern.permute.xlu0 0
        %3320 = vperm.xlu0 %3319, %v2802
        %v3321 = vpop.permute.xlu0 %3320
        %3324 = vset.pattern.permute.xlu0 0
        %3325 = vperm.xlu0 %3324, %v2803
        %v3326 = vpop.permute.xlu0 %3325
        %3329 = vset.pattern.permute.xlu0 0
        %3330 = vperm.xlu0 %3329, %v2804
        %v3331 = vpop.permute.xlu0 %3330
        %3334 = vset.pattern.permute.xlu0 0
        %3335 = vperm.xlu0 %3334, %v2805
        %v3336 = vpop.permute.xlu0 %3335
        %3339 = vset.pattern.permute.xlu0 0
        %3340 = vperm.xlu0 %3339, %v2806
        %v3341 = vpop.permute.xlu0 %3340
        %3344 = vset.pattern.permute.xlu0 0
        %3345 = vperm.xlu0 %3344, %v2807
        %v3346 = vpop.permute.xlu0 %3345
        %3349 = vset.pattern.permute.xlu0 0
        %3350 = vperm.xlu0 %3349, %v2808
        %v3351 = vpop.permute.xlu0 %3350
        %3354 = vset.pattern.permute.xlu0 0
        %3355 = vperm.xlu0 %3354, %v2809
        %v3356 = vpop.permute.xlu0 %3355
        %3359 = vset.pattern.permute.xlu0 0
        %3360 = vperm.xlu0 %3359, %v2810
        %v3361 = vpop.permute.xlu0 %3360
        %3364 = vset.pattern.permute.xlu0 0
        %3365 = vperm.xlu0 %3364, %v2811
        %v3366 = vpop.permute.xlu0 %3365
        %3369 = vset.pattern.permute.xlu0 0
        %3370 = vperm.xlu0 %3369, %v2812
        %v3371 = vpop.permute.xlu0 %3370
        %3374 = vset.pattern.permute.xlu0 0
        %3375 = vperm.xlu0 %3374, %v2813
        %v3376 = vpop.permute.xlu0 %3375
        %3379 = vset.pattern.permute.xlu0 0
        %3380 = vperm.xlu0 %3379, %v2814
        %v3381 = vpop.permute.xlu0 %3380
        %3384 = vset.pattern.permute.xlu0 0
        %3385 = vperm.xlu0 %3384, %v2815
        %v3386 = vpop.permute.xlu0 %3385
        %3389 = vset.pattern.permute.xlu0 0
        %3390 = vperm.xlu0 %3389, %v2816
        %v3391 = vpop.permute.xlu0 %3390
        %3394 = vset.pattern.permute.xlu0 0
        %3395 = vperm.xlu0 %3394, %v2817
        %v3396 = vpop.permute.xlu0 %3395
        %3399 = vset.pattern.permute.xlu0 0
        %3400 = vperm.xlu0 %3399, %v2818
        %v3401 = vpop.permute.xlu0 %3400
        %3404 = vset.pattern.permute.xlu0 0
        %3405 = vperm.xlu0 %3404, %v2819
        %v3406 = vpop.permute.xlu0 %3405
        %3409 = vset.pattern.permute.xlu0 0
        %3410 = vperm.xlu0 %3409, %v2820
        %v3411 = vpop.permute.xlu0 %3410
        %3414 = vset.pattern.permute.xlu0 0
        %3415 = vperm.xlu0 %3414, %v2821
        %v3416 = vpop.permute.xlu0 %3415
        %3419 = vset.pattern.permute.xlu0 0
        %3420 = vperm.xlu0 %3419, %v2822
        %v3421 = vpop.permute.xlu0 %3420
        %3424 = vset.pattern.permute.xlu0 0
        %3425 = vperm.xlu0 %3424, %v2823
        %v3426 = vpop.permute.xlu0 %3425
        %3429 = vset.pattern.permute.xlu0 0
        %3430 = vperm.xlu0 %3429, %v2824
        %v3431 = vpop.permute.xlu0 %3430
        %3434 = vset.pattern.permute.xlu0 0
        %3435 = vperm.xlu0 %3434, %v2825
        %v3436 = vpop.permute.xlu0 %3435
        %3439 = vset.pattern.permute.xlu0 0
        %3440 = vperm.xlu0 %3439, %v2826
        %v3441 = vpop.permute.xlu0 %3440
        %3444 = vset.pattern.permute.xlu0 0
        %3445 = vperm.xlu0 %3444, %v2827
        %v3446 = vpop.permute.xlu0 %3445
        %3449 = vset.pattern.permute.xlu0 0
        %3450 = vperm.xlu0 %3449, %v2828
        %v3451 = vpop.permute.xlu0 %3450
        %3454 = vset.pattern.permute.xlu0 0
        %3455 = vperm.xlu0 %3454, %v2829
        %v3456 = vpop.permute.xlu0 %3455
        %3459 = vset.pattern.permute.xlu0 0
        %3460 = vperm.xlu0 %3459, %v2830
        %v3461 = vpop.permute.xlu0 %3460
        %3464 = vset.pattern.permute.xlu0 0
        %3465 = vperm.xlu0 %3464, %v2831
        %v3466 = vpop.permute.xlu0 %3465
        %3469 = vset.pattern.permute.xlu0 0
        %3470 = vperm.xlu0 %3469, %v2832
        %v3471 = vpop.permute.xlu0 %3470
        %v3729 = vunpack.c.l.b16 %v2449
        %v3730 = vunpack.c.h.b16 %v2449
        %v3731 = vunpack.c.l.b16 %v2450
        %v3732 = vunpack.c.h.b16 %v2450
        %v3733 = vunpack.c.l.b16 %v2451
        %v3734 = vunpack.c.h.b16 %v2451
        %v3735 = vunpack.c.l.b16 %v2452
        %v3736 = vunpack.c.h.b16 %v2452
        %v3737 = vunpack.c.l.b16 %v2453
        %v3738 = vunpack.c.h.b16 %v2453
        %v3739 = vunpack.c.l.b16 %v2454
        %v3740 = vunpack.c.h.b16 %v2454
        %v3741 = vunpack.c.l.b16 %v2455
        %v3742 = vunpack.c.h.b16 %v2455
        %v3743 = vunpack.c.l.b16 %v2456
        %v3744 = vunpack.c.h.b16 %v2456
        %v3745 = vunpack.c.l.b16 %v2457
        %v3746 = vunpack.c.h.b16 %v2457
        %v3747 = vunpack.c.l.b16 %v2458
        %v3748 = vunpack.c.h.b16 %v2458
        %v3749 = vunpack.c.l.b16 %v2459
        %v3750 = vunpack.c.h.b16 %v2459
        %v3751 = vunpack.c.l.b16 %v2460
        %v3752 = vunpack.c.h.b16 %v2460
        %v3753 = vunpack.c.l.b16 %v2461
        %v3754 = vunpack.c.h.b16 %v2461
        %v3755 = vunpack.c.l.b16 %v2462
        %v3756 = vunpack.c.h.b16 %v2462
        %v3757 = vunpack.c.l.b16 %v2463
        %v3758 = vunpack.c.h.b16 %v2463
        %v3759 = vunpack.c.l.b16 %v2464
        %v3760 = vunpack.c.h.b16 %v2464
        %v3761 = vunpack.c.l.b16 %v2465
        %v3762 = vunpack.c.h.b16 %v2465
        %v3763 = vunpack.c.l.b16 %v2466
        %v3764 = vunpack.c.h.b16 %v2466
        %v3765 = vunpack.c.l.b16 %v2467
        %v3766 = vunpack.c.h.b16 %v2467
        %v3767 = vunpack.c.l.b16 %v2468
        %v3768 = vunpack.c.h.b16 %v2468
        %v3769 = vunpack.c.l.b16 %v2469
        %v3770 = vunpack.c.h.b16 %v2469
        %v3771 = vunpack.c.l.b16 %v2470
        %v3772 = vunpack.c.h.b16 %v2470
        %v3773 = vunpack.c.l.b16 %v2471
        %v3774 = vunpack.c.h.b16 %v2471
        %v3775 = vunpack.c.l.b16 %v2472
        %v3776 = vunpack.c.h.b16 %v2472
        %v3777 = vunpack.c.l.b16 %v2473
        %v3778 = vunpack.c.h.b16 %v2473
        %v3779 = vunpack.c.l.b16 %v2474
        %v3780 = vunpack.c.h.b16 %v2474
        %v3781 = vunpack.c.l.b16 %v2475
        %v3782 = vunpack.c.h.b16 %v2475
        %v3783 = vunpack.c.l.b16 %v2476
        %v3784 = vunpack.c.h.b16 %v2476
        %v3785 = vunpack.c.l.b16 %v2477
        %v3786 = vunpack.c.h.b16 %v2477
        %v3787 = vunpack.c.l.b16 %v2478
        %v3788 = vunpack.c.h.b16 %v2478
        %v3789 = vunpack.c.l.b16 %v2479
        %v3790 = vunpack.c.h.b16 %v2479
        %v3791 = vunpack.c.l.b16 %v2480
        %v3792 = vunpack.c.h.b16 %v2480
        %v3793 = vunpack.c.l.b16 %v2481
        %v3794 = vunpack.c.h.b16 %v2481
        %v3795 = vunpack.c.l.b16 %v2482
        %v3796 = vunpack.c.h.b16 %v2482
        %v3797 = vunpack.c.l.b16 %v2483
        %v3798 = vunpack.c.h.b16 %v2483
        %v3799 = vunpack.c.l.b16 %v2484
        %v3800 = vunpack.c.h.b16 %v2484
        %v3801 = vunpack.c.l.b16 %v2485
        %v3802 = vunpack.c.h.b16 %v2485
        %v3803 = vunpack.c.l.b16 %v2486
        %v3804 = vunpack.c.h.b16 %v2486
        %v3805 = vunpack.c.l.b16 %v2487
        %v3806 = vunpack.c.h.b16 %v2487
        %v3807 = vunpack.c.l.b16 %v2488
        %v3808 = vunpack.c.h.b16 %v2488
        %v3809 = vunpack.c.l.b16 %v2489
        %v3810 = vunpack.c.h.b16 %v2489
        %v3811 = vunpack.c.l.b16 %v2490
        %v3812 = vunpack.c.h.b16 %v2490
        %v3813 = vunpack.c.l.b16 %v2491
        %v3814 = vunpack.c.h.b16 %v2491
        %v3815 = vunpack.c.l.b16 %v2492
        %v3816 = vunpack.c.h.b16 %v2492
        %v3817 = vunpack.c.l.b16 %v2493
        %v3818 = vunpack.c.h.b16 %v2493
        %v3819 = vunpack.c.l.b16 %v2494
        %v3820 = vunpack.c.h.b16 %v2494
        %v3821 = vunpack.c.l.b16 %v2495
        %v3822 = vunpack.c.h.b16 %v2495
        %v3823 = vunpack.c.l.b16 %v2496
        %v3824 = vunpack.c.h.b16 %v2496
        %v3825 = vunpack.c.l.b16 %v2497
        %v3826 = vunpack.c.h.b16 %v2497
        %v3827 = vunpack.c.l.b16 %v2498
        %v3828 = vunpack.c.h.b16 %v2498
        %v3829 = vunpack.c.l.b16 %v2499
        %v3830 = vunpack.c.h.b16 %v2499
        %v3831 = vunpack.c.l.b16 %v2500
        %v3832 = vunpack.c.h.b16 %v2500
        %v3833 = vunpack.c.l.b16 %v2501
        %v3834 = vunpack.c.h.b16 %v2501
        %v3835 = vunpack.c.l.b16 %v2502
        %v3836 = vunpack.c.h.b16 %v2502
        %v3837 = vunpack.c.l.b16 %v2503
        %v3838 = vunpack.c.h.b16 %v2503
        %v3839 = vunpack.c.l.b16 %v2504
        %v3840 = vunpack.c.h.b16 %v2504
        %v3841 = vunpack.c.l.b16 %v2505
        %v3842 = vunpack.c.h.b16 %v2505
        %v3843 = vunpack.c.l.b16 %v2506
        %v3844 = vunpack.c.h.b16 %v2506
        %v3845 = vunpack.c.l.b16 %v2507
        %v3846 = vunpack.c.h.b16 %v2507
        %v3847 = vunpack.c.l.b16 %v2508
        %v3848 = vunpack.c.h.b16 %v2508
        %v3849 = vunpack.c.l.b16 %v2509
        %v3850 = vunpack.c.h.b16 %v2509
        %v3851 = vunpack.c.l.b16 %v2510
        %v3852 = vunpack.c.h.b16 %v2510
        %v3853 = vunpack.c.l.b16 %v2511
        %v3854 = vunpack.c.h.b16 %v2511
        %v3855 = vunpack.c.l.b16 %v2512
        %v3856 = vunpack.c.h.b16 %v2512
        %v3857 = vunpack.c.l.b16 %v2513
        %v3858 = vunpack.c.h.b16 %v2513
        %v3859 = vunpack.c.l.b16 %v2514
        %v3860 = vunpack.c.h.b16 %v2514
        %v3861 = vunpack.c.l.b16 %v2515
        %v3862 = vunpack.c.h.b16 %v2515
        %v3863 = vunpack.c.l.b16 %v2516
        %v3864 = vunpack.c.h.b16 %v2516
        %v3865 = vunpack.c.l.b16 %v2517
        %v3866 = vunpack.c.h.b16 %v2517
        %v3867 = vunpack.c.l.b16 %v2518
        %v3868 = vunpack.c.h.b16 %v2518
        %v3869 = vunpack.c.l.b16 %v2519
        %v3870 = vunpack.c.h.b16 %v2519
        %v3871 = vunpack.c.l.b16 %v2520
        %v3872 = vunpack.c.h.b16 %v2520
        %v3873 = vunpack.c.l.b16 %v2521
        %v3874 = vunpack.c.h.b16 %v2521
        %v3875 = vunpack.c.l.b16 %v2522
        %v3876 = vunpack.c.h.b16 %v2522
        %v3877 = vunpack.c.l.b16 %v2523
        %v3878 = vunpack.c.h.b16 %v2523
        %v3879 = vunpack.c.l.b16 %v2524
        %v3880 = vunpack.c.h.b16 %v2524
        %v3881 = vunpack.c.l.b16 %v2525
        %v3882 = vunpack.c.h.b16 %v2525
        %v3883 = vunpack.c.l.b16 %v2526
        %v3884 = vunpack.c.h.b16 %v2526
        %v3885 = vunpack.c.l.b16 %v2527
        %v3886 = vunpack.c.h.b16 %v2527
        %v3887 = vunpack.c.l.b16 %v2528
        %v3888 = vunpack.c.h.b16 %v2528
        %v3889 = vunpack.c.l.b16 %v2529
        %v3890 = vunpack.c.h.b16 %v2529
        %v3891 = vunpack.c.l.b16 %v2530
        %v3892 = vunpack.c.h.b16 %v2530
        %v3893 = vunpack.c.l.b16 %v2531
        %v3894 = vunpack.c.h.b16 %v2531
        %v3895 = vunpack.c.l.b16 %v2532
        %v3896 = vunpack.c.h.b16 %v2532
        %v3897 = vunpack.c.l.b16 %v2533
        %v3898 = vunpack.c.h.b16 %v2533
        %v3899 = vunpack.c.l.b16 %v2534
        %v3900 = vunpack.c.h.b16 %v2534
        %v3901 = vunpack.c.l.b16 %v2535
        %v3902 = vunpack.c.h.b16 %v2535
        %v3903 = vunpack.c.l.b16 %v2536
        %v3904 = vunpack.c.h.b16 %v2536
        %v3905 = vunpack.c.l.b16 %v2537
        %v3906 = vunpack.c.h.b16 %v2537
        %v3907 = vunpack.c.l.b16 %v2538
        %v3908 = vunpack.c.h.b16 %v2538
        %v3909 = vunpack.c.l.b16 %v2539
        %v3910 = vunpack.c.h.b16 %v2539
        %v3911 = vunpack.c.l.b16 %v2540
        %v3912 = vunpack.c.h.b16 %v2540
        %v3913 = vunpack.c.l.b16 %v2541
        %v3914 = vunpack.c.h.b16 %v2541
        %v3915 = vunpack.c.l.b16 %v2542
        %v3916 = vunpack.c.h.b16 %v2542
        %v3917 = vunpack.c.l.b16 %v2543
        %v3918 = vunpack.c.h.b16 %v2543
        %v3919 = vunpack.c.l.b16 %v2544
        %v3920 = vunpack.c.h.b16 %v2544
        %v3921 = vunpack.c.l.b16 %v2545
        %v3922 = vunpack.c.h.b16 %v2545
        %v3923 = vunpack.c.l.b16 %v2546
        %v3924 = vunpack.c.h.b16 %v2546
        %v3925 = vunpack.c.l.b16 %v2547
        %v3926 = vunpack.c.h.b16 %v2547
        %v3927 = vunpack.c.l.b16 %v2548
        %v3928 = vunpack.c.h.b16 %v2548
        %v3929 = vunpack.c.l.b16 %v2549
        %v3930 = vunpack.c.h.b16 %v2549
        %v3931 = vunpack.c.l.b16 %v2550
        %v3932 = vunpack.c.h.b16 %v2550
        %v3933 = vunpack.c.l.b16 %v2551
        %v3934 = vunpack.c.h.b16 %v2551
        %v3935 = vunpack.c.l.b16 %v2552
        %v3936 = vunpack.c.h.b16 %v2552
        %v3937 = vunpack.c.l.b16 %v2553
        %v3938 = vunpack.c.h.b16 %v2553
        %v3939 = vunpack.c.l.b16 %v2554
        %v3940 = vunpack.c.h.b16 %v2554
        %v3941 = vunpack.c.l.b16 %v2555
        %v3942 = vunpack.c.h.b16 %v2555
        %v3943 = vunpack.c.l.b16 %v2556
        %v3944 = vunpack.c.h.b16 %v2556
        %v3945 = vunpack.c.l.b16 %v2557
        %v3946 = vunpack.c.h.b16 %v2557
        %v3947 = vunpack.c.l.b16 %v2558
        %v3948 = vunpack.c.h.b16 %v2558
        %v3949 = vunpack.c.l.b16 %v2559
        %v3950 = vunpack.c.h.b16 %v2559
        %v3951 = vunpack.c.l.b16 %v2560
        %v3952 = vunpack.c.h.b16 %v2560
        %v3953 = vunpack.c.l.b16 %v2561
        %v3954 = vunpack.c.h.b16 %v2561
        %v3955 = vunpack.c.l.b16 %v2562
        %v3956 = vunpack.c.h.b16 %v2562
        %v3957 = vunpack.c.l.b16 %v2563
        %v3958 = vunpack.c.h.b16 %v2563
        %v3959 = vunpack.c.l.b16 %v2564
        %v3960 = vunpack.c.h.b16 %v2564
        %v3961 = vunpack.c.l.b16 %v2565
        %v3962 = vunpack.c.h.b16 %v2565
        %v3963 = vunpack.c.l.b16 %v2566
        %v3964 = vunpack.c.h.b16 %v2566
        %v3965 = vunpack.c.l.b16 %v2567
        %v3966 = vunpack.c.h.b16 %v2567
        %v3967 = vunpack.c.l.b16 %v2568
        %v3968 = vunpack.c.h.b16 %v2568
        %v3969 = vunpack.c.l.b16 %v2569
        %v3970 = vunpack.c.h.b16 %v2569
        %v3971 = vunpack.c.l.b16 %v2570
        %v3972 = vunpack.c.h.b16 %v2570
        %v3973 = vunpack.c.l.b16 %v2571
        %v3974 = vunpack.c.h.b16 %v2571
        %v3975 = vunpack.c.l.b16 %v2572
        %v3976 = vunpack.c.h.b16 %v2572
        %v3977 = vunpack.c.l.b16 %v2573
        %v3978 = vunpack.c.h.b16 %v2573
        %v3979 = vunpack.c.l.b16 %v2574
        %v3980 = vunpack.c.h.b16 %v2574
        %v3981 = vunpack.c.l.b16 %v2575
        %v3982 = vunpack.c.h.b16 %v2575
        %v3983 = vunpack.c.l.b16 %v2576
        %v3984 = vunpack.c.h.b16 %v2576
        %v3985 = vunpack.c.l.b16 %v2577
        %v3986 = vunpack.c.h.b16 %v2577
        %v3987 = vunpack.c.l.b16 %v2578
        %v3988 = vunpack.c.h.b16 %v2578
        %v3989 = vunpack.c.l.b16 %v2579
        %v3990 = vunpack.c.h.b16 %v2579
        %v3991 = vunpack.c.l.b16 %v2580
        %v3992 = vunpack.c.h.b16 %v2580
        %v3993 = vunpack.c.l.b16 %v2581
        %v3994 = vunpack.c.h.b16 %v2581
        %v3995 = vunpack.c.l.b16 %v2582
        %v3996 = vunpack.c.h.b16 %v2582
        %v3997 = vunpack.c.l.b16 %v2583
        %v3998 = vunpack.c.h.b16 %v2583
        %v3999 = vunpack.c.l.b16 %v2584
        %v4000 = vunpack.c.h.b16 %v2584
        %v4001 = vunpack.c.l.b16 %v2585
        %v4002 = vunpack.c.h.b16 %v2585
        %v4003 = vunpack.c.l.b16 %v2586
        %v4004 = vunpack.c.h.b16 %v2586
        %v4005 = vunpack.c.l.b16 %v2587
        %v4006 = vunpack.c.h.b16 %v2587
        %v4007 = vunpack.c.l.b16 %v2588
        %v4008 = vunpack.c.h.b16 %v2588
        %v4009 = vunpack.c.l.b16 %v2589
        %v4010 = vunpack.c.h.b16 %v2589
        %v4011 = vunpack.c.l.b16 %v2590
        %v4012 = vunpack.c.h.b16 %v2590
        %v4013 = vunpack.c.l.b16 %v2591
        %v4014 = vunpack.c.h.b16 %v2591
        %v4015 = vunpack.c.l.b16 %v2592
        %v4016 = vunpack.c.h.b16 %v2592
        %v4017 = vunpack.c.l.b16 %v2593
        %v4018 = vunpack.c.h.b16 %v2593
        %v4019 = vunpack.c.l.b16 %v2594
        %v4020 = vunpack.c.h.b16 %v2594
        %v4021 = vunpack.c.l.b16 %v2595
        %v4022 = vunpack.c.h.b16 %v2595
        %v4023 = vunpack.c.l.b16 %v2596
        %v4024 = vunpack.c.h.b16 %v2596
        %v4025 = vunpack.c.l.b16 %v2597
        %v4026 = vunpack.c.h.b16 %v2597
        %v4027 = vunpack.c.l.b16 %v2598
        %v4028 = vunpack.c.h.b16 %v2598
        %v4029 = vunpack.c.l.b16 %v2599
        %v4030 = vunpack.c.h.b16 %v2599
        %v4031 = vunpack.c.l.b16 %v2600
        %v4032 = vunpack.c.h.b16 %v2600
        %v4033 = vunpack.c.l.b16 %v2601
        %v4034 = vunpack.c.h.b16 %v2601
        %v4035 = vunpack.c.l.b16 %v2602
        %v4036 = vunpack.c.h.b16 %v2602
        %v4037 = vunpack.c.l.b16 %v2603
        %v4038 = vunpack.c.h.b16 %v2603
        %v4039 = vunpack.c.l.b16 %v2604
        %v4040 = vunpack.c.h.b16 %v2604
        %v4041 = vunpack.c.l.b16 %v2605
        %v4042 = vunpack.c.h.b16 %v2605
        %v4043 = vunpack.c.l.b16 %v2606
        %v4044 = vunpack.c.h.b16 %v2606
        %v4045 = vunpack.c.l.b16 %v2607
        %v4046 = vunpack.c.h.b16 %v2607
        %v4047 = vunpack.c.l.b16 %v2608
        %v4048 = vunpack.c.h.b16 %v2608
        %v4049 = vunpack.c.l.b16 %v2609
        %v4050 = vunpack.c.h.b16 %v2609
        %v4051 = vunpack.c.l.b16 %v2610
        %v4052 = vunpack.c.h.b16 %v2610
        %v4053 = vunpack.c.l.b16 %v2611
        %v4054 = vunpack.c.h.b16 %v2611
        %v4055 = vunpack.c.l.b16 %v2612
        %v4056 = vunpack.c.h.b16 %v2612
        %v4057 = vunpack.c.l.b16 %v2613
        %v4058 = vunpack.c.h.b16 %v2613
        %v4059 = vunpack.c.l.b16 %v2614
        %v4060 = vunpack.c.h.b16 %v2614
        %v4061 = vunpack.c.l.b16 %v2615
        %v4062 = vunpack.c.h.b16 %v2615
        %v4063 = vunpack.c.l.b16 %v2616
        %v4064 = vunpack.c.h.b16 %v2616
        %v4065 = vunpack.c.l.b16 %v2617
        %v4066 = vunpack.c.h.b16 %v2617
        %v4067 = vunpack.c.l.b16 %v2618
        %v4068 = vunpack.c.h.b16 %v2618
        %v4069 = vunpack.c.l.b16 %v2619
        %v4070 = vunpack.c.h.b16 %v2619
        %v4071 = vunpack.c.l.b16 %v2620
        %v4072 = vunpack.c.h.b16 %v2620
        %v4073 = vunpack.c.l.b16 %v2621
        %v4074 = vunpack.c.h.b16 %v2621
        %v4075 = vunpack.c.l.b16 %v2622
        %v4076 = vunpack.c.h.b16 %v2622
        %v4077 = vunpack.c.l.b16 %v2623
        %v4078 = vunpack.c.h.b16 %v2623
        %v4079 = vunpack.c.l.b16 %v2624
        %v4080 = vunpack.c.h.b16 %v2624
        %v4081 = vunpack.c.l.b16 %v2625
        %v4082 = vunpack.c.h.b16 %v2625
        %v4083 = vunpack.c.l.b16 %v2626
        %v4084 = vunpack.c.h.b16 %v2626
        %v4085 = vunpack.c.l.b16 %v2627
        %v4086 = vunpack.c.h.b16 %v2627
        %v4087 = vunpack.c.l.b16 %v2628
        %v4088 = vunpack.c.h.b16 %v2628
        %v4089 = vunpack.c.l.b16 %v2629
        %v4090 = vunpack.c.h.b16 %v2629
        %v4091 = vunpack.c.l.b16 %v2630
        %v4092 = vunpack.c.h.b16 %v2630
        %v4093 = vunpack.c.l.b16 %v2631
        %v4094 = vunpack.c.h.b16 %v2631
        %v4095 = vunpack.c.l.b16 %v2632
        %v4096 = vunpack.c.h.b16 %v2632
        %v4097 = vunpack.c.l.b16 %v2633
        %v4098 = vunpack.c.h.b16 %v2633
        %v4099 = vunpack.c.l.b16 %v2634
        %v4100 = vunpack.c.h.b16 %v2634
        %v4101 = vunpack.c.l.b16 %v2635
        %v4102 = vunpack.c.h.b16 %v2635
        %v4103 = vunpack.c.l.b16 %v2636
        %v4104 = vunpack.c.h.b16 %v2636
        %v4105 = vunpack.c.l.b16 %v2637
        %v4106 = vunpack.c.h.b16 %v2637
        %v4107 = vunpack.c.l.b16 %v2638
        %v4108 = vunpack.c.h.b16 %v2638
        %v4109 = vunpack.c.l.b16 %v2639
        %v4110 = vunpack.c.h.b16 %v2639
        %v4111 = vunpack.c.l.b16 %v2640
        %v4112 = vunpack.c.h.b16 %v2640
        %v4113 = vunpack.c.l.b16 %v2641
        %v4114 = vunpack.c.h.b16 %v2641
        %v4115 = vunpack.c.l.b16 %v2642
        %v4116 = vunpack.c.h.b16 %v2642
        %v4117 = vunpack.c.l.b16 %v2643
        %v4118 = vunpack.c.h.b16 %v2643
        %v4119 = vunpack.c.l.b16 %v2644
        %v4120 = vunpack.c.h.b16 %v2644
        %v4121 = vunpack.c.l.b16 %v2645
        %v4122 = vunpack.c.h.b16 %v2645
        %v4123 = vunpack.c.l.b16 %v2646
        %v4124 = vunpack.c.h.b16 %v2646
        %v4125 = vunpack.c.l.b16 %v2647
        %v4126 = vunpack.c.h.b16 %v2647
        %v4127 = vunpack.c.l.b16 %v2648
        %v4128 = vunpack.c.h.b16 %v2648
        %v4129 = vunpack.c.l.b16 %v2649
        %v4130 = vunpack.c.h.b16 %v2649
        %v4131 = vunpack.c.l.b16 %v2650
        %v4132 = vunpack.c.h.b16 %v2650
        %v4133 = vunpack.c.l.b16 %v2651
        %v4134 = vunpack.c.h.b16 %v2651
        %v4135 = vunpack.c.l.b16 %v2652
        %v4136 = vunpack.c.h.b16 %v2652
        %v4137 = vunpack.c.l.b16 %v2653
        %v4138 = vunpack.c.h.b16 %v2653
        %v4139 = vunpack.c.l.b16 %v2654
        %v4140 = vunpack.c.h.b16 %v2654
        %v4141 = vunpack.c.l.b16 %v2655
        %v4142 = vunpack.c.h.b16 %v2655
        %v4143 = vunpack.c.l.b16 %v2656
        %v4144 = vunpack.c.h.b16 %v2656
        %v4145 = vunpack.c.l.b16 %v2657
        %v4146 = vunpack.c.h.b16 %v2657
        %v4147 = vunpack.c.l.b16 %v2658
        %v4148 = vunpack.c.h.b16 %v2658
        %v4149 = vunpack.c.l.b16 %v2659
        %v4150 = vunpack.c.h.b16 %v2659
        %v4151 = vunpack.c.l.b16 %v2660
        %v4152 = vunpack.c.h.b16 %v2660
        %v4153 = vunpack.c.l.b16 %v2661
        %v4154 = vunpack.c.h.b16 %v2661
        %v4155 = vunpack.c.l.b16 %v2662
        %v4156 = vunpack.c.h.b16 %v2662
        %v4157 = vunpack.c.l.b16 %v2663
        %v4158 = vunpack.c.h.b16 %v2663
        %v4159 = vunpack.c.l.b16 %v2664
        %v4160 = vunpack.c.h.b16 %v2664
        %v4161 = vunpack.c.l.b16 %v2665
        %v4162 = vunpack.c.h.b16 %v2665
        %v4163 = vunpack.c.l.b16 %v2666
        %v4164 = vunpack.c.h.b16 %v2666
        %v4165 = vunpack.c.l.b16 %v2667
        %v4166 = vunpack.c.h.b16 %v2667
        %v4167 = vunpack.c.l.b16 %v2668
        %v4168 = vunpack.c.h.b16 %v2668
        %v4169 = vunpack.c.l.b16 %v2669
        %v4170 = vunpack.c.h.b16 %v2669
        %v4171 = vunpack.c.l.b16 %v2670
        %v4172 = vunpack.c.h.b16 %v2670
        %v4173 = vunpack.c.l.b16 %v2671
        %v4174 = vunpack.c.h.b16 %v2671
        %v4175 = vunpack.c.l.b16 %v2672
        %v4176 = vunpack.c.h.b16 %v2672
        %v4177 = vunpack.c.l.b16 %v2673
        %v4178 = vunpack.c.h.b16 %v2673
        %v4179 = vunpack.c.l.b16 %v2674
        %v4180 = vunpack.c.h.b16 %v2674
        %v4181 = vunpack.c.l.b16 %v2675
        %v4182 = vunpack.c.h.b16 %v2675
        %v4183 = vunpack.c.l.b16 %v2676
        %v4184 = vunpack.c.h.b16 %v2676
        %v4185 = vunpack.c.l.b16 %v2677
        %v4186 = vunpack.c.h.b16 %v2677
        %v4187 = vunpack.c.l.b16 %v2678
        %v4188 = vunpack.c.h.b16 %v2678
        %v4189 = vunpack.c.l.b16 %v2679
        %v4190 = vunpack.c.h.b16 %v2679
        %v4191 = vunpack.c.l.b16 %v2680
        %v4192 = vunpack.c.h.b16 %v2680
        %v4193 = vunpack.c.l.b16 %v2681
        %v4194 = vunpack.c.h.b16 %v2681
        %v4195 = vunpack.c.l.b16 %v2682
        %v4196 = vunpack.c.h.b16 %v2682
        %v4197 = vunpack.c.l.b16 %v2683
        %v4198 = vunpack.c.h.b16 %v2683
        %v4199 = vunpack.c.l.b16 %v2684
        %v4200 = vunpack.c.h.b16 %v2684
        %v4201 = vunpack.c.l.b16 %v2685
        %v4202 = vunpack.c.h.b16 %v2685
        %v4203 = vunpack.c.l.b16 %v2686
        %v4204 = vunpack.c.h.b16 %v2686
        %v4205 = vunpack.c.l.b16 %v2687
        %v4206 = vunpack.c.h.b16 %v2687
        %v4207 = vunpack.c.l.b16 %v2688
        %v4208 = vunpack.c.h.b16 %v2688
        %v4209 = vunpack.c.l.b16 %v2689
        %v4210 = vunpack.c.h.b16 %v2689
        %v4211 = vunpack.c.l.b16 %v2690
        %v4212 = vunpack.c.h.b16 %v2690
        %v4213 = vunpack.c.l.b16 %v2691
        %v4214 = vunpack.c.h.b16 %v2691
        %v4215 = vunpack.c.l.b16 %v2692
        %v4216 = vunpack.c.h.b16 %v2692
        %v4217 = vunpack.c.l.b16 %v2693
        %v4218 = vunpack.c.h.b16 %v2693
        %v4219 = vunpack.c.l.b16 %v2694
        %v4220 = vunpack.c.h.b16 %v2694
        %v4221 = vunpack.c.l.b16 %v2695
        %v4222 = vunpack.c.h.b16 %v2695
        %v4223 = vunpack.c.l.b16 %v2696
        %v4224 = vunpack.c.h.b16 %v2696
        %v4225 = vunpack.c.l.b16 %v2697
        %v4226 = vunpack.c.h.b16 %v2697
        %v4227 = vunpack.c.l.b16 %v2698
        %v4228 = vunpack.c.h.b16 %v2698
        %v4229 = vunpack.c.l.b16 %v2699
        %v4230 = vunpack.c.h.b16 %v2699
        %v4231 = vunpack.c.l.b16 %v2700
        %v4232 = vunpack.c.h.b16 %v2700
        %v4233 = vunpack.c.l.b16 %v2701
        %v4234 = vunpack.c.h.b16 %v2701
        %v4235 = vunpack.c.l.b16 %v2702
        %v4236 = vunpack.c.h.b16 %v2702
        %v4237 = vunpack.c.l.b16 %v2703
        %v4238 = vunpack.c.h.b16 %v2703
        %v4239 = vunpack.c.l.b16 %v2704
        %v4240 = vunpack.c.h.b16 %v2704
        %v4241 = vpack.c.b16 %v3733, %v3729
        %v4242 = vpack.c.b16 %v3734, %v3730
        %v4243 = vpack.c.b16 %v3735, %v3731
        %v4244 = vpack.c.b16 %v3736, %v3732
        %v4245 = vpack.c.b16 %v3741, %v3737
        %v4246 = vpack.c.b16 %v3742, %v3738
        %v4247 = vpack.c.b16 %v3743, %v3739
        %v4248 = vpack.c.b16 %v3744, %v3740
        %v4249 = vpack.c.b16 %v3749, %v3745
        %v4250 = vpack.c.b16 %v3750, %v3746
        %v4251 = vpack.c.b16 %v3751, %v3747
        %v4252 = vpack.c.b16 %v3752, %v3748
        %v4253 = vpack.c.b16 %v3757, %v3753
        %v4254 = vpack.c.b16 %v3758, %v3754
        %v4255 = vpack.c.b16 %v3759, %v3755
        %v4256 = vpack.c.b16 %v3760, %v3756
        %v4257 = vpack.c.b16 %v3765, %v3761
        %v4258 = vpack.c.b16 %v3766, %v3762
        %v4259 = vpack.c.b16 %v3767, %v3763
        %v4260 = vpack.c.b16 %v3768, %v3764
        %v4261 = vpack.c.b16 %v3773, %v3769
        %v4262 = vpack.c.b16 %v3774, %v3770
        %v4263 = vpack.c.b16 %v3775, %v3771
        %v4264 = vpack.c.b16 %v3776, %v3772
        %v4265 = vpack.c.b16 %v3781, %v3777
        %v4266 = vpack.c.b16 %v3782, %v3778
        %v4267 = vpack.c.b16 %v3783, %v3779
        %v4268 = vpack.c.b16 %v3784, %v3780
        %v4269 = vpack.c.b16 %v3789, %v3785
        %v4270 = vpack.c.b16 %v3790, %v3786
        %v4271 = vpack.c.b16 %v3791, %v3787
        %v4272 = vpack.c.b16 %v3792, %v3788
        %v4273 = vpack.c.b16 %v3797, %v3793
        %v4274 = vpack.c.b16 %v3798, %v3794
        %v4275 = vpack.c.b16 %v3799, %v3795
        %v4276 = vpack.c.b16 %v3800, %v3796
        %v4277 = vpack.c.b16 %v3805, %v3801
        %v4278 = vpack.c.b16 %v3806, %v3802
        %v4279 = vpack.c.b16 %v3807, %v3803
        %v4280 = vpack.c.b16 %v3808, %v3804
        %v4281 = vpack.c.b16 %v3813, %v3809
        %v4282 = vpack.c.b16 %v3814, %v3810
        %v4283 = vpack.c.b16 %v3815, %v3811
        %v4284 = vpack.c.b16 %v3816, %v3812
        %v4285 = vpack.c.b16 %v3821, %v3817
        %v4286 = vpack.c.b16 %v3822, %v3818
        %v4287 = vpack.c.b16 %v3823, %v3819
        %v4288 = vpack.c.b16 %v3824, %v3820
        %v4289 = vpack.c.b16 %v3829, %v3825
        %v4290 = vpack.c.b16 %v3830, %v3826
        %v4291 = vpack.c.b16 %v3831, %v3827
        %v4292 = vpack.c.b16 %v3832, %v3828
        %v4293 = vpack.c.b16 %v3837, %v3833
        %v4294 = vpack.c.b16 %v3838, %v3834
        %v4295 = vpack.c.b16 %v3839, %v3835
        %v4296 = vpack.c.b16 %v3840, %v3836
        %v4297 = vpack.c.b16 %v3845, %v3841
        %v4298 = vpack.c.b16 %v3846, %v3842
        %v4299 = vpack.c.b16 %v3847, %v3843
        %v4300 = vpack.c.b16 %v3848, %v3844
        %v4301 = vpack.c.b16 %v3853, %v3849
        %v4302 = vpack.c.b16 %v3854, %v3850
        %v4303 = vpack.c.b16 %v3855, %v3851
        %v4304 = vpack.c.b16 %v3856, %v3852
        %v4305 = vpack.c.b16 %v3861, %v3857
        %v4306 = vpack.c.b16 %v3862, %v3858
        %v4307 = vpack.c.b16 %v3863, %v3859
        %v4308 = vpack.c.b16 %v3864, %v3860
        %v4309 = vpack.c.b16 %v3869, %v3865
        %v4310 = vpack.c.b16 %v3870, %v3866
        %v4311 = vpack.c.b16 %v3871, %v3867
        %v4312 = vpack.c.b16 %v3872, %v3868
        %v4313 = vpack.c.b16 %v3877, %v3873
        %v4314 = vpack.c.b16 %v3878, %v3874
        %v4315 = vpack.c.b16 %v3879, %v3875
        %v4316 = vpack.c.b16 %v3880, %v3876
        %v4317 = vpack.c.b16 %v3885, %v3881
        %v4318 = vpack.c.b16 %v3886, %v3882
        %v4319 = vpack.c.b16 %v3887, %v3883
        %v4320 = vpack.c.b16 %v3888, %v3884
        %v4321 = vpack.c.b16 %v3893, %v3889
        %v4322 = vpack.c.b16 %v3894, %v3890
        %v4323 = vpack.c.b16 %v3895, %v3891
        %v4324 = vpack.c.b16 %v3896, %v3892
        %v4325 = vpack.c.b16 %v3901, %v3897
        %v4326 = vpack.c.b16 %v3902, %v3898
        %v4327 = vpack.c.b16 %v3903, %v3899
        %v4328 = vpack.c.b16 %v3904, %v3900
        %v4329 = vpack.c.b16 %v3909, %v3905
        %v4330 = vpack.c.b16 %v3910, %v3906
        %v4331 = vpack.c.b16 %v3911, %v3907
        %v4332 = vpack.c.b16 %v3912, %v3908
        %v4333 = vpack.c.b16 %v3917, %v3913
        %v4334 = vpack.c.b16 %v3918, %v3914
        %v4335 = vpack.c.b16 %v3919, %v3915
        %v4336 = vpack.c.b16 %v3920, %v3916
        %v4337 = vpack.c.b16 %v3925, %v3921
        %v4338 = vpack.c.b16 %v3926, %v3922
        %v4339 = vpack.c.b16 %v3927, %v3923
        %v4340 = vpack.c.b16 %v3928, %v3924
        %v4341 = vpack.c.b16 %v3933, %v3929
        %v4342 = vpack.c.b16 %v3934, %v3930
        %v4343 = vpack.c.b16 %v3935, %v3931
        %v4344 = vpack.c.b16 %v3936, %v3932
        %v4345 = vpack.c.b16 %v3941, %v3937
        %v4346 = vpack.c.b16 %v3942, %v3938
        %v4347 = vpack.c.b16 %v3943, %v3939
        %v4348 = vpack.c.b16 %v3944, %v3940
        %v4349 = vpack.c.b16 %v3949, %v3945
        %v4350 = vpack.c.b16 %v3950, %v3946
        %v4351 = vpack.c.b16 %v3951, %v3947
        %v4352 = vpack.c.b16 %v3952, %v3948
        %v4353 = vpack.c.b16 %v3957, %v3953
        %v4354 = vpack.c.b16 %v3958, %v3954
        %v4355 = vpack.c.b16 %v3959, %v3955
        %v4356 = vpack.c.b16 %v3960, %v3956
        %v4357 = vpack.c.b16 %v3965, %v3961
        %v4358 = vpack.c.b16 %v3966, %v3962
        %v4359 = vpack.c.b16 %v3967, %v3963
        %v4360 = vpack.c.b16 %v3968, %v3964
        %v4361 = vpack.c.b16 %v3973, %v3969
        %v4362 = vpack.c.b16 %v3974, %v3970
        %v4363 = vpack.c.b16 %v3975, %v3971
        %v4364 = vpack.c.b16 %v3976, %v3972
        %v4365 = vpack.c.b16 %v3981, %v3977
        %v4366 = vpack.c.b16 %v3982, %v3978
        %v4367 = vpack.c.b16 %v3983, %v3979
        %v4368 = vpack.c.b16 %v3984, %v3980
        %v4369 = vpack.c.b16 %v3989, %v3985
        %v4370 = vpack.c.b16 %v3990, %v3986
        %v4371 = vpack.c.b16 %v3991, %v3987
        %v4372 = vpack.c.b16 %v3992, %v3988
        %v4373 = vpack.c.b16 %v3997, %v3993
        %v4374 = vpack.c.b16 %v3998, %v3994
        %v4375 = vpack.c.b16 %v3999, %v3995
        %v4376 = vpack.c.b16 %v4000, %v3996
        %v4377 = vpack.c.b16 %v4005, %v4001
        %v4378 = vpack.c.b16 %v4006, %v4002
        %v4379 = vpack.c.b16 %v4007, %v4003
        %v4380 = vpack.c.b16 %v4008, %v4004
        %v4381 = vpack.c.b16 %v4013, %v4009
        %v4382 = vpack.c.b16 %v4014, %v4010
        %v4383 = vpack.c.b16 %v4015, %v4011
        %v4384 = vpack.c.b16 %v4016, %v4012
        %v4385 = vpack.c.b16 %v4021, %v4017
        %v4386 = vpack.c.b16 %v4022, %v4018
        %v4387 = vpack.c.b16 %v4023, %v4019
        %v4388 = vpack.c.b16 %v4024, %v4020
        %v4389 = vpack.c.b16 %v4029, %v4025
        %v4390 = vpack.c.b16 %v4030, %v4026
        %v4391 = vpack.c.b16 %v4031, %v4027
        %v4392 = vpack.c.b16 %v4032, %v4028
        %v4393 = vpack.c.b16 %v4037, %v4033
        %v4394 = vpack.c.b16 %v4038, %v4034
        %v4395 = vpack.c.b16 %v4039, %v4035
        %v4396 = vpack.c.b16 %v4040, %v4036
        %v4397 = vpack.c.b16 %v4045, %v4041
        %v4398 = vpack.c.b16 %v4046, %v4042
        %v4399 = vpack.c.b16 %v4047, %v4043
        %v4400 = vpack.c.b16 %v4048, %v4044
        %v4401 = vpack.c.b16 %v4053, %v4049
        %v4402 = vpack.c.b16 %v4054, %v4050
        %v4403 = vpack.c.b16 %v4055, %v4051
        %v4404 = vpack.c.b16 %v4056, %v4052
        %v4405 = vpack.c.b16 %v4061, %v4057
        %v4406 = vpack.c.b16 %v4062, %v4058
        %v4407 = vpack.c.b16 %v4063, %v4059
        %v4408 = vpack.c.b16 %v4064, %v4060
        %v4409 = vpack.c.b16 %v4069, %v4065
        %v4410 = vpack.c.b16 %v4070, %v4066
        %v4411 = vpack.c.b16 %v4071, %v4067
        %v4412 = vpack.c.b16 %v4072, %v4068
        %v4413 = vpack.c.b16 %v4077, %v4073
        %v4414 = vpack.c.b16 %v4078, %v4074
        %v4415 = vpack.c.b16 %v4079, %v4075
        %v4416 = vpack.c.b16 %v4080, %v4076
        %v4417 = vpack.c.b16 %v4085, %v4081
        %v4418 = vpack.c.b16 %v4086, %v4082
        %v4419 = vpack.c.b16 %v4087, %v4083
        %v4420 = vpack.c.b16 %v4088, %v4084
        %v4421 = vpack.c.b16 %v4093, %v4089
        %v4422 = vpack.c.b16 %v4094, %v4090
        %v4423 = vpack.c.b16 %v4095, %v4091
        %v4424 = vpack.c.b16 %v4096, %v4092
        %v4425 = vpack.c.b16 %v4101, %v4097
        %v4426 = vpack.c.b16 %v4102, %v4098
        %v4427 = vpack.c.b16 %v4103, %v4099
        %v4428 = vpack.c.b16 %v4104, %v4100
        %v4429 = vpack.c.b16 %v4109, %v4105
        %v4430 = vpack.c.b16 %v4110, %v4106
        %v4431 = vpack.c.b16 %v4111, %v4107
        %v4432 = vpack.c.b16 %v4112, %v4108
        %v4433 = vpack.c.b16 %v4117, %v4113
        %v4434 = vpack.c.b16 %v4118, %v4114
        %v4435 = vpack.c.b16 %v4119, %v4115
        %v4436 = vpack.c.b16 %v4120, %v4116
        %v4437 = vpack.c.b16 %v4125, %v4121
        %v4438 = vpack.c.b16 %v4126, %v4122
        %v4439 = vpack.c.b16 %v4127, %v4123
        %v4440 = vpack.c.b16 %v4128, %v4124
        %v4441 = vpack.c.b16 %v4133, %v4129
        %v4442 = vpack.c.b16 %v4134, %v4130
        %v4443 = vpack.c.b16 %v4135, %v4131
        %v4444 = vpack.c.b16 %v4136, %v4132
        %v4445 = vpack.c.b16 %v4141, %v4137
        %v4446 = vpack.c.b16 %v4142, %v4138
        %v4447 = vpack.c.b16 %v4143, %v4139
        %v4448 = vpack.c.b16 %v4144, %v4140
        %v4449 = vpack.c.b16 %v4149, %v4145
        %v4450 = vpack.c.b16 %v4150, %v4146
        %v4451 = vpack.c.b16 %v4151, %v4147
        %v4452 = vpack.c.b16 %v4152, %v4148
        %v4453 = vpack.c.b16 %v4157, %v4153
        %v4454 = vpack.c.b16 %v4158, %v4154
        %v4455 = vpack.c.b16 %v4159, %v4155
        %v4456 = vpack.c.b16 %v4160, %v4156
        %v4457 = vpack.c.b16 %v4165, %v4161
        %v4458 = vpack.c.b16 %v4166, %v4162
        %v4459 = vpack.c.b16 %v4167, %v4163
        %v4460 = vpack.c.b16 %v4168, %v4164
        %v4461 = vpack.c.b16 %v4173, %v4169
        %v4462 = vpack.c.b16 %v4174, %v4170
        %v4463 = vpack.c.b16 %v4175, %v4171
        %v4464 = vpack.c.b16 %v4176, %v4172
        %v4465 = vpack.c.b16 %v4181, %v4177
        %v4466 = vpack.c.b16 %v4182, %v4178
        %v4467 = vpack.c.b16 %v4183, %v4179
        %v4468 = vpack.c.b16 %v4184, %v4180
        %v4469 = vpack.c.b16 %v4189, %v4185
        %v4470 = vpack.c.b16 %v4190, %v4186
        %v4471 = vpack.c.b16 %v4191, %v4187
        %v4472 = vpack.c.b16 %v4192, %v4188
        %v4473 = vpack.c.b16 %v4197, %v4193
        %v4474 = vpack.c.b16 %v4198, %v4194
        %v4475 = vpack.c.b16 %v4199, %v4195
        %v4476 = vpack.c.b16 %v4200, %v4196
        %v4477 = vpack.c.b16 %v4205, %v4201
        %v4478 = vpack.c.b16 %v4206, %v4202
        %v4479 = vpack.c.b16 %v4207, %v4203
        %v4480 = vpack.c.b16 %v4208, %v4204
        %v4481 = vpack.c.b16 %v4213, %v4209
        %v4482 = vpack.c.b16 %v4214, %v4210
        %v4483 = vpack.c.b16 %v4215, %v4211
        %v4484 = vpack.c.b16 %v4216, %v4212
        %v4485 = vpack.c.b16 %v4221, %v4217
        %v4486 = vpack.c.b16 %v4222, %v4218
        %v4487 = vpack.c.b16 %v4223, %v4219
        %v4488 = vpack.c.b16 %v4224, %v4220
        %v4489 = vpack.c.b16 %v4229, %v4225
        %v4490 = vpack.c.b16 %v4230, %v4226
        %v4491 = vpack.c.b16 %v4231, %v4227
        %v4492 = vpack.c.b16 %v4232, %v4228
        %v4493 = vpack.c.b16 %v4237, %v4233
        %v4494 = vpack.c.b16 %v4238, %v4234
        %v4495 = vpack.c.b16 %v4239, %v4235
        %v4496 = vpack.c.b16 %v4240, %v4236
        %4753 = vmatprep.subr.bf16.mxu0 0
        %4754 = vmatpush1.bf16.msra.mxu0 %v2417
        %4755 = vmatprep.subr.bf16.mxu0 0
        %4756 = vmatpush1.bf16.msra.mxu0 %v2418
        %4757 = vmatprep.subr.bf16.mxu0 0
        %4758 = vmatpush1.bf16.msra.mxu0 %v2419
        %4759 = vmatprep.subr.bf16.mxu0 0
        %4760 = vmatpush1.bf16.msra.mxu0 %v2420
        %4761 = vmatprep.subr.bf16.mxu0 0
        %4762 = vmatpush1.bf16.msra.mxu0 %v2421
        %4763 = vmatprep.subr.bf16.mxu0 0
        %4764 = vmatpush1.bf16.msra.mxu0 %v2422
        %4765 = vmatprep.subr.bf16.mxu0 0
        %4766 = vmatpush1.bf16.msra.mxu0 %v2423
        %4767 = vmatprep.subr.bf16.mxu0 0
        %4768 = vmatpush1.bf16.msra.mxu0 %v2424
        %4769 = vmatprep.subr.bf16.mxu0 0
        %4770 = vmatpush1.bf16.msra.mxu0 %v2425
        %4771 = vmatprep.subr.bf16.mxu0 0
        %4772 = vmatpush1.bf16.msra.mxu0 %v2426
        %4773 = vmatprep.subr.bf16.mxu0 0
        %4774 = vmatpush1.bf16.msra.mxu0 %v2427
        %4775 = vmatprep.subr.bf16.mxu0 0
        %4776 = vmatpush1.bf16.msra.mxu0 %v2428
        %4777 = vmatprep.subr.bf16.mxu0 0
        %4778 = vmatpush1.bf16.msra.mxu0 %v2429
        %4779 = vmatprep.subr.bf16.mxu0 0
        %4780 = vmatpush1.bf16.msra.mxu0 %v2430
        %4781 = vmatprep.subr.bf16.mxu0 0
        %4782 = vmatpush1.bf16.msra.mxu0 %v2431
        %4783 = vmatprep.subr.bf16.mxu0 0
        %4784 = vmatpush1.bf16.msra.mxu0 %v2432
        %4785 = vmatprep.mubr.bf16.mxu0 %v4242
        %4786 = vmatmul.mubr.bf16.gmra.mrb[0].mxu0 %v4241
        %v4787 = vpop.f32.mrb[0].mxu0
        %v4788 = vadd.f32 %v2836, %v4787
        %v4789 = vpop.f32.mrb[0].mxu0
        %v4790 = vpop.f32.mrb[0].mxu0
        %v4791 = vadd.f32 %v2841, %v4790
        %v4792 = vpop.f32.mrb[0].mxu0
        %4793 = vmatprep.mubr.bf16.mxu0 %v4246
        %4794 = vmatmul.mubr.bf16.gmra.mrb[0].mxu0 %v4245
        %v4795 = vpop.f32.mrb[0].mxu0
        %v4796 = vadd.f32 %v2846, %v4795
        %v4797 = vpop.f32.mrb[0].mxu0
        %v4798 = vpop.f32.mrb[0].mxu0
        %v4799 = vadd.f32 %v2851, %v4798
        %v4800 = vpop.f32.mrb[0].mxu0
        %4801 = vmatprep.mubr.bf16.mxu0 %v4250
        %4802 = vmatmul.mubr.bf16.gmra.mrb[0].mxu0 %v4249
        %v4803 = vpop.f32.mrb[0].mxu0
        %v4804 = vadd.f32 %v2856, %v4803
        %v4805 = vpop.f32.mrb[0].mxu0
        %v4806 = vpop.f32.mrb[0].mxu0
        %v4807 = vadd.f32 %v2861, %v4806
        %v4808 = vpop.f32.mrb[0].mxu0
        %4809 = vmatprep.mubr.bf16.mxu0 %v4254
        %4810 = vmatmul.mubr.bf16.gmra.mrb[0].mxu0 %v4253
        %v4811 = vpop.f32.mrb[0].mxu0
        %v4812 = vadd.f32 %v2866, %v4811
        %v4813 = vpop.f32.mrb[0].mxu0
        %v4814 = vpop.f32.mrb[0].mxu0
        %v4815 = vadd.f32 %v2871, %v4814
        %v4816 = vpop.f32.mrb[0].mxu0
        %4817 = vmatprep.mubr.bf16.mxu0 %v4258
        %4818 = vmatmul.mubr.bf16.gmra.mrb[0].mxu0 %v4257
        %v4819 = vpop.f32.mrb[0].mxu0
        %v4820 = vadd.f32 %v2876, %v4819
        %v4821 = vpop.f32.mrb[0].mxu0
        %v4822 = vpop.f32.mrb[0].mxu0
        %v4823 = vadd.f32 %v2881, %v4822
        %v4824 = vpop.f32.mrb[0].mxu0
        %4825 = vmatprep.mubr.bf16.mxu0 %v4262
        %4826 = vmatmul.mubr.bf16.gmra.mrb[0].mxu0 %v4261
        %v4827 = vpop.f32.mrb[0].mxu0
        %v4828 = vadd.f32 %v2886, %v4827
        %v4829 = vpop.f32.mrb[0].mxu0
        %v4830 = vpop.f32.mrb[0].mxu0
        %v4831 = vadd.f32 %v2891, %v4830
        %v4832 = vpop.f32.mrb[0].mxu0
        %4833 = vmatprep.mubr.bf16.mxu0 %v4266
        %4834 = vmatmul.mubr.bf16.gmra.mrb[0].mxu0 %v4265
        %v4835 = vpop.f32.mrb[0].mxu0
        %v4836 = vadd.f32 %v2896, %v4835
        %v4837 = vpop.f32.mrb[0].mxu0
        %v4838 = vpop.f32.mrb[0].mxu0
        %v4839 = vadd.f32 %v2901, %v4838
        %v4840 = vpop.f32.mrb[0].mxu0
        %4841 = vmatprep.mubr.bf16.mxu0 %v4270
        %4842 = vmatmul.mubr.bf16.gmra.mrb[0].mxu0 %v4269
        %v4843 = vpop.f32.mrb[0].mxu0
        %v4844 = vadd.f32 %v2906, %v4843
        %v4845 = vpop.f32.mrb[0].mxu0
        %v4846 = vpop.f32.mrb[0].mxu0
        %v4847 = vadd.f32 %v2911, %v4846
        %v4848 = vpop.f32.mrb[0].mxu0
        %4849 = vmatprep.mubr.bf16.mxu0 %v4274
        %4850 = vmatmul.mubr.bf16.gmra.mrb[0].mxu0 %v4273
        %v4851 = vpop.f32.mrb[0].mxu0
        %v4852 = vadd.f32 %v2916, %v4851
        %v4853 = vpop.f32.mrb[0].mxu0
        %v4854 = vpop.f32.mrb[0].mxu0
        %v4855 = vadd.f32 %v2921, %v4854
        %v4856 = vpop.f32.mrb[0].mxu0
        %4857 = vmatprep.mubr.bf16.mxu0 %v4278
        %4858 = vmatmul.mubr.bf16.gmra.mrb[0].mxu0 %v4277
        %v4859 = vpop.f32.mrb[0].mxu0
        %v4860 = vadd.f32 %v2926, %v4859
        %v4861 = vpop.f32.mrb[0].mxu0
        %v4862 = vpop.f32.mrb[0].mxu0
        %v4863 = vadd.f32 %v2931, %v4862
        %v4864 = vpop.f32.mrb[0].mxu0
        %4865 = vmatprep.mubr.bf16.mxu0 %v4282
        %4866 = vmatmul.mubr.bf16.gmra.mrb[0].mxu0 %v4281
        %v4867 = vpop.f32.mrb[0].mxu0
        %v4868 = vadd.f32 %v2936, %v4867
        %v4869 = vpop.f32.mrb[0].mxu0
        %v4870 = vpop.f32.mrb[0].mxu0
        %v4871 = vadd.f32 %v2941, %v4870
        %v4872 = vpop.f32.mrb[0].mxu0
        %4873 = vmatprep.mubr.bf16.mxu0 %v4286
        %4874 = vmatmul.mubr.bf16.gmra.mrb[0].mxu0 %v4285
        %v4875 = vpop.f32.mrb[0].mxu0
        %v4876 = vadd.f32 %v2946, %v4875
        %v4877 = vpop.f32.mrb[0].mxu0
        %v4878 = vpop.f32.mrb[0].mxu0
        %v4879 = vadd.f32 %v2951, %v4878
        %v4880 = vpop.f32.mrb[0].mxu0
        %4881 = vmatprep.mubr.bf16.mxu0 %v4290
        %4882 = vmatmul.mubr.bf16.gmra.mrb[0].mxu0 %v4289
        %v4883 = vpop.f32.mrb[0].mxu0
        %v4884 = vadd.f32 %v2956, %v4883
        %v4885 = vpop.f32.mrb[0].mxu0
        %v4886 = vpop.f32.mrb[0].mxu0
        %v4887 = vadd.f32 %v2961, %v4886
        %v4888 = vpop.f32.mrb[0].mxu0
        %4889 = vmatprep.mubr.bf16.mxu0 %v4294
        %4890 = vmatmul.mubr.bf16.gmra.mrb[0].mxu0 %v4293
        %v4891 = vpop.f32.mrb[0].mxu0
        %v4892 = vadd.f32 %v2966, %v4891
        %v4893 = vpop.f32.mrb[0].mxu0
        %v4894 = vpop.f32.mrb[0].mxu0
        %v4895 = vadd.f32 %v2971, %v4894
        %v4896 = vpop.f32.mrb[0].mxu0
        %4897 = vmatprep.mubr.bf16.mxu0 %v4298
        %4898 = vmatmul.mubr.bf16.gmra.mrb[0].mxu0 %v4297
        %v4899 = vpop.f32.mrb[0].mxu0
        %v4900 = vadd.f32 %v2976, %v4899
        %v4901 = vpop.f32.mrb[0].mxu0
        %v4902 = vpop.f32.mrb[0].mxu0
        %v4903 = vadd.f32 %v2981, %v4902
        %v4904 = vpop.f32.mrb[0].mxu0
        %4905 = vmatprep.mubr.bf16.mxu0 %v4302
        %4906 = vmatmul.mubr.bf16.gmra.mrb[0].mxu0 %v4301
        %v4907 = vpop.f32.mrb[0].mxu0
        %v4908 = vadd.f32 %v2986, %v4907
        %v4909 = vpop.f32.mrb[0].mxu0
        %v4910 = vpop.f32.mrb[0].mxu0
        %v4911 = vadd.f32 %v2991, %v4910
        %v4912 = vpop.f32.mrb[0].mxu0
        %4913 = vmatprep.mubr.bf16.mxu0 %v4306
        %4914 = vmatmul.mubr.bf16.gmra.mrb[0].mxu0 %v4305
        %v4915 = vpop.f32.mrb[0].mxu0
        %v4916 = vadd.f32 %v2996, %v4915
        %v4917 = vpop.f32.mrb[0].mxu0
        %v4918 = vpop.f32.mrb[0].mxu0
        %v4919 = vadd.f32 %v3001, %v4918
        %v4920 = vpop.f32.mrb[0].mxu0
        %4921 = vmatprep.mubr.bf16.mxu0 %v4310
        %4922 = vmatmul.mubr.bf16.gmra.mrb[0].mxu0 %v4309
        %v4923 = vpop.f32.mrb[0].mxu0
        %v4924 = vadd.f32 %v3006, %v4923
        %v4925 = vpop.f32.mrb[0].mxu0
        %v4926 = vpop.f32.mrb[0].mxu0
        %v4927 = vadd.f32 %v3011, %v4926
        %v4928 = vpop.f32.mrb[0].mxu0
        %4929 = vmatprep.mubr.bf16.mxu0 %v4314
        %4930 = vmatmul.mubr.bf16.gmra.mrb[0].mxu0 %v4313
        %v4931 = vpop.f32.mrb[0].mxu0
        %v4932 = vadd.f32 %v3016, %v4931
        %v4933 = vpop.f32.mrb[0].mxu0
        %v4934 = vpop.f32.mrb[0].mxu0
        %v4935 = vadd.f32 %v3021, %v4934
        %v4936 = vpop.f32.mrb[0].mxu0
        %4937 = vmatprep.mubr.bf16.mxu0 %v4318
        %4938 = vmatmul.mubr.bf16.gmra.mrb[0].mxu0 %v4317
        %v4939 = vpop.f32.mrb[0].mxu0
        %v4940 = vadd.f32 %v3026, %v4939
        %v4941 = vpop.f32.mrb[0].mxu0
        %v4942 = vpop.f32.mrb[0].mxu0
        %v4943 = vadd.f32 %v3031, %v4942
        %v4944 = vpop.f32.mrb[0].mxu0
        %4945 = vmatprep.mubr.bf16.mxu0 %v4322
        %4946 = vmatmul.mubr.bf16.gmra.mrb[0].mxu0 %v4321
        %v4947 = vpop.f32.mrb[0].mxu0
        %v4948 = vadd.f32 %v3036, %v4947
        %v4949 = vpop.f32.mrb[0].mxu0
        %v4950 = vpop.f32.mrb[0].mxu0
        %v4951 = vadd.f32 %v3041, %v4950
        %v4952 = vpop.f32.mrb[0].mxu0
        %4953 = vmatprep.mubr.bf16.mxu0 %v4326
        %4954 = vmatmul.mubr.bf16.gmra.mrb[0].mxu0 %v4325
        %v4955 = vpop.f32.mrb[0].mxu0
        %v4956 = vadd.f32 %v3046, %v4955
        %v4957 = vpop.f32.mrb[0].mxu0
        %v4958 = vpop.f32.mrb[0].mxu0
        %v4959 = vadd.f32 %v3051, %v4958
        %v4960 = vpop.f32.mrb[0].mxu0
        %4961 = vmatprep.mubr.bf16.mxu0 %v4330
        %4962 = vmatmul.mubr.bf16.gmra.mrb[0].mxu0 %v4329
        %v4963 = vpop.f32.mrb[0].mxu0
        %v4964 = vadd.f32 %v3056, %v4963
        %v4965 = vpop.f32.mrb[0].mxu0
        %v4966 = vpop.f32.mrb[0].mxu0
        %v4967 = vadd.f32 %v3061, %v4966
        %v4968 = vpop.f32.mrb[0].mxu0
        %4969 = vmatprep.mubr.bf16.mxu0 %v4334
        %4970 = vmatmul.mubr.bf16.gmra.mrb[0].mxu0 %v4333
        %v4971 = vpop.f32.mrb[0].mxu0
        %v4972 = vadd.f32 %v3066, %v4971
        %v4973 = vpop.f32.mrb[0].mxu0
        %v4974 = vpop.f32.mrb[0].mxu0
        %v4975 = vadd.f32 %v3071, %v4974
        %v4976 = vpop.f32.mrb[0].mxu0
        %4977 = vmatprep.mubr.bf16.mxu0 %v4338
        %4978 = vmatmul.mubr.bf16.gmra.mrb[0].mxu0 %v4337
        %v4979 = vpop.f32.mrb[0].mxu0
        %v4980 = vadd.f32 %v3076, %v4979
        %v4981 = vpop.f32.mrb[0].mxu0
        %v4982 = vpop.f32.mrb[0].mxu0
        %v4983 = vadd.f32 %v3081, %v4982
        %v4984 = vpop.f32.mrb[0].mxu0
        %4985 = vmatprep.mubr.bf16.mxu0 %v4342
        %4986 = vmatmul.mubr.bf16.gmra.mrb[0].mxu0 %v4341
        %v4987 = vpop.f32.mrb[0].mxu0
        %v4988 = vadd.f32 %v3086, %v4987
        %v4989 = vpop.f32.mrb[0].mxu0
        %v4990 = vpop.f32.mrb[0].mxu0
        %v4991 = vadd.f32 %v3091, %v4990
        %v4992 = vpop.f32.mrb[0].mxu0
        %4993 = vmatprep.mubr.bf16.mxu0 %v4346
        %4994 = vmatmul.mubr.bf16.gmra.mrb[0].mxu0 %v4345
        %v4995 = vpop.f32.mrb[0].mxu0
        %v4996 = vadd.f32 %v3096, %v4995
        %v4997 = vpop.f32.mrb[0].mxu0
        %v4998 = vpop.f32.mrb[0].mxu0
        %v4999 = vadd.f32 %v3101, %v4998
        %v5000 = vpop.f32.mrb[0].mxu0
        %5001 = vmatprep.mubr.bf16.mxu0 %v4350
        %5002 = vmatmul.mubr.bf16.gmra.mrb[0].mxu0 %v4349
        %v5003 = vpop.f32.mrb[0].mxu0
        %v5004 = vadd.f32 %v3106, %v5003
        %v5005 = vpop.f32.mrb[0].mxu0
        %v5006 = vpop.f32.mrb[0].mxu0
        %v5007 = vadd.f32 %v3111, %v5006
        %v5008 = vpop.f32.mrb[0].mxu0
        %5009 = vmatprep.mubr.bf16.mxu0 %v4354
        %5010 = vmatmul.mubr.bf16.gmra.mrb[0].mxu0 %v4353
        %v5011 = vpop.f32.mrb[0].mxu0
        %v5012 = vadd.f32 %v3116, %v5011
        %v5013 = vpop.f32.mrb[0].mxu0
        %v5014 = vpop.f32.mrb[0].mxu0
        %v5015 = vadd.f32 %v3121, %v5014
        %v5016 = vpop.f32.mrb[0].mxu0
        %5017 = vmatprep.mubr.bf16.mxu0 %v4358
        %5018 = vmatmul.mubr.bf16.gmra.mrb[0].mxu0 %v4357
        %v5019 = vpop.f32.mrb[0].mxu0
        %v5020 = vadd.f32 %v3126, %v5019
        %v5021 = vpop.f32.mrb[0].mxu0
        %v5022 = vpop.f32.mrb[0].mxu0
        %v5023 = vadd.f32 %v3131, %v5022
        %v5024 = vpop.f32.mrb[0].mxu0
        %5025 = vmatprep.mubr.bf16.mxu0 %v4362
        %5026 = vmatmul.mubr.bf16.gmra.mrb[0].mxu0 %v4361
        %v5027 = vpop.f32.mrb[0].mxu0
        %v5028 = vadd.f32 %v3136, %v5027
        %v5029 = vpop.f32.mrb[0].mxu0
        %v5030 = vpop.f32.mrb[0].mxu0
        %v5031 = vadd.f32 %v3141, %v5030
        %v5032 = vpop.f32.mrb[0].mxu0
        %5033 = vmatprep.mubr.bf16.mxu0 %v4366
        %5034 = vmatmul.mubr.bf16.gmra.mrb[0].mxu0 %v4365
        %v5035 = vpop.f32.mrb[0].mxu0
        %v5036 = vadd.f32 %v3146, %v5035
        %v5037 = vpop.f32.mrb[0].mxu0
        %v5038 = vpop.f32.mrb[0].mxu0
        %v5039 = vadd.f32 %v3151, %v5038
        %v5040 = vpop.f32.mrb[0].mxu0
        %5041 = vmatprep.mubr.bf16.mxu0 %v4370
        %5042 = vmatmul.mubr.bf16.gmra.mrb[0].mxu0 %v4369
        %v5043 = vpop.f32.mrb[0].mxu0
        %v5044 = vadd.f32 %v3156, %v5043
        %v5045 = vpop.f32.mrb[0].mxu0
        %v5046 = vpop.f32.mrb[0].mxu0
        %v5047 = vadd.f32 %v3161, %v5046
        %v5048 = vpop.f32.mrb[0].mxu0
        %5049 = vmatprep.mubr.bf16.mxu0 %v4374
        %5050 = vmatmul.mubr.bf16.gmra.mrb[0].mxu0 %v4373
        %v5051 = vpop.f32.mrb[0].mxu0
        %v5052 = vadd.f32 %v3166, %v5051
        %v5053 = vpop.f32.mrb[0].mxu0
        %v5054 = vpop.f32.mrb[0].mxu0
        %v5055 = vadd.f32 %v3171, %v5054
        %v5056 = vpop.f32.mrb[0].mxu0
        %5057 = vmatprep.mubr.bf16.mxu0 %v4378
        %5058 = vmatmul.mubr.bf16.gmra.mrb[0].mxu0 %v4377
        %v5059 = vpop.f32.mrb[0].mxu0
        %v5060 = vadd.f32 %v3176, %v5059
        %v5061 = vpop.f32.mrb[0].mxu0
        %v5062 = vpop.f32.mrb[0].mxu0
        %v5063 = vadd.f32 %v3181, %v5062
        %v5064 = vpop.f32.mrb[0].mxu0
        %5065 = vmatprep.mubr.bf16.mxu0 %v4382
        %5066 = vmatmul.mubr.bf16.gmra.mrb[0].mxu0 %v4381
        %v5067 = vpop.f32.mrb[0].mxu0
        %v5068 = vadd.f32 %v3186, %v5067
        %v5069 = vpop.f32.mrb[0].mxu0
        %v5070 = vpop.f32.mrb[0].mxu0
        %v5071 = vadd.f32 %v3191, %v5070
        %v5072 = vpop.f32.mrb[0].mxu0
        %5073 = vmatprep.mubr.bf16.mxu0 %v4386
        %5074 = vmatmul.mubr.bf16.gmra.mrb[0].mxu0 %v4385
        %v5075 = vpop.f32.mrb[0].mxu0
        %v5076 = vadd.f32 %v3196, %v5075
        %v5077 = vpop.f32.mrb[0].mxu0
        %v5078 = vpop.f32.mrb[0].mxu0
        %v5079 = vadd.f32 %v3201, %v5078
        %v5080 = vpop.f32.mrb[0].mxu0
        %5081 = vmatprep.mubr.bf16.mxu0 %v4390
        %5082 = vmatmul.mubr.bf16.gmra.mrb[0].mxu0 %v4389
        %v5083 = vpop.f32.mrb[0].mxu0
        %v5084 = vadd.f32 %v3206, %v5083
        %v5085 = vpop.f32.mrb[0].mxu0
        %v5086 = vpop.f32.mrb[0].mxu0
        %v5087 = vadd.f32 %v3211, %v5086
        %v5088 = vpop.f32.mrb[0].mxu0
        %5089 = vmatprep.mubr.bf16.mxu0 %v4394
        %5090 = vmatmul.mubr.bf16.gmra.mrb[0].mxu0 %v4393
        %v5091 = vpop.f32.mrb[0].mxu0
        %v5092 = vadd.f32 %v3216, %v5091
        %v5093 = vpop.f32.mrb[0].mxu0
        %v5094 = vpop.f32.mrb[0].mxu0
        %v5095 = vadd.f32 %v3221, %v5094
        %v5096 = vpop.f32.mrb[0].mxu0
        %5097 = vmatprep.mubr.bf16.mxu0 %v4398
        %5098 = vmatmul.mubr.bf16.gmra.mrb[0].mxu0 %v4397
        %v5099 = vpop.f32.mrb[0].mxu0
        %v5100 = vadd.f32 %v3226, %v5099
        %v5101 = vpop.f32.mrb[0].mxu0
        %v5102 = vpop.f32.mrb[0].mxu0
        %v5103 = vadd.f32 %v3231, %v5102
        %v5104 = vpop.f32.mrb[0].mxu0
        %5105 = vmatprep.mubr.bf16.mxu0 %v4402
        %5106 = vmatmul.mubr.bf16.gmra.mrb[0].mxu0 %v4401
        %v5107 = vpop.f32.mrb[0].mxu0
        %v5108 = vadd.f32 %v3236, %v5107
        %v5109 = vpop.f32.mrb[0].mxu0
        %v5110 = vpop.f32.mrb[0].mxu0
        %v5111 = vadd.f32 %v3241, %v5110
        %v5112 = vpop.f32.mrb[0].mxu0
        %5113 = vmatprep.mubr.bf16.mxu0 %v4406
        %5114 = vmatmul.mubr.bf16.gmra.mrb[0].mxu0 %v4405
        %v5115 = vpop.f32.mrb[0].mxu0
        %v5116 = vadd.f32 %v3246, %v5115
        %v5117 = vpop.f32.mrb[0].mxu0
        %v5118 = vpop.f32.mrb[0].mxu0
        %v5119 = vadd.f32 %v3251, %v5118
        %v5120 = vpop.f32.mrb[0].mxu0
        %5121 = vmatprep.mubr.bf16.mxu0 %v4410
        %5122 = vmatmul.mubr.bf16.gmra.mrb[0].mxu0 %v4409
        %v5123 = vpop.f32.mrb[0].mxu0
        %v5124 = vadd.f32 %v3256, %v5123
        %v5125 = vpop.f32.mrb[0].mxu0
        %v5126 = vpop.f32.mrb[0].mxu0
        %v5127 = vadd.f32 %v3261, %v5126
        %v5128 = vpop.f32.mrb[0].mxu0
        %5129 = vmatprep.mubr.bf16.mxu0 %v4414
        %5130 = vmatmul.mubr.bf16.gmra.mrb[0].mxu0 %v4413
        %v5131 = vpop.f32.mrb[0].mxu0
        %v5132 = vadd.f32 %v3266, %v5131
        %v5133 = vpop.f32.mrb[0].mxu0
        %v5134 = vpop.f32.mrb[0].mxu0
        %v5135 = vadd.f32 %v3271, %v5134
        %v5136 = vpop.f32.mrb[0].mxu0
        %5137 = vmatprep.mubr.bf16.mxu0 %v4418
        %5138 = vmatmul.mubr.bf16.gmra.mrb[0].mxu0 %v4417
        %v5139 = vpop.f32.mrb[0].mxu0
        %v5140 = vadd.f32 %v3276, %v5139
        %v5141 = vpop.f32.mrb[0].mxu0
        %v5142 = vpop.f32.mrb[0].mxu0
        %v5143 = vadd.f32 %v3281, %v5142
        %v5144 = vpop.f32.mrb[0].mxu0
        %5145 = vmatprep.mubr.bf16.mxu0 %v4422
        %5146 = vmatmul.mubr.bf16.gmra.mrb[0].mxu0 %v4421
        %v5147 = vpop.f32.mrb[0].mxu0
        %v5148 = vadd.f32 %v3286, %v5147
        %v5149 = vpop.f32.mrb[0].mxu0
        %v5150 = vpop.f32.mrb[0].mxu0
        %v5151 = vadd.f32 %v3291, %v5150
        %v5152 = vpop.f32.mrb[0].mxu0
        %5153 = vmatprep.mubr.bf16.mxu0 %v4426
        %5154 = vmatmul.mubr.bf16.gmra.mrb[0].mxu0 %v4425
        %v5155 = vpop.f32.mrb[0].mxu0
        %v5156 = vadd.f32 %v3296, %v5155
        %v5157 = vpop.f32.mrb[0].mxu0
        %v5158 = vpop.f32.mrb[0].mxu0
        %v5159 = vadd.f32 %v3301, %v5158
        %v5160 = vpop.f32.mrb[0].mxu0
        %5161 = vmatprep.mubr.bf16.mxu0 %v4430
        %5162 = vmatmul.mubr.bf16.gmra.mrb[0].mxu0 %v4429
        %v5163 = vpop.f32.mrb[0].mxu0
        %v5164 = vadd.f32 %v3306, %v5163
        %v5165 = vpop.f32.mrb[0].mxu0
        %v5166 = vpop.f32.mrb[0].mxu0
        %v5167 = vadd.f32 %v3311, %v5166
        %v5168 = vpop.f32.mrb[0].mxu0
        %5169 = vmatprep.mubr.bf16.mxu0 %v4434
        %5170 = vmatmul.mubr.bf16.gmra.mrb[0].mxu0 %v4433
        %v5171 = vpop.f32.mrb[0].mxu0
        %v5172 = vadd.f32 %v3316, %v5171
        %v5173 = vpop.f32.mrb[0].mxu0
        %v5174 = vpop.f32.mrb[0].mxu0
        %v5175 = vadd.f32 %v3321, %v5174
        %v5176 = vpop.f32.mrb[0].mxu0
        %5177 = vmatprep.mubr.bf16.mxu0 %v4438
        %5178 = vmatmul.mubr.bf16.gmra.mrb[0].mxu0 %v4437
        %v5179 = vpop.f32.mrb[0].mxu0
        %v5180 = vadd.f32 %v3326, %v5179
        %v5181 = vpop.f32.mrb[0].mxu0
        %v5182 = vpop.f32.mrb[0].mxu0
        %v5183 = vadd.f32 %v3331, %v5182
        %v5184 = vpop.f32.mrb[0].mxu0
        %5185 = vmatprep.mubr.bf16.mxu0 %v4442
        %5186 = vmatmul.mubr.bf16.gmra.mrb[0].mxu0 %v4441
        %v5187 = vpop.f32.mrb[0].mxu0
        %v5188 = vadd.f32 %v3336, %v5187
        %v5189 = vpop.f32.mrb[0].mxu0
        %v5190 = vpop.f32.mrb[0].mxu0
        %v5191 = vadd.f32 %v3341, %v5190
        %v5192 = vpop.f32.mrb[0].mxu0
        %5193 = vmatprep.mubr.bf16.mxu0 %v4446
        %5194 = vmatmul.mubr.bf16.gmra.mrb[0].mxu0 %v4445
        %v5195 = vpop.f32.mrb[0].mxu0
        %v5196 = vadd.f32 %v3346, %v5195
        %v5197 = vpop.f32.mrb[0].mxu0
        %v5198 = vpop.f32.mrb[0].mxu0
        %v5199 = vadd.f32 %v3351, %v5198
        %v5200 = vpop.f32.mrb[0].mxu0
        %5201 = vmatprep.mubr.bf16.mxu0 %v4450
        %5202 = vmatmul.mubr.bf16.gmra.mrb[0].mxu0 %v4449
        %v5203 = vpop.f32.mrb[0].mxu0
        %v5204 = vadd.f32 %v3356, %v5203
        %v5205 = vpop.f32.mrb[0].mxu0
        %v5206 = vpop.f32.mrb[0].mxu0
        %v5207 = vadd.f32 %v3361, %v5206
        %v5208 = vpop.f32.mrb[0].mxu0
        %5209 = vmatprep.mubr.bf16.mxu0 %v4454
        %5210 = vmatmul.mubr.bf16.gmra.mrb[0].mxu0 %v4453
        %v5211 = vpop.f32.mrb[0].mxu0
        %v5212 = vadd.f32 %v3366, %v5211
        %v5213 = vpop.f32.mrb[0].mxu0
        %v5214 = vpop.f32.mrb[0].mxu0
        %v5215 = vadd.f32 %v3371, %v5214
        %v5216 = vpop.f32.mrb[0].mxu0
        %5217 = vmatprep.mubr.bf16.mxu0 %v4458
        %5218 = vmatmul.mubr.bf16.gmra.mrb[0].mxu0 %v4457
        %v5219 = vpop.f32.mrb[0].mxu0
        %v5220 = vadd.f32 %v3376, %v5219
        %v5221 = vpop.f32.mrb[0].mxu0
        %v5222 = vpop.f32.mrb[0].mxu0
        %v5223 = vadd.f32 %v3381, %v5222
        %v5224 = vpop.f32.mrb[0].mxu0
        %5225 = vmatprep.mubr.bf16.mxu0 %v4462
        %5226 = vmatmul.mubr.bf16.gmra.mrb[0].mxu0 %v4461
        %v5227 = vpop.f32.mrb[0].mxu0
        %v5228 = vadd.f32 %v3386, %v5227
        %v5229 = vpop.f32.mrb[0].mxu0
        %v5230 = vpop.f32.mrb[0].mxu0
        %v5231 = vadd.f32 %v3391, %v5230
        %v5232 = vpop.f32.mrb[0].mxu0
        %5233 = vmatprep.mubr.bf16.mxu0 %v4466
        %5234 = vmatmul.mubr.bf16.gmra.mrb[0].mxu0 %v4465
        %v5235 = vpop.f32.mrb[0].mxu0
        %v5236 = vadd.f32 %v3396, %v5235
        %v5237 = vpop.f32.mrb[0].mxu0
        %v5238 = vpop.f32.mrb[0].mxu0
        %v5239 = vadd.f32 %v3401, %v5238
        %v5240 = vpop.f32.mrb[0].mxu0
        %5241 = vmatprep.mubr.bf16.mxu0 %v4470
        %5242 = vmatmul.mubr.bf16.gmra.mrb[0].mxu0 %v4469
        %v5243 = vpop.f32.mrb[0].mxu0
        %v5244 = vadd.f32 %v3406, %v5243
        %v5245 = vpop.f32.mrb[0].mxu0
        %v5246 = vpop.f32.mrb[0].mxu0
        %v5247 = vadd.f32 %v3411, %v5246
        %v5248 = vpop.f32.mrb[0].mxu0
        %5249 = vmatprep.mubr.bf16.mxu0 %v4474
        %5250 = vmatmul.mubr.bf16.gmra.mrb[0].mxu0 %v4473
        %v5251 = vpop.f32.mrb[0].mxu0
        %v5252 = vadd.f32 %v3416, %v5251
        %v5253 = vpop.f32.mrb[0].mxu0
        %v5254 = vpop.f32.mrb[0].mxu0
        %v5255 = vadd.f32 %v3421, %v5254
        %v5256 = vpop.f32.mrb[0].mxu0
        %5257 = vmatprep.mubr.bf16.mxu0 %v4478
        %5258 = vmatmul.mubr.bf16.gmra.mrb[0].mxu0 %v4477
        %v5259 = vpop.f32.mrb[0].mxu0
        %v5260 = vadd.f32 %v3426, %v5259
        %v5261 = vpop.f32.mrb[0].mxu0
        %v5262 = vpop.f32.mrb[0].mxu0
        %v5263 = vadd.f32 %v3431, %v5262
        %v5264 = vpop.f32.mrb[0].mxu0
        %5265 = vmatprep.mubr.bf16.mxu0 %v4482
        %5266 = vmatmul.mubr.bf16.gmra.mrb[0].mxu0 %v4481
        %v5267 = vpop.f32.mrb[0].mxu0
        %v5268 = vadd.f32 %v3436, %v5267
        %v5269 = vpop.f32.mrb[0].mxu0
        %v5270 = vpop.f32.mrb[0].mxu0
        %v5271 = vadd.f32 %v3441, %v5270
        %v5272 = vpop.f32.mrb[0].mxu0
        %5273 = vmatprep.mubr.bf16.mxu0 %v4486
        %5274 = vmatmul.mubr.bf16.gmra.mrb[0].mxu0 %v4485
        %v5275 = vpop.f32.mrb[0].mxu0
        %v5276 = vadd.f32 %v3446, %v5275
        %v5277 = vpop.f32.mrb[0].mxu0
        %v5278 = vpop.f32.mrb[0].mxu0
        %v5279 = vadd.f32 %v3451, %v5278
        %v5280 = vpop.f32.mrb[0].mxu0
        %5281 = vmatprep.mubr.bf16.mxu0 %v4490
        %5282 = vmatmul.mubr.bf16.gmra.mrb[0].mxu0 %v4489
        %v5283 = vpop.f32.mrb[0].mxu0
        %v5284 = vadd.f32 %v3456, %v5283
        %v5285 = vpop.f32.mrb[0].mxu0
        %v5286 = vpop.f32.mrb[0].mxu0
        %v5287 = vadd.f32 %v3461, %v5286
        %v5288 = vpop.f32.mrb[0].mxu0
        %5289 = vmatprep.mubr.bf16.mxu0 %v4494
        %5290 = vmatmul.mubr.bf16.gmra.mrb[0].mxu0 %v4493
        %v5291 = vpop.f32.mrb[0].mxu0
        %v5292 = vadd.f32 %v3466, %v5291
        %v5293 = vpop.f32.mrb[0].mxu0
        %v5294 = vpop.f32.mrb[0].mxu0
        %v5295 = vadd.f32 %v3471, %v5294
        %v5296 = vpop.f32.mrb[0].mxu0
        %5297 = vdwg.mxu0
        %5298 = vmatprep.subr.bf16.mxu0 0
        %5299 = vmatpush1.bf16.msra.mxu0 %v2433
        %5300 = vmatprep.subr.bf16.mxu0 0
        %5301 = vmatpush1.bf16.msra.mxu0 %v2434
        %5302 = vmatprep.subr.bf16.mxu0 0
        %5303 = vmatpush1.bf16.msra.mxu0 %v2435
        %5304 = vmatprep.subr.bf16.mxu0 0
        %5305 = vmatpush1.bf16.msra.mxu0 %v2436
        %5306 = vmatprep.subr.bf16.mxu0 0
        %5307 = vmatpush1.bf16.msra.mxu0 %v2437
        %5308 = vmatprep.subr.bf16.mxu0 0
        %5309 = vmatpush1.bf16.msra.mxu0 %v2438
        %5310 = vmatprep.subr.bf16.mxu0 0
        %5311 = vmatpush1.bf16.msra.mxu0 %v2439
        %5312 = vmatprep.subr.bf16.mxu0 0
        %5313 = vmatpush1.bf16.msra.mxu0 %v2440
        %5314 = vmatprep.subr.bf16.mxu0 0
        %5315 = vmatpush1.bf16.msra.mxu0 %v2441
        %5316 = vmatprep.subr.bf16.mxu0 0
        %5317 = vmatpush1.bf16.msra.mxu0 %v2442
        %5318 = vmatprep.subr.bf16.mxu0 0
        %5319 = vmatpush1.bf16.msra.mxu0 %v2443
        %5320 = vmatprep.subr.bf16.mxu0 0
        %5321 = vmatpush1.bf16.msra.mxu0 %v2444
        %5322 = vmatprep.subr.bf16.mxu0 0
        %5323 = vmatpush1.bf16.msra.mxu0 %v2445
        %5324 = vmatprep.subr.bf16.mxu0 0
        %5325 = vmatpush1.bf16.msra.mxu0 %v2446
        %5326 = vmatprep.subr.bf16.mxu0 0
        %5327 = vmatpush1.bf16.msra.mxu0 %v2447
        %5328 = vmatprep.subr.bf16.mxu0 0
        %5329 = vmatpush1.bf16.msra.mxu0 %v2448
        %5330 = vmatprep.mubr.bf16.mxu0 %v4244
        %5331 = vmatmul.mubr.bf16.gmra.mrb[0].mxu0 %v4243
        %v5332 = vpop.f32.mrb[0].mxu0
        %v5333 = vadd.f32 %v4788, %v5332
        %v5334 = vpop.f32.mrb[0].mxu0
        %v5335 = vpop.f32.mrb[0].mxu0
        %v5336 = vadd.f32 %v4791, %v5335
        %v5337 = vpop.f32.mrb[0].mxu0
        %5338 = vmatprep.mubr.bf16.mxu0 %v4248
        %5339 = vmatmul.mubr.bf16.gmra.mrb[0].mxu0 %v4247
        %v5340 = vpop.f32.mrb[0].mxu0
        %v5341 = vadd.f32 %v4796, %v5340
        %v5342 = vpop.f32.mrb[0].mxu0
        %v5343 = vpop.f32.mrb[0].mxu0
        %v5344 = vadd.f32 %v4799, %v5343
        %v5345 = vpop.f32.mrb[0].mxu0
        %5346 = vmatprep.mubr.bf16.mxu0 %v4252
        %5347 = vmatmul.mubr.bf16.gmra.mrb[0].mxu0 %v4251
        %v5348 = vpop.f32.mrb[0].mxu0
        %v5349 = vadd.f32 %v4804, %v5348
        %v5350 = vpop.f32.mrb[0].mxu0
        %v5351 = vpop.f32.mrb[0].mxu0
        %v5352 = vadd.f32 %v4807, %v5351
        %v5353 = vpop.f32.mrb[0].mxu0
        %5354 = vmatprep.mubr.bf16.mxu0 %v4256
        %5355 = vmatmul.mubr.bf16.gmra.mrb[0].mxu0 %v4255
        %v5356 = vpop.f32.mrb[0].mxu0
        %v5357 = vadd.f32 %v4812, %v5356
        %v5358 = vpop.f32.mrb[0].mxu0
        %v5359 = vpop.f32.mrb[0].mxu0
        %v5360 = vadd.f32 %v4815, %v5359
        %v5361 = vpop.f32.mrb[0].mxu0
        %5362 = vmatprep.mubr.bf16.mxu0 %v4260
        %5363 = vmatmul.mubr.bf16.gmra.mrb[0].mxu0 %v4259
        %v5364 = vpop.f32.mrb[0].mxu0
        %v5365 = vadd.f32 %v4820, %v5364
        %v5366 = vpop.f32.mrb[0].mxu0
        %v5367 = vpop.f32.mrb[0].mxu0
        %v5368 = vadd.f32 %v4823, %v5367
        %v5369 = vpop.f32.mrb[0].mxu0
        %5370 = vmatprep.mubr.bf16.mxu0 %v4264
        %5371 = vmatmul.mubr.bf16.gmra.mrb[0].mxu0 %v4263
        %v5372 = vpop.f32.mrb[0].mxu0
        %v5373 = vadd.f32 %v4828, %v5372
        %v5374 = vpop.f32.mrb[0].mxu0
        %v5375 = vpop.f32.mrb[0].mxu0
        %v5376 = vadd.f32 %v4831, %v5375
        %v5377 = vpop.f32.mrb[0].mxu0
        %5378 = vmatprep.mubr.bf16.mxu0 %v4268
        %5379 = vmatmul.mubr.bf16.gmra.mrb[0].mxu0 %v4267
        %v5380 = vpop.f32.mrb[0].mxu0
        %v5381 = vadd.f32 %v4836, %v5380
        %v5382 = vpop.f32.mrb[0].mxu0
        %v5383 = vpop.f32.mrb[0].mxu0
        %v5384 = vadd.f32 %v4839, %v5383
        %v5385 = vpop.f32.mrb[0].mxu0
        %5386 = vmatprep.mubr.bf16.mxu0 %v4272
        %5387 = vmatmul.mubr.bf16.gmra.mrb[0].mxu0 %v4271
        %v5388 = vpop.f32.mrb[0].mxu0
        %v5389 = vadd.f32 %v4844, %v5388
        %v5390 = vpop.f32.mrb[0].mxu0
        %v5391 = vpop.f32.mrb[0].mxu0
        %v5392 = vadd.f32 %v4847, %v5391
        %v5393 = vpop.f32.mrb[0].mxu0
        %5394 = vmatprep.mubr.bf16.mxu0 %v4276
        %5395 = vmatmul.mubr.bf16.gmra.mrb[0].mxu0 %v4275
        %v5396 = vpop.f32.mrb[0].mxu0
        %v5397 = vadd.f32 %v4852, %v5396
        %v5398 = vpop.f32.mrb[0].mxu0
        %v5399 = vpop.f32.mrb[0].mxu0
        %v5400 = vadd.f32 %v4855, %v5399
        %v5401 = vpop.f32.mrb[0].mxu0
        %5402 = vmatprep.mubr.bf16.mxu0 %v4280
        %5403 = vmatmul.mubr.bf16.gmra.mrb[0].mxu0 %v4279
        %v5404 = vpop.f32.mrb[0].mxu0
        %v5405 = vadd.f32 %v4860, %v5404
        %v5406 = vpop.f32.mrb[0].mxu0
        %v5407 = vpop.f32.mrb[0].mxu0
        %v5408 = vadd.f32 %v4863, %v5407
        %v5409 = vpop.f32.mrb[0].mxu0
        %5410 = vmatprep.mubr.bf16.mxu0 %v4284
        %5411 = vmatmul.mubr.bf16.gmra.mrb[0].mxu0 %v4283
        %v5412 = vpop.f32.mrb[0].mxu0
        %v5413 = vadd.f32 %v4868, %v5412
        %v5414 = vpop.f32.mrb[0].mxu0
        %v5415 = vpop.f32.mrb[0].mxu0
        %v5416 = vadd.f32 %v4871, %v5415
        %v5417 = vpop.f32.mrb[0].mxu0
        %5418 = vmatprep.mubr.bf16.mxu0 %v4288
        %5419 = vmatmul.mubr.bf16.gmra.mrb[0].mxu0 %v4287
        %v5420 = vpop.f32.mrb[0].mxu0
        %v5421 = vadd.f32 %v4876, %v5420
        %v5422 = vpop.f32.mrb[0].mxu0
        %v5423 = vpop.f32.mrb[0].mxu0
        %v5424 = vadd.f32 %v4879, %v5423
        %v5425 = vpop.f32.mrb[0].mxu0
        %5426 = vmatprep.mubr.bf16.mxu0 %v4292
        %5427 = vmatmul.mubr.bf16.gmra.mrb[0].mxu0 %v4291
        %v5428 = vpop.f32.mrb[0].mxu0
        %v5429 = vadd.f32 %v4884, %v5428
        %v5430 = vpop.f32.mrb[0].mxu0
        %v5431 = vpop.f32.mrb[0].mxu0
        %v5432 = vadd.f32 %v4887, %v5431
        %v5433 = vpop.f32.mrb[0].mxu0
        %5434 = vmatprep.mubr.bf16.mxu0 %v4296
        %5435 = vmatmul.mubr.bf16.gmra.mrb[0].mxu0 %v4295
        %v5436 = vpop.f32.mrb[0].mxu0
        %v5437 = vadd.f32 %v4892, %v5436
        %v5438 = vpop.f32.mrb[0].mxu0
        %v5439 = vpop.f32.mrb[0].mxu0
        %v5440 = vadd.f32 %v4895, %v5439
        %v5441 = vpop.f32.mrb[0].mxu0
        %5442 = vmatprep.mubr.bf16.mxu0 %v4300
        %5443 = vmatmul.mubr.bf16.gmra.mrb[0].mxu0 %v4299
        %v5444 = vpop.f32.mrb[0].mxu0
        %v5445 = vadd.f32 %v4900, %v5444
        %v5446 = vpop.f32.mrb[0].mxu0
        %v5447 = vpop.f32.mrb[0].mxu0
        %v5448 = vadd.f32 %v4903, %v5447
        %v5449 = vpop.f32.mrb[0].mxu0
        %5450 = vmatprep.mubr.bf16.mxu0 %v4304
        %5451 = vmatmul.mubr.bf16.gmra.mrb[0].mxu0 %v4303
        %v5452 = vpop.f32.mrb[0].mxu0
        %v5453 = vadd.f32 %v4908, %v5452
        %v5454 = vpop.f32.mrb[0].mxu0
        %v5455 = vpop.f32.mrb[0].mxu0
        %v5456 = vadd.f32 %v4911, %v5455
        %v5457 = vpop.f32.mrb[0].mxu0
        %5458 = vmatprep.mubr.bf16.mxu0 %v4308
        %5459 = vmatmul.mubr.bf16.gmra.mrb[0].mxu0 %v4307
        %v5460 = vpop.f32.mrb[0].mxu0
        %v5461 = vadd.f32 %v4916, %v5460
        %v5462 = vpop.f32.mrb[0].mxu0
        %v5463 = vpop.f32.mrb[0].mxu0
        %v5464 = vadd.f32 %v4919, %v5463
        %v5465 = vpop.f32.mrb[0].mxu0
        %5466 = vmatprep.mubr.bf16.mxu0 %v4312
        %5467 = vmatmul.mubr.bf16.gmra.mrb[0].mxu0 %v4311
        %v5468 = vpop.f32.mrb[0].mxu0
        %v5469 = vadd.f32 %v4924, %v5468
        %v5470 = vpop.f32.mrb[0].mxu0
        %v5471 = vpop.f32.mrb[0].mxu0
        %v5472 = vadd.f32 %v4927, %v5471
        %v5473 = vpop.f32.mrb[0].mxu0
        %5474 = vmatprep.mubr.bf16.mxu0 %v4316
        %5475 = vmatmul.mubr.bf16.gmra.mrb[0].mxu0 %v4315
        %v5476 = vpop.f32.mrb[0].mxu0
        %v5477 = vadd.f32 %v4932, %v5476
        %v5478 = vpop.f32.mrb[0].mxu0
        %v5479 = vpop.f32.mrb[0].mxu0
        %v5480 = vadd.f32 %v4935, %v5479
        %v5481 = vpop.f32.mrb[0].mxu0
        %5482 = vmatprep.mubr.bf16.mxu0 %v4320
        %5483 = vmatmul.mubr.bf16.gmra.mrb[0].mxu0 %v4319
        %v5484 = vpop.f32.mrb[0].mxu0
        %v5485 = vadd.f32 %v4940, %v5484
        %v5486 = vpop.f32.mrb[0].mxu0
        %v5487 = vpop.f32.mrb[0].mxu0
        %v5488 = vadd.f32 %v4943, %v5487
        %v5489 = vpop.f32.mrb[0].mxu0
        %5490 = vmatprep.mubr.bf16.mxu0 %v4324
        %5491 = vmatmul.mubr.bf16.gmra.mrb[0].mxu0 %v4323
        %v5492 = vpop.f32.mrb[0].mxu0
        %v5493 = vadd.f32 %v4948, %v5492
        %v5494 = vpop.f32.mrb[0].mxu0
        %v5495 = vpop.f32.mrb[0].mxu0
        %v5496 = vadd.f32 %v4951, %v5495
        %v5497 = vpop.f32.mrb[0].mxu0
        %5498 = vmatprep.mubr.bf16.mxu0 %v4328
        %5499 = vmatmul.mubr.bf16.gmra.mrb[0].mxu0 %v4327
        %v5500 = vpop.f32.mrb[0].mxu0
        %v5501 = vadd.f32 %v4956, %v5500
        %v5502 = vpop.f32.mrb[0].mxu0
        %v5503 = vpop.f32.mrb[0].mxu0
        %v5504 = vadd.f32 %v4959, %v5503
        %v5505 = vpop.f32.mrb[0].mxu0
        %5506 = vmatprep.mubr.bf16.mxu0 %v4332
        %5507 = vmatmul.mubr.bf16.gmra.mrb[0].mxu0 %v4331
        %v5508 = vpop.f32.mrb[0].mxu0
        %v5509 = vadd.f32 %v4964, %v5508
        %v5510 = vpop.f32.mrb[0].mxu0
        %v5511 = vpop.f32.mrb[0].mxu0
        %v5512 = vadd.f32 %v4967, %v5511
        %v5513 = vpop.f32.mrb[0].mxu0
        %5514 = vmatprep.mubr.bf16.mxu0 %v4336
        %5515 = vmatmul.mubr.bf16.gmra.mrb[0].mxu0 %v4335
        %v5516 = vpop.f32.mrb[0].mxu0
        %v5517 = vadd.f32 %v4972, %v5516
        %v5518 = vpop.f32.mrb[0].mxu0
        %v5519 = vpop.f32.mrb[0].mxu0
        %v5520 = vadd.f32 %v4975, %v5519
        %v5521 = vpop.f32.mrb[0].mxu0
        %5522 = vmatprep.mubr.bf16.mxu0 %v4340
        %5523 = vmatmul.mubr.bf16.gmra.mrb[0].mxu0 %v4339
        %v5524 = vpop.f32.mrb[0].mxu0
        %v5525 = vadd.f32 %v4980, %v5524
        %v5526 = vpop.f32.mrb[0].mxu0
        %v5527 = vpop.f32.mrb[0].mxu0
        %v5528 = vadd.f32 %v4983, %v5527
        %v5529 = vpop.f32.mrb[0].mxu0
        %5530 = vmatprep.mubr.bf16.mxu0 %v4344
        %5531 = vmatmul.mubr.bf16.gmra.mrb[0].mxu0 %v4343
        %v5532 = vpop.f32.mrb[0].mxu0
        %v5533 = vadd.f32 %v4988, %v5532
        %v5534 = vpop.f32.mrb[0].mxu0
        %v5535 = vpop.f32.mrb[0].mxu0
        %v5536 = vadd.f32 %v4991, %v5535
        %v5537 = vpop.f32.mrb[0].mxu0
        %5538 = vmatprep.mubr.bf16.mxu0 %v4348
        %5539 = vmatmul.mubr.bf16.gmra.mrb[0].mxu0 %v4347
        %v5540 = vpop.f32.mrb[0].mxu0
        %v5541 = vadd.f32 %v4996, %v5540
        %v5542 = vpop.f32.mrb[0].mxu0
        %v5543 = vpop.f32.mrb[0].mxu0
        %v5544 = vadd.f32 %v4999, %v5543
        %v5545 = vpop.f32.mrb[0].mxu0
        %5546 = vmatprep.mubr.bf16.mxu0 %v4352
        %5547 = vmatmul.mubr.bf16.gmra.mrb[0].mxu0 %v4351
        %v5548 = vpop.f32.mrb[0].mxu0
        %v5549 = vadd.f32 %v5004, %v5548
        %v5550 = vpop.f32.mrb[0].mxu0
        %v5551 = vpop.f32.mrb[0].mxu0
        %v5552 = vadd.f32 %v5007, %v5551
        %v5553 = vpop.f32.mrb[0].mxu0
        %5554 = vmatprep.mubr.bf16.mxu0 %v4356
        %5555 = vmatmul.mubr.bf16.gmra.mrb[0].mxu0 %v4355
        %v5556 = vpop.f32.mrb[0].mxu0
        %v5557 = vadd.f32 %v5012, %v5556
        %v5558 = vpop.f32.mrb[0].mxu0
        %v5559 = vpop.f32.mrb[0].mxu0
        %v5560 = vadd.f32 %v5015, %v5559
        %v5561 = vpop.f32.mrb[0].mxu0
        %5562 = vmatprep.mubr.bf16.mxu0 %v4360
        %5563 = vmatmul.mubr.bf16.gmra.mrb[0].mxu0 %v4359
        %v5564 = vpop.f32.mrb[0].mxu0
        %v5565 = vadd.f32 %v5020, %v5564
        %v5566 = vpop.f32.mrb[0].mxu0
        %v5567 = vpop.f32.mrb[0].mxu0
        %v5568 = vadd.f32 %v5023, %v5567
        %v5569 = vpop.f32.mrb[0].mxu0
        %5570 = vmatprep.mubr.bf16.mxu0 %v4364
        %5571 = vmatmul.mubr.bf16.gmra.mrb[0].mxu0 %v4363
        %v5572 = vpop.f32.mrb[0].mxu0
        %v5573 = vadd.f32 %v5028, %v5572
        %v5574 = vpop.f32.mrb[0].mxu0
        %v5575 = vpop.f32.mrb[0].mxu0
        %v5576 = vadd.f32 %v5031, %v5575
        %v5577 = vpop.f32.mrb[0].mxu0
        %5578 = vmatprep.mubr.bf16.mxu0 %v4368
        %5579 = vmatmul.mubr.bf16.gmra.mrb[0].mxu0 %v4367
        %v5580 = vpop.f32.mrb[0].mxu0
        %v5581 = vadd.f32 %v5036, %v5580
        %v5582 = vpop.f32.mrb[0].mxu0
        %v5583 = vpop.f32.mrb[0].mxu0
        %v5584 = vadd.f32 %v5039, %v5583
        %v5585 = vpop.f32.mrb[0].mxu0
        %5586 = vmatprep.mubr.bf16.mxu0 %v4372
        %5587 = vmatmul.mubr.bf16.gmra.mrb[0].mxu0 %v4371
        %v5588 = vpop.f32.mrb[0].mxu0
        %v5589 = vadd.f32 %v5044, %v5588
        %v5590 = vpop.f32.mrb[0].mxu0
        %v5591 = vpop.f32.mrb[0].mxu0
        %v5592 = vadd.f32 %v5047, %v5591
        %v5593 = vpop.f32.mrb[0].mxu0
        %5594 = vmatprep.mubr.bf16.mxu0 %v4376
        %5595 = vmatmul.mubr.bf16.gmra.mrb[0].mxu0 %v4375
        %v5596 = vpop.f32.mrb[0].mxu0
        %v5597 = vadd.f32 %v5052, %v5596
        %v5598 = vpop.f32.mrb[0].mxu0
        %v5599 = vpop.f32.mrb[0].mxu0
        %v5600 = vadd.f32 %v5055, %v5599
        %v5601 = vpop.f32.mrb[0].mxu0
        %5602 = vmatprep.mubr.bf16.mxu0 %v4380
        %5603 = vmatmul.mubr.bf16.gmra.mrb[0].mxu0 %v4379
        %v5604 = vpop.f32.mrb[0].mxu0
        %v5605 = vadd.f32 %v5060, %v5604
        %v5606 = vpop.f32.mrb[0].mxu0
        %v5607 = vpop.f32.mrb[0].mxu0
        %v5608 = vadd.f32 %v5063, %v5607
        %v5609 = vpop.f32.mrb[0].mxu0
        %5610 = vmatprep.mubr.bf16.mxu0 %v4384
        %5611 = vmatmul.mubr.bf16.gmra.mrb[0].mxu0 %v4383
        %v5612 = vpop.f32.mrb[0].mxu0
        %v5613 = vadd.f32 %v5068, %v5612
        %v5614 = vpop.f32.mrb[0].mxu0
        %v5615 = vpop.f32.mrb[0].mxu0
        %v5616 = vadd.f32 %v5071, %v5615
        %v5617 = vpop.f32.mrb[0].mxu0
        %5618 = vmatprep.mubr.bf16.mxu0 %v4388
        %5619 = vmatmul.mubr.bf16.gmra.mrb[0].mxu0 %v4387
        %v5620 = vpop.f32.mrb[0].mxu0
        %v5621 = vadd.f32 %v5076, %v5620
        %v5622 = vpop.f32.mrb[0].mxu0
        %v5623 = vpop.f32.mrb[0].mxu0
        %v5624 = vadd.f32 %v5079, %v5623
        %v5625 = vpop.f32.mrb[0].mxu0
        %5626 = vmatprep.mubr.bf16.mxu0 %v4392
        %5627 = vmatmul.mubr.bf16.gmra.mrb[0].mxu0 %v4391
        %v5628 = vpop.f32.mrb[0].mxu0
        %v5629 = vadd.f32 %v5084, %v5628
        %v5630 = vpop.f32.mrb[0].mxu0
        %v5631 = vpop.f32.mrb[0].mxu0
        %v5632 = vadd.f32 %v5087, %v5631
        %v5633 = vpop.f32.mrb[0].mxu0
        %5634 = vmatprep.mubr.bf16.mxu0 %v4396
        %5635 = vmatmul.mubr.bf16.gmra.mrb[0].mxu0 %v4395
        %v5636 = vpop.f32.mrb[0].mxu0
        %v5637 = vadd.f32 %v5092, %v5636
        %v5638 = vpop.f32.mrb[0].mxu0
        %v5639 = vpop.f32.mrb[0].mxu0
        %v5640 = vadd.f32 %v5095, %v5639
        %v5641 = vpop.f32.mrb[0].mxu0
        %5642 = vmatprep.mubr.bf16.mxu0 %v4400
        %5643 = vmatmul.mubr.bf16.gmra.mrb[0].mxu0 %v4399
        %v5644 = vpop.f32.mrb[0].mxu0
        %v5645 = vadd.f32 %v5100, %v5644
        %v5646 = vpop.f32.mrb[0].mxu0
        %v5647 = vpop.f32.mrb[0].mxu0
        %v5648 = vadd.f32 %v5103, %v5647
        %v5649 = vpop.f32.mrb[0].mxu0
        %5650 = vmatprep.mubr.bf16.mxu0 %v4404
        %5651 = vmatmul.mubr.bf16.gmra.mrb[0].mxu0 %v4403
        %v5652 = vpop.f32.mrb[0].mxu0
        %v5653 = vadd.f32 %v5108, %v5652
        %v5654 = vpop.f32.mrb[0].mxu0
        %v5655 = vpop.f32.mrb[0].mxu0
        %v5656 = vadd.f32 %v5111, %v5655
        %v5657 = vpop.f32.mrb[0].mxu0
        %5658 = vmatprep.mubr.bf16.mxu0 %v4408
        %5659 = vmatmul.mubr.bf16.gmra.mrb[0].mxu0 %v4407
        %v5660 = vpop.f32.mrb[0].mxu0
        %v5661 = vadd.f32 %v5116, %v5660
        %v5662 = vpop.f32.mrb[0].mxu0
        %v5663 = vpop.f32.mrb[0].mxu0
        %v5664 = vadd.f32 %v5119, %v5663
        %v5665 = vpop.f32.mrb[0].mxu0
        %5666 = vmatprep.mubr.bf16.mxu0 %v4412
        %5667 = vmatmul.mubr.bf16.gmra.mrb[0].mxu0 %v4411
        %v5668 = vpop.f32.mrb[0].mxu0
        %v5669 = vadd.f32 %v5124, %v5668
        %v5670 = vpop.f32.mrb[0].mxu0
        %v5671 = vpop.f32.mrb[0].mxu0
        %v5672 = vadd.f32 %v5127, %v5671
        %v5673 = vpop.f32.mrb[0].mxu0
        %5674 = vmatprep.mubr.bf16.mxu0 %v4416
        %5675 = vmatmul.mubr.bf16.gmra.mrb[0].mxu0 %v4415
        %v5676 = vpop.f32.mrb[0].mxu0
        %v5677 = vadd.f32 %v5132, %v5676
        %v5678 = vpop.f32.mrb[0].mxu0
        %v5679 = vpop.f32.mrb[0].mxu0
        %v5680 = vadd.f32 %v5135, %v5679
        %v5681 = vpop.f32.mrb[0].mxu0
        %5682 = vmatprep.mubr.bf16.mxu0 %v4420
        %5683 = vmatmul.mubr.bf16.gmra.mrb[0].mxu0 %v4419
        %v5684 = vpop.f32.mrb[0].mxu0
        %v5685 = vadd.f32 %v5140, %v5684
        %v5686 = vpop.f32.mrb[0].mxu0
        %v5687 = vpop.f32.mrb[0].mxu0
        %v5688 = vadd.f32 %v5143, %v5687
        %v5689 = vpop.f32.mrb[0].mxu0
        %5690 = vmatprep.mubr.bf16.mxu0 %v4424
        %5691 = vmatmul.mubr.bf16.gmra.mrb[0].mxu0 %v4423
        %v5692 = vpop.f32.mrb[0].mxu0
        %v5693 = vadd.f32 %v5148, %v5692
        %v5694 = vpop.f32.mrb[0].mxu0
        %v5695 = vpop.f32.mrb[0].mxu0
        %v5696 = vadd.f32 %v5151, %v5695
        %v5697 = vpop.f32.mrb[0].mxu0
        %5698 = vmatprep.mubr.bf16.mxu0 %v4428
        %5699 = vmatmul.mubr.bf16.gmra.mrb[0].mxu0 %v4427
        %v5700 = vpop.f32.mrb[0].mxu0
        %v5701 = vadd.f32 %v5156, %v5700
        %v5702 = vpop.f32.mrb[0].mxu0
        %v5703 = vpop.f32.mrb[0].mxu0
        %v5704 = vadd.f32 %v5159, %v5703
        %v5705 = vpop.f32.mrb[0].mxu0
        %5706 = vmatprep.mubr.bf16.mxu0 %v4432
        %5707 = vmatmul.mubr.bf16.gmra.mrb[0].mxu0 %v4431
        %v5708 = vpop.f32.mrb[0].mxu0
        %v5709 = vadd.f32 %v5164, %v5708
        %v5710 = vpop.f32.mrb[0].mxu0
        %v5711 = vpop.f32.mrb[0].mxu0
        %v5712 = vadd.f32 %v5167, %v5711
        %v5713 = vpop.f32.mrb[0].mxu0
        %5714 = vmatprep.mubr.bf16.mxu0 %v4436
        %5715 = vmatmul.mubr.bf16.gmra.mrb[0].mxu0 %v4435
        %v5716 = vpop.f32.mrb[0].mxu0
        %v5717 = vadd.f32 %v5172, %v5716
        %v5718 = vpop.f32.mrb[0].mxu0
        %v5719 = vpop.f32.mrb[0].mxu0
        %v5720 = vadd.f32 %v5175, %v5719
        %v5721 = vpop.f32.mrb[0].mxu0
        %5722 = vmatprep.mubr.bf16.mxu0 %v4440
        %5723 = vmatmul.mubr.bf16.gmra.mrb[0].mxu0 %v4439
        %v5724 = vpop.f32.mrb[0].mxu0
        %v5725 = vadd.f32 %v5180, %v5724
        %v5726 = vpop.f32.mrb[0].mxu0
        %v5727 = vpop.f32.mrb[0].mxu0
        %v5728 = vadd.f32 %v5183, %v5727
        %v5729 = vpop.f32.mrb[0].mxu0
        %5730 = vmatprep.mubr.bf16.mxu0 %v4444
        %5731 = vmatmul.mubr.bf16.gmra.mrb[0].mxu0 %v4443
        %v5732 = vpop.f32.mrb[0].mxu0
        %v5733 = vadd.f32 %v5188, %v5732
        %v5734 = vpop.f32.mrb[0].mxu0
        %v5735 = vpop.f32.mrb[0].mxu0
        %v5736 = vadd.f32 %v5191, %v5735
        %v5737 = vpop.f32.mrb[0].mxu0
        %5738 = vmatprep.mubr.bf16.mxu0 %v4448
        %5739 = vmatmul.mubr.bf16.gmra.mrb[0].mxu0 %v4447
        %v5740 = vpop.f32.mrb[0].mxu0
        %v5741 = vadd.f32 %v5196, %v5740
        %v5742 = vpop.f32.mrb[0].mxu0
        %v5743 = vpop.f32.mrb[0].mxu0
        %v5744 = vadd.f32 %v5199, %v5743
        %v5745 = vpop.f32.mrb[0].mxu0
        %5746 = vmatprep.mubr.bf16.mxu0 %v4452
        %5747 = vmatmul.mubr.bf16.gmra.mrb[0].mxu0 %v4451
        %v5748 = vpop.f32.mrb[0].mxu0
        %v5749 = vadd.f32 %v5204, %v5748
        %v5750 = vpop.f32.mrb[0].mxu0
        %v5751 = vpop.f32.mrb[0].mxu0
        %v5752 = vadd.f32 %v5207, %v5751
        %v5753 = vpop.f32.mrb[0].mxu0
        %5754 = vmatprep.mubr.bf16.mxu0 %v4456
        %5755 = vmatmul.mubr.bf16.gmra.mrb[0].mxu0 %v4455
        %v5756 = vpop.f32.mrb[0].mxu0
        %v5757 = vadd.f32 %v5212, %v5756
        %v5758 = vpop.f32.mrb[0].mxu0
        %v5759 = vpop.f32.mrb[0].mxu0
        %v5760 = vadd.f32 %v5215, %v5759
        %v5761 = vpop.f32.mrb[0].mxu0
        %5762 = vmatprep.mubr.bf16.mxu0 %v4460
        %5763 = vmatmul.mubr.bf16.gmra.mrb[0].mxu0 %v4459
        %v5764 = vpop.f32.mrb[0].mxu0
        %v5765 = vadd.f32 %v5220, %v5764
        %v5766 = vpop.f32.mrb[0].mxu0
        %v5767 = vpop.f32.mrb[0].mxu0
        %v5768 = vadd.f32 %v5223, %v5767
        %v5769 = vpop.f32.mrb[0].mxu0
        %5770 = vmatprep.mubr.bf16.mxu0 %v4464
        %5771 = vmatmul.mubr.bf16.gmra.mrb[0].mxu0 %v4463
        %v5772 = vpop.f32.mrb[0].mxu0
        %v5773 = vadd.f32 %v5228, %v5772
        %v5774 = vpop.f32.mrb[0].mxu0
        %v5775 = vpop.f32.mrb[0].mxu0
        %v5776 = vadd.f32 %v5231, %v5775
        %v5777 = vpop.f32.mrb[0].mxu0
        %5778 = vmatprep.mubr.bf16.mxu0 %v4468
        %5779 = vmatmul.mubr.bf16.gmra.mrb[0].mxu0 %v4467
        %v5780 = vpop.f32.mrb[0].mxu0
        %v5781 = vadd.f32 %v5236, %v5780
        %v5782 = vpop.f32.mrb[0].mxu0
        %v5783 = vpop.f32.mrb[0].mxu0
        %v5784 = vadd.f32 %v5239, %v5783
        %v5785 = vpop.f32.mrb[0].mxu0
        %5786 = vmatprep.mubr.bf16.mxu0 %v4472
        %5787 = vmatmul.mubr.bf16.gmra.mrb[0].mxu0 %v4471
        %v5788 = vpop.f32.mrb[0].mxu0
        %v5789 = vadd.f32 %v5244, %v5788
        %v5790 = vpop.f32.mrb[0].mxu0
        %v5791 = vpop.f32.mrb[0].mxu0
        %v5792 = vadd.f32 %v5247, %v5791
        %v5793 = vpop.f32.mrb[0].mxu0
        %5794 = vmatprep.mubr.bf16.mxu0 %v4476
        %5795 = vmatmul.mubr.bf16.gmra.mrb[0].mxu0 %v4475
        %v5796 = vpop.f32.mrb[0].mxu0
        %v5797 = vadd.f32 %v5252, %v5796
        %v5798 = vpop.f32.mrb[0].mxu0
        %v5799 = vpop.f32.mrb[0].mxu0
        %v5800 = vadd.f32 %v5255, %v5799
        %v5801 = vpop.f32.mrb[0].mxu0
        %5802 = vmatprep.mubr.bf16.mxu0 %v4480
        %5803 = vmatmul.mubr.bf16.gmra.mrb[0].mxu0 %v4479
        %v5804 = vpop.f32.mrb[0].mxu0
        %v5805 = vadd.f32 %v5260, %v5804
        %v5806 = vpop.f32.mrb[0].mxu0
        %v5807 = vpop.f32.mrb[0].mxu0
        %v5808 = vadd.f32 %v5263, %v5807
        %v5809 = vpop.f32.mrb[0].mxu0
        %5810 = vmatprep.mubr.bf16.mxu0 %v4484
        %5811 = vmatmul.mubr.bf16.gmra.mrb[0].mxu0 %v4483
        %v5812 = vpop.f32.mrb[0].mxu0
        %v5813 = vadd.f32 %v5268, %v5812
        %v5814 = vpop.f32.mrb[0].mxu0
        %v5815 = vpop.f32.mrb[0].mxu0
        %v5816 = vadd.f32 %v5271, %v5815
        %v5817 = vpop.f32.mrb[0].mxu0
        %5818 = vmatprep.mubr.bf16.mxu0 %v4488
        %5819 = vmatmul.mubr.bf16.gmra.mrb[0].mxu0 %v4487
        %v5820 = vpop.f32.mrb[0].mxu0
        %v5821 = vadd.f32 %v5276, %v5820
        %v5822 = vpop.f32.mrb[0].mxu0
        %v5823 = vpop.f32.mrb[0].mxu0
        %v5824 = vadd.f32 %v5279, %v5823
        %v5825 = vpop.f32.mrb[0].mxu0
        %5826 = vmatprep.mubr.bf16.mxu0 %v4492
        %5827 = vmatmul.mubr.bf16.gmra.mrb[0].mxu0 %v4491
        %v5828 = vpop.f32.mrb[0].mxu0
        %v5829 = vadd.f32 %v5284, %v5828
        %v5830 = vpop.f32.mrb[0].mxu0
        %v5831 = vpop.f32.mrb[0].mxu0
        %v5832 = vadd.f32 %v5287, %v5831
        %v5833 = vpop.f32.mrb[0].mxu0
        %5834 = vmatprep.mubr.bf16.mxu0 %v4496
        %5835 = vmatmul.mubr.bf16.gmra.mrb[0].mxu0 %v4495
        %v5836 = vpop.f32.mrb[0].mxu0
        %v5837 = vadd.f32 %v5292, %v5836
        %v5838 = vpop.f32.mrb[0].mxu0
        %v5839 = vpop.f32.mrb[0].mxu0
        %v5840 = vadd.f32 %v5295, %v5839
        %v5841 = vpop.f32.mrb[0].mxu0
        %5842 = vdwg.mxu0
        %v5843 = vmax.f32 %v5333, 0.0
        %v5844 = vmax.f32 %v5336, 0.0
        %v5845 = vmax.f32 %v5341, 0.0
        %v5846 = vmax.f32 %v5344, 0.0
        %v5847 = vmax.f32 %v5349, 0.0
        %v5848 = vmax.f32 %v5352, 0.0
        %v5849 = vmax.f32 %v5357, 0.0
        %v5850 = vmax.f32 %v5360, 0.0
        %v5851 = vmax.f32 %v5365, 0.0
        %v5852 = vmax.f32 %v5368, 0.0
        %v5853 = vmax.f32 %v5373, 0.0
        %v5854 = vmax.f32 %v5376, 0.0
        %v5855 = vmax.f32 %v5381, 0.0
        %v5856 = vmax.f32 %v5384, 0.0
        %v5857 = vmax.f32 %v5389, 0.0
        %v5858 = vmax.f32 %v5392, 0.0
        %v5859 = vmax.f32 %v5397, 0.0
        %v5860 = vmax.f32 %v5400, 0.0
        %v5861 = vmax.f32 %v5405, 0.0
        %v5862 = vmax.f32 %v5408, 0.0
        %v5863 = vmax.f32 %v5413, 0.0
        %v5864 = vmax.f32 %v5416, 0.0
        %v5865 = vmax.f32 %v5421, 0.0
        %v5866 = vmax.f32 %v5424, 0.0
        %v5867 = vmax.f32 %v5429, 0.0
        %v5868 = vmax.f32 %v5432, 0.0
        %v5869 = vmax.f32 %v5437, 0.0
        %v5870 = vmax.f32 %v5440, 0.0
        %v5871 = vmax.f32 %v5445, 0.0
        %v5872 = vmax.f32 %v5448, 0.0
        %v5873 = vmax.f32 %v5453, 0.0
        %v5874 = vmax.f32 %v5456, 0.0
        %v5875 = vmax.f32 %v5461, 0.0
        %v5876 = vmax.f32 %v5464, 0.0
        %v5877 = vmax.f32 %v5469, 0.0
        %v5878 = vmax.f32 %v5472, 0.0
        %v5879 = vmax.f32 %v5477, 0.0
        %v5880 = vmax.f32 %v5480, 0.0
        %v5881 = vmax.f32 %v5485, 0.0
        %v5882 = vmax.f32 %v5488, 0.0
        %v5883 = vmax.f32 %v5493, 0.0
        %v5884 = vmax.f32 %v5496, 0.0
        %v5885 = vmax.f32 %v5501, 0.0
        %v5886 = vmax.f32 %v5504, 0.0
        %v5887 = vmax.f32 %v5509, 0.0
        %v5888 = vmax.f32 %v5512, 0.0
        %v5889 = vmax.f32 %v5517, 0.0
        %v5890 = vmax.f32 %v5520, 0.0
        %v5891 = vmax.f32 %v5525, 0.0
        %v5892 = vmax.f32 %v5528, 0.0
        %v5893 = vmax.f32 %v5533, 0.0
        %v5894 = vmax.f32 %v5536, 0.0
        %v5895 = vmax.f32 %v5541, 0.0
        %v5896 = vmax.f32 %v5544, 0.0
        %v5897 = vmax.f32 %v5549, 0.0
        %v5898 = vmax.f32 %v5552, 0.0
        %v5899 = vmax.f32 %v5557, 0.0
        %v5900 = vmax.f32 %v5560, 0.0
        %v5901 = vmax.f32 %v5565, 0.0
        %v5902 = vmax.f32 %v5568, 0.0
        %v5903 = vmax.f32 %v5573, 0.0
        %v5904 = vmax.f32 %v5576, 0.0
        %v5905 = vmax.f32 %v5581, 0.0
        %v5906 = vmax.f32 %v5584, 0.0
        %v5907 = vmax.f32 %v5589, 0.0
        %v5908 = vmax.f32 %v5592, 0.0
        %v5909 = vmax.f32 %v5597, 0.0
        %v5910 = vmax.f32 %v5600, 0.0
        %v5911 = vmax.f32 %v5605, 0.0
        %v5912 = vmax.f32 %v5608, 0.0
        %v5913 = vmax.f32 %v5613, 0.0
        %v5914 = vmax.f32 %v5616, 0.0
        %v5915 = vmax.f32 %v5621, 0.0
        %v5916 = vmax.f32 %v5624, 0.0
        %v5917 = vmax.f32 %v5629, 0.0
        %v5918 = vmax.f32 %v5632, 0.0
        %v5919 = vmax.f32 %v5637, 0.0
        %v5920 = vmax.f32 %v5640, 0.0
        %v5921 = vmax.f32 %v5645, 0.0
        %v5922 = vmax.f32 %v5648, 0.0
        %v5923 = vmax.f32 %v5653, 0.0
        %v5924 = vmax.f32 %v5656, 0.0
        %v5925 = vmax.f32 %v5661, 0.0
        %v5926 = vmax.f32 %v5664, 0.0
        %v5927 = vmax.f32 %v5669, 0.0
        %v5928 = vmax.f32 %v5672, 0.0
        %v5929 = vmax.f32 %v5677, 0.0
        %v5930 = vmax.f32 %v5680, 0.0
        %v5931 = vmax.f32 %v5685, 0.0
        %v5932 = vmax.f32 %v5688, 0.0
        %v5933 = vmax.f32 %v5693, 0.0
        %v5934 = vmax.f32 %v5696, 0.0
        %v5935 = vmax.f32 %v5701, 0.0
        %v5936 = vmax.f32 %v5704, 0.0
        %v5937 = vmax.f32 %v5709, 0.0
        %v5938 = vmax.f32 %v5712, 0.0
        %v5939 = vmax.f32 %v5717, 0.0
        %v5940 = vmax.f32 %v5720, 0.0
        %v5941 = vmax.f32 %v5725, 0.0
        %v5942 = vmax.f32 %v5728, 0.0
        %v5943 = vmax.f32 %v5733, 0.0
        %v5944 = vmax.f32 %v5736, 0.0
        %v5945 = vmax.f32 %v5741, 0.0
        %v5946 = vmax.f32 %v5744, 0.0
        %v5947 = vmax.f32 %v5749, 0.0
        %v5948 = vmax.f32 %v5752, 0.0
        %v5949 = vmax.f32 %v5757, 0.0
        %v5950 = vmax.f32 %v5760, 0.0
        %v5951 = vmax.f32 %v5765, 0.0
        %v5952 = vmax.f32 %v5768, 0.0
        %v5953 = vmax.f32 %v5773, 0.0
        %v5954 = vmax.f32 %v5776, 0.0
        %v5955 = vmax.f32 %v5781, 0.0
        %v5956 = vmax.f32 %v5784, 0.0
        %v5957 = vmax.f32 %v5789, 0.0
        %v5958 = vmax.f32 %v5792, 0.0
        %v5959 = vmax.f32 %v5797, 0.0
        %v5960 = vmax.f32 %v5800, 0.0
        %v5961 = vmax.f32 %v5805, 0.0
        %v5962 = vmax.f32 %v5808, 0.0
        %v5963 = vmax.f32 %v5813, 0.0
        %v5964 = vmax.f32 %v5816, 0.0
        %v5965 = vmax.f32 %v5821, 0.0
        %v5966 = vmax.f32 %v5824, 0.0
        %v5967 = vmax.f32 %v5829, 0.0
        %v5968 = vmax.f32 %v5832, 0.0
        %v5969 = vmax.f32 %v5837, 0.0
        %v5970 = vmax.f32 %v5840, 0.0
        %5971 = vadd.xlane.f32.xlu0 %v5843
        %v5972 = vpop.xlane.xlu0 %5971
        %5973 = vadd.xlane.f32.xlu0 %v5844
        %v5974 = vpop.xlane.xlu0 %5973
        %5975 = vadd.xlane.f32.xlu0 %v5845
        %v5976 = vpop.xlane.xlu0 %5975
        %5977 = vadd.xlane.f32.xlu0 %v5846
        %v5978 = vpop.xlane.xlu0 %5977
        %5979 = vadd.xlane.f32.xlu0 %v5847
        %v5980 = vpop.xlane.xlu0 %5979
        %5981 = vadd.xlane.f32.xlu0 %v5848
        %v5982 = vpop.xlane.xlu0 %5981
        %5983 = vadd.xlane.f32.xlu0 %v5849
        %v5984 = vpop.xlane.xlu0 %5983
        %5985 = vadd.xlane.f32.xlu0 %v5850
        %v5986 = vpop.xlane.xlu0 %5985
        %5987 = vadd.xlane.f32.xlu0 %v5851
        %v5988 = vpop.xlane.xlu0 %5987
        %5989 = vadd.xlane.f32.xlu0 %v5852
        %v5990 = vpop.xlane.xlu0 %5989
        %5991 = vadd.xlane.f32.xlu0 %v5853
        %v5992 = vpop.xlane.xlu0 %5991
        %5993 = vadd.xlane.f32.xlu0 %v5854
        %v5994 = vpop.xlane.xlu0 %5993
        %5995 = vadd.xlane.f32.xlu0 %v5855
        %v5996 = vpop.xlane.xlu0 %5995
        %5997 = vadd.xlane.f32.xlu0 %v5856
        %v5998 = vpop.xlane.xlu0 %5997
        %5999 = vadd.xlane.f32.xlu0 %v5857
        %v6000 = vpop.xlane.xlu0 %5999
        %6001 = vadd.xlane.f32.xlu0 %v5858
        %v6002 = vpop.xlane.xlu0 %6001
        %6003 = vadd.xlane.f32.xlu0 %v5859
        %v6004 = vpop.xlane.xlu0 %6003
        %6005 = vadd.xlane.f32.xlu0 %v5860
        %v6006 = vpop.xlane.xlu0 %6005
        %6007 = vadd.xlane.f32.xlu0 %v5861
        %v6008 = vpop.xlane.xlu0 %6007
        %6009 = vadd.xlane.f32.xlu0 %v5862
        %v6010 = vpop.xlane.xlu0 %6009
        %6011 = vadd.xlane.f32.xlu0 %v5863
        %v6012 = vpop.xlane.xlu0 %6011
        %6013 = vadd.xlane.f32.xlu0 %v5864
        %v6014 = vpop.xlane.xlu0 %6013
        %6015 = vadd.xlane.f32.xlu0 %v5865
        %v6016 = vpop.xlane.xlu0 %6015
        %6017 = vadd.xlane.f32.xlu0 %v5866
        %v6018 = vpop.xlane.xlu0 %6017
        %6019 = vadd.xlane.f32.xlu0 %v5867
        %v6020 = vpop.xlane.xlu0 %6019
        %6021 = vadd.xlane.f32.xlu0 %v5868
        %v6022 = vpop.xlane.xlu0 %6021
        %6023 = vadd.xlane.f32.xlu0 %v5869
        %v6024 = vpop.xlane.xlu0 %6023
        %6025 = vadd.xlane.f32.xlu0 %v5870
        %v6026 = vpop.xlane.xlu0 %6025
        %6027 = vadd.xlane.f32.xlu0 %v5871
        %v6028 = vpop.xlane.xlu0 %6027
        %6029 = vadd.xlane.f32.xlu0 %v5872
        %v6030 = vpop.xlane.xlu0 %6029
        %6031 = vadd.xlane.f32.xlu0 %v5873
        %v6032 = vpop.xlane.xlu0 %6031
        %6033 = vadd.xlane.f32.xlu0 %v5874
        %v6034 = vpop.xlane.xlu0 %6033
        %6035 = vadd.xlane.f32.xlu0 %v5875
        %v6036 = vpop.xlane.xlu0 %6035
        %6037 = vadd.xlane.f32.xlu0 %v5876
        %v6038 = vpop.xlane.xlu0 %6037
        %6039 = vadd.xlane.f32.xlu0 %v5877
        %v6040 = vpop.xlane.xlu0 %6039
        %6041 = vadd.xlane.f32.xlu0 %v5878
        %v6042 = vpop.xlane.xlu0 %6041
        %6043 = vadd.xlane.f32.xlu0 %v5879
        %v6044 = vpop.xlane.xlu0 %6043
        %6045 = vadd.xlane.f32.xlu0 %v5880
        %v6046 = vpop.xlane.xlu0 %6045
        %6047 = vadd.xlane.f32.xlu0 %v5881
        %v6048 = vpop.xlane.xlu0 %6047
        %6049 = vadd.xlane.f32.xlu0 %v5882
        %v6050 = vpop.xlane.xlu0 %6049
        %6051 = vadd.xlane.f32.xlu0 %v5883
        %v6052 = vpop.xlane.xlu0 %6051
        %6053 = vadd.xlane.f32.xlu0 %v5884
        %v6054 = vpop.xlane.xlu0 %6053
        %6055 = vadd.xlane.f32.xlu0 %v5885
        %v6056 = vpop.xlane.xlu0 %6055
        %6057 = vadd.xlane.f32.xlu0 %v5886
        %v6058 = vpop.xlane.xlu0 %6057
        %6059 = vadd.xlane.f32.xlu0 %v5887
        %v6060 = vpop.xlane.xlu0 %6059
        %6061 = vadd.xlane.f32.xlu0 %v5888
        %v6062 = vpop.xlane.xlu0 %6061
        %6063 = vadd.xlane.f32.xlu0 %v5889
        %v6064 = vpop.xlane.xlu0 %6063
        %6065 = vadd.xlane.f32.xlu0 %v5890
        %v6066 = vpop.xlane.xlu0 %6065
        %6067 = vadd.xlane.f32.xlu0 %v5891
        %v6068 = vpop.xlane.xlu0 %6067
        %6069 = vadd.xlane.f32.xlu0 %v5892
        %v6070 = vpop.xlane.xlu0 %6069
        %6071 = vadd.xlane.f32.xlu0 %v5893
        %v6072 = vpop.xlane.xlu0 %6071
        %6073 = vadd.xlane.f32.xlu0 %v5894
        %v6074 = vpop.xlane.xlu0 %6073
        %6075 = vadd.xlane.f32.xlu0 %v5895
        %v6076 = vpop.xlane.xlu0 %6075
        %6077 = vadd.xlane.f32.xlu0 %v5896
        %v6078 = vpop.xlane.xlu0 %6077
        %6079 = vadd.xlane.f32.xlu0 %v5897
        %v6080 = vpop.xlane.xlu0 %6079
        %6081 = vadd.xlane.f32.xlu0 %v5898
        %v6082 = vpop.xlane.xlu0 %6081
        %6083 = vadd.xlane.f32.xlu0 %v5899
        %v6084 = vpop.xlane.xlu0 %6083
        %6085 = vadd.xlane.f32.xlu0 %v5900
        %v6086 = vpop.xlane.xlu0 %6085
        %6087 = vadd.xlane.f32.xlu0 %v5901
        %v6088 = vpop.xlane.xlu0 %6087
        %6089 = vadd.xlane.f32.xlu0 %v5902
        %v6090 = vpop.xlane.xlu0 %6089
        %6091 = vadd.xlane.f32.xlu0 %v5903
        %v6092 = vpop.xlane.xlu0 %6091
        %6093 = vadd.xlane.f32.xlu0 %v5904
        %v6094 = vpop.xlane.xlu0 %6093
        %6095 = vadd.xlane.f32.xlu0 %v5905
        %v6096 = vpop.xlane.xlu0 %6095
        %6097 = vadd.xlane.f32.xlu0 %v5906
        %v6098 = vpop.xlane.xlu0 %6097
        %6099 = vadd.xlane.f32.xlu0 %v5907
        %v6100 = vpop.xlane.xlu0 %6099
        %6101 = vadd.xlane.f32.xlu0 %v5908
        %v6102 = vpop.xlane.xlu0 %6101
        %6103 = vadd.xlane.f32.xlu0 %v5909
        %v6104 = vpop.xlane.xlu0 %6103
        %6105 = vadd.xlane.f32.xlu0 %v5910
        %v6106 = vpop.xlane.xlu0 %6105
        %6107 = vadd.xlane.f32.xlu0 %v5911
        %v6108 = vpop.xlane.xlu0 %6107
        %6109 = vadd.xlane.f32.xlu0 %v5912
        %v6110 = vpop.xlane.xlu0 %6109
        %6111 = vadd.xlane.f32.xlu0 %v5913
        %v6112 = vpop.xlane.xlu0 %6111
        %6113 = vadd.xlane.f32.xlu0 %v5914
        %v6114 = vpop.xlane.xlu0 %6113
        %6115 = vadd.xlane.f32.xlu0 %v5915
        %v6116 = vpop.xlane.xlu0 %6115
        %6117 = vadd.xlane.f32.xlu0 %v5916
        %v6118 = vpop.xlane.xlu0 %6117
        %6119 = vadd.xlane.f32.xlu0 %v5917
        %v6120 = vpop.xlane.xlu0 %6119
        %6121 = vadd.xlane.f32.xlu0 %v5918
        %v6122 = vpop.xlane.xlu0 %6121
        %6123 = vadd.xlane.f32.xlu0 %v5919
        %v6124 = vpop.xlane.xlu0 %6123
        %6125 = vadd.xlane.f32.xlu0 %v5920
        %v6126 = vpop.xlane.xlu0 %6125
        %6127 = vadd.xlane.f32.xlu0 %v5921
        %v6128 = vpop.xlane.xlu0 %6127
        %6129 = vadd.xlane.f32.xlu0 %v5922
        %v6130 = vpop.xlane.xlu0 %6129
        %6131 = vadd.xlane.f32.xlu0 %v5923
        %v6132 = vpop.xlane.xlu0 %6131
        %6133 = vadd.xlane.f32.xlu0 %v5924
        %v6134 = vpop.xlane.xlu0 %6133
        %6135 = vadd.xlane.f32.xlu0 %v5925
        %v6136 = vpop.xlane.xlu0 %6135
        %6137 = vadd.xlane.f32.xlu0 %v5926
        %v6138 = vpop.xlane.xlu0 %6137
        %6139 = vadd.xlane.f32.xlu0 %v5927
        %v6140 = vpop.xlane.xlu0 %6139
        %6141 = vadd.xlane.f32.xlu0 %v5928
        %v6142 = vpop.xlane.xlu0 %6141
        %6143 = vadd.xlane.f32.xlu0 %v5929
        %v6144 = vpop.xlane.xlu0 %6143
        %6145 = vadd.xlane.f32.xlu0 %v5930
        %v6146 = vpop.xlane.xlu0 %6145
        %6147 = vadd.xlane.f32.xlu0 %v5931
        %v6148 = vpop.xlane.xlu0 %6147
        %6149 = vadd.xlane.f32.xlu0 %v5932
        %v6150 = vpop.xlane.xlu0 %6149
        %6151 = vadd.xlane.f32.xlu0 %v5933
        %v6152 = vpop.xlane.xlu0 %6151
        %6153 = vadd.xlane.f32.xlu0 %v5934
        %v6154 = vpop.xlane.xlu0 %6153
        %6155 = vadd.xlane.f32.xlu0 %v5935
        %v6156 = vpop.xlane.xlu0 %6155
        %6157 = vadd.xlane.f32.xlu0 %v5936
        %v6158 = vpop.xlane.xlu0 %6157
        %6159 = vadd.xlane.f32.xlu0 %v5937
        %v6160 = vpop.xlane.xlu0 %6159
        %6161 = vadd.xlane.f32.xlu0 %v5938
        %v6162 = vpop.xlane.xlu0 %6161
        %6163 = vadd.xlane.f32.xlu0 %v5939
        %v6164 = vpop.xlane.xlu0 %6163
        %6165 = vadd.xlane.f32.xlu0 %v5940
        %v6166 = vpop.xlane.xlu0 %6165
        %6167 = vadd.xlane.f32.xlu0 %v5941
        %v6168 = vpop.xlane.xlu0 %6167
        %6169 = vadd.xlane.f32.xlu0 %v5942
        %v6170 = vpop.xlane.xlu0 %6169
        %6171 = vadd.xlane.f32.xlu0 %v5943
        %v6172 = vpop.xlane.xlu0 %6171
        %6173 = vadd.xlane.f32.xlu0 %v5944
        %v6174 = vpop.xlane.xlu0 %6173
        %6175 = vadd.xlane.f32.xlu0 %v5945
        %v6176 = vpop.xlane.xlu0 %6175
        %6177 = vadd.xlane.f32.xlu0 %v5946
        %v6178 = vpop.xlane.xlu0 %6177
        %6179 = vadd.xlane.f32.xlu0 %v5947
        %v6180 = vpop.xlane.xlu0 %6179
        %6181 = vadd.xlane.f32.xlu0 %v5948
        %v6182 = vpop.xlane.xlu0 %6181
        %6183 = vadd.xlane.f32.xlu0 %v5949
        %v6184 = vpop.xlane.xlu0 %6183
        %6185 = vadd.xlane.f32.xlu0 %v5950
        %v6186 = vpop.xlane.xlu0 %6185
        %6187 = vadd.xlane.f32.xlu0 %v5951
        %v6188 = vpop.xlane.xlu0 %6187
        %6189 = vadd.xlane.f32.xlu0 %v5952
        %v6190 = vpop.xlane.xlu0 %6189
        %6191 = vadd.xlane.f32.xlu0 %v5953
        %v6192 = vpop.xlane.xlu0 %6191
        %6193 = vadd.xlane.f32.xlu0 %v5954
        %v6194 = vpop.xlane.xlu0 %6193
        %6195 = vadd.xlane.f32.xlu0 %v5955
        %v6196 = vpop.xlane.xlu0 %6195
        %6197 = vadd.xlane.f32.xlu0 %v5956
        %v6198 = vpop.xlane.xlu0 %6197
        %6199 = vadd.xlane.f32.xlu0 %v5957
        %v6200 = vpop.xlane.xlu0 %6199
        %6201 = vadd.xlane.f32.xlu0 %v5958
        %v6202 = vpop.xlane.xlu0 %6201
        %6203 = vadd.xlane.f32.xlu0 %v5959
        %v6204 = vpop.xlane.xlu0 %6203
        %6205 = vadd.xlane.f32.xlu0 %v5960
        %v6206 = vpop.xlane.xlu0 %6205
        %6207 = vadd.xlane.f32.xlu0 %v5961
        %v6208 = vpop.xlane.xlu0 %6207
        %6209 = vadd.xlane.f32.xlu0 %v5962
        %v6210 = vpop.xlane.xlu0 %6209
        %6211 = vadd.xlane.f32.xlu0 %v5963
        %v6212 = vpop.xlane.xlu0 %6211
        %6213 = vadd.xlane.f32.xlu0 %v5964
        %v6214 = vpop.xlane.xlu0 %6213
        %6215 = vadd.xlane.f32.xlu0 %v5965
        %v6216 = vpop.xlane.xlu0 %6215
        %6217 = vadd.xlane.f32.xlu0 %v5966
        %v6218 = vpop.xlane.xlu0 %6217
        %6219 = vadd.xlane.f32.xlu0 %v5967
        %v6220 = vpop.xlane.xlu0 %6219
        %6221 = vadd.xlane.f32.xlu0 %v5968
        %v6222 = vpop.xlane.xlu0 %6221
        %6223 = vadd.xlane.f32.xlu0 %v5969
        %v6224 = vpop.xlane.xlu0 %6223
        %6225 = vadd.xlane.f32.xlu0 %v5970
        %v6226 = vpop.xlane.xlu0 %6225
        %v6227 = vadd.f32 %v5972, 0.0
        %v6228 = vadd.f32 %v5974, 0.0
        %v6229 = vadd.f32 %v5976, 0.0
        %v6230 = vadd.f32 %v5978, 0.0
        %v6231 = vadd.f32 %v5980, 0.0
        %v6232 = vadd.f32 %v5982, 0.0
        %v6233 = vadd.f32 %v5984, 0.0
        %v6234 = vadd.f32 %v5986, 0.0
        %v6235 = vadd.f32 %v5988, 0.0
        %v6236 = vadd.f32 %v5990, 0.0
        %v6237 = vadd.f32 %v5992, 0.0
        %v6238 = vadd.f32 %v5994, 0.0
        %v6239 = vadd.f32 %v5996, 0.0
        %v6240 = vadd.f32 %v5998, 0.0
        %v6241 = vadd.f32 %v6000, 0.0
        %v6242 = vadd.f32 %v6002, 0.0
        %v6243 = vadd.f32 %v6004, 0.0
        %v6244 = vadd.f32 %v6006, 0.0
        %v6245 = vadd.f32 %v6008, 0.0
        %v6246 = vadd.f32 %v6010, 0.0
        %v6247 = vadd.f32 %v6012, 0.0
        %v6248 = vadd.f32 %v6014, 0.0
        %v6249 = vadd.f32 %v6016, 0.0
        %v6250 = vadd.f32 %v6018, 0.0
        %v6251 = vadd.f32 %v6020, 0.0
        %v6252 = vadd.f32 %v6022, 0.0
        %v6253 = vadd.f32 %v6024, 0.0
        %v6254 = vadd.f32 %v6026, 0.0
        %v6255 = vadd.f32 %v6028, 0.0
        %v6256 = vadd.f32 %v6030, 0.0
        %v6257 = vadd.f32 %v6032, 0.0
        %v6258 = vadd.f32 %v6034, 0.0
        %v6259 = vadd.f32 %v6036, 0.0
        %v6260 = vadd.f32 %v6038, 0.0
        %v6261 = vadd.f32 %v6040, 0.0
        %v6262 = vadd.f32 %v6042, 0.0
        %v6263 = vadd.f32 %v6044, 0.0
        %v6264 = vadd.f32 %v6046, 0.0
        %v6265 = vadd.f32 %v6048, 0.0
        %v6266 = vadd.f32 %v6050, 0.0
        %v6267 = vadd.f32 %v6052, 0.0
        %v6268 = vadd.f32 %v6054, 0.0
        %v6269 = vadd.f32 %v6056, 0.0
        %v6270 = vadd.f32 %v6058, 0.0
        %v6271 = vadd.f32 %v6060, 0.0
        %v6272 = vadd.f32 %v6062, 0.0
        %v6273 = vadd.f32 %v6064, 0.0
        %v6274 = vadd.f32 %v6066, 0.0
        %v6275 = vadd.f32 %v6068, 0.0
        %v6276 = vadd.f32 %v6070, 0.0
        %v6277 = vadd.f32 %v6072, 0.0
        %v6278 = vadd.f32 %v6074, 0.0
        %v6279 = vadd.f32 %v6076, 0.0
        %v6280 = vadd.f32 %v6078, 0.0
        %v6281 = vadd.f32 %v6080, 0.0
        %v6282 = vadd.f32 %v6082, 0.0
        %v6283 = vadd.f32 %v6084, 0.0
        %v6284 = vadd.f32 %v6086, 0.0
        %v6285 = vadd.f32 %v6088, 0.0
        %v6286 = vadd.f32 %v6090, 0.0
        %v6287 = vadd.f32 %v6092, 0.0
        %v6288 = vadd.f32 %v6094, 0.0
        %v6289 = vadd.f32 %v6096, 0.0
        %v6290 = vadd.f32 %v6098, 0.0
        %v6291 = vadd.f32 %v6100, 0.0
        %v6292 = vadd.f32 %v6102, 0.0
        %v6293 = vadd.f32 %v6104, 0.0
        %v6294 = vadd.f32 %v6106, 0.0
        %v6295 = vadd.f32 %v6108, 0.0
        %v6296 = vadd.f32 %v6110, 0.0
        %v6297 = vadd.f32 %v6112, 0.0
        %v6298 = vadd.f32 %v6114, 0.0
        %v6299 = vadd.f32 %v6116, 0.0
        %v6300 = vadd.f32 %v6118, 0.0
        %v6301 = vadd.f32 %v6120, 0.0
        %v6302 = vadd.f32 %v6122, 0.0
        %v6303 = vadd.f32 %v6124, 0.0
        %v6304 = vadd.f32 %v6126, 0.0
        %v6305 = vadd.f32 %v6128, 0.0
        %v6306 = vadd.f32 %v6130, 0.0
        %v6307 = vadd.f32 %v6132, 0.0
        %v6308 = vadd.f32 %v6134, 0.0
        %v6309 = vadd.f32 %v6136, 0.0
        %v6310 = vadd.f32 %v6138, 0.0
        %v6311 = vadd.f32 %v6140, 0.0
        %v6312 = vadd.f32 %v6142, 0.0
        %v6313 = vadd.f32 %v6144, 0.0
        %v6314 = vadd.f32 %v6146, 0.0
        %v6315 = vadd.f32 %v6148, 0.0
        %v6316 = vadd.f32 %v6150, 0.0
        %v6317 = vadd.f32 %v6152, 0.0
        %v6318 = vadd.f32 %v6154, 0.0
        %v6319 = vadd.f32 %v6156, 0.0
        %v6320 = vadd.f32 %v6158, 0.0
        %v6321 = vadd.f32 %v6160, 0.0
        %v6322 = vadd.f32 %v6162, 0.0
        %v6323 = vadd.f32 %v6164, 0.0
        %v6324 = vadd.f32 %v6166, 0.0
        %v6325 = vadd.f32 %v6168, 0.0
        %v6326 = vadd.f32 %v6170, 0.0
        %v6327 = vadd.f32 %v6172, 0.0
        %v6328 = vadd.f32 %v6174, 0.0
        %v6329 = vadd.f32 %v6176, 0.0
        %v6330 = vadd.f32 %v6178, 0.0
        %v6331 = vadd.f32 %v6180, 0.0
        %v6332 = vadd.f32 %v6182, 0.0
        %v6333 = vadd.f32 %v6184, 0.0
        %v6334 = vadd.f32 %v6186, 0.0
        %v6335 = vadd.f32 %v6188, 0.0
        %v6336 = vadd.f32 %v6190, 0.0
        %v6337 = vadd.f32 %v6192, 0.0
        %v6338 = vadd.f32 %v6194, 0.0
        %v6339 = vadd.f32 %v6196, 0.0
        %v6340 = vadd.f32 %v6198, 0.0
        %v6341 = vadd.f32 %v6200, 0.0
        %v6342 = vadd.f32 %v6202, 0.0
        %v6343 = vadd.f32 %v6204, 0.0
        %v6344 = vadd.f32 %v6206, 0.0
        %v6345 = vadd.f32 %v6208, 0.0
        %v6346 = vadd.f32 %v6210, 0.0
        %v6347 = vadd.f32 %v6212, 0.0
        %v6348 = vadd.f32 %v6214, 0.0
        %v6349 = vadd.f32 %v6216, 0.0
        %v6350 = vadd.f32 %v6218, 0.0
        %v6351 = vadd.f32 %v6220, 0.0
        %v6352 = vadd.f32 %v6222, 0.0
        %v6353 = vadd.f32 %v6224, 0.0
        %v6354 = vadd.f32 %v6226, 0.0
        %v6355 = vmul.f32 %v6227, 0.0078125
        %v6356 = vmul.f32 %v6228, 0.0078125
        %v6357 = vmul.f32 %v6229, 0.0078125
        %v6358 = vmul.f32 %v6230, 0.0078125
        %v6359 = vmul.f32 %v6231, 0.0078125
        %v6360 = vmul.f32 %v6232, 0.0078125
        %v6361 = vmul.f32 %v6233, 0.0078125
        %v6362 = vmul.f32 %v6234, 0.0078125
        %v6363 = vmul.f32 %v6235, 0.0078125
        %v6364 = vmul.f32 %v6236, 0.0078125
        %v6365 = vmul.f32 %v6237, 0.0078125
        %v6366 = vmul.f32 %v6238, 0.0078125
        %v6367 = vmul.f32 %v6239, 0.0078125
        %v6368 = vmul.f32 %v6240, 0.0078125
        %v6369 = vmul.f32 %v6241, 0.0078125
        %v6370 = vmul.f32 %v6242, 0.0078125
        %v6371 = vmul.f32 %v6243, 0.0078125
        %v6372 = vmul.f32 %v6244, 0.0078125
        %v6373 = vmul.f32 %v6245, 0.0078125
        %v6374 = vmul.f32 %v6246, 0.0078125
        %v6375 = vmul.f32 %v6247, 0.0078125
        %v6376 = vmul.f32 %v6248, 0.0078125
        %v6377 = vmul.f32 %v6249, 0.0078125
        %v6378 = vmul.f32 %v6250, 0.0078125
        %v6379 = vmul.f32 %v6251, 0.0078125
        %v6380 = vmul.f32 %v6252, 0.0078125
        %v6381 = vmul.f32 %v6253, 0.0078125
        %v6382 = vmul.f32 %v6254, 0.0078125
        %v6383 = vmul.f32 %v6255, 0.0078125
        %v6384 = vmul.f32 %v6256, 0.0078125
        %v6385 = vmul.f32 %v6257, 0.0078125
        %v6386 = vmul.f32 %v6258, 0.0078125
        %v6387 = vmul.f32 %v6259, 0.0078125
        %v6388 = vmul.f32 %v6260, 0.0078125
        %v6389 = vmul.f32 %v6261, 0.0078125
        %v6390 = vmul.f32 %v6262, 0.0078125
        %v6391 = vmul.f32 %v6263, 0.0078125
        %v6392 = vmul.f32 %v6264, 0.0078125
        %v6393 = vmul.f32 %v6265, 0.0078125
        %v6394 = vmul.f32 %v6266, 0.0078125
        %v6395 = vmul.f32 %v6267, 0.0078125
        %v6396 = vmul.f32 %v6268, 0.0078125
        %v6397 = vmul.f32 %v6269, 0.0078125
        %v6398 = vmul.f32 %v6270, 0.0078125
        %v6399 = vmul.f32 %v6271, 0.0078125
        %v6400 = vmul.f32 %v6272, 0.0078125
        %v6401 = vmul.f32 %v6273, 0.0078125
        %v6402 = vmul.f32 %v6274, 0.0078125
        %v6403 = vmul.f32 %v6275, 0.0078125
        %v6404 = vmul.f32 %v6276, 0.0078125
        %v6405 = vmul.f32 %v6277, 0.0078125
        %v6406 = vmul.f32 %v6278, 0.0078125
        %v6407 = vmul.f32 %v6279, 0.0078125
        %v6408 = vmul.f32 %v6280, 0.0078125
        %v6409 = vmul.f32 %v6281, 0.0078125
        %v6410 = vmul.f32 %v6282, 0.0078125
        %v6411 = vmul.f32 %v6283, 0.0078125
        %v6412 = vmul.f32 %v6284, 0.0078125
        %v6413 = vmul.f32 %v6285, 0.0078125
        %v6414 = vmul.f32 %v6286, 0.0078125
        %v6415 = vmul.f32 %v6287, 0.0078125
        %v6416 = vmul.f32 %v6288, 0.0078125
        %v6417 = vmul.f32 %v6289, 0.0078125
        %v6418 = vmul.f32 %v6290, 0.0078125
        %v6419 = vmul.f32 %v6291, 0.0078125
        %v6420 = vmul.f32 %v6292, 0.0078125
        %v6421 = vmul.f32 %v6293, 0.0078125
        %v6422 = vmul.f32 %v6294, 0.0078125
        %v6423 = vmul.f32 %v6295, 0.0078125
        %v6424 = vmul.f32 %v6296, 0.0078125
        %v6425 = vmul.f32 %v6297, 0.0078125
        %v6426 = vmul.f32 %v6298, 0.0078125
        %v6427 = vmul.f32 %v6299, 0.0078125
        %v6428 = vmul.f32 %v6300, 0.0078125
        %v6429 = vmul.f32 %v6301, 0.0078125
        %v6430 = vmul.f32 %v6302, 0.0078125
        %v6431 = vmul.f32 %v6303, 0.0078125
        %v6432 = vmul.f32 %v6304, 0.0078125
        %v6433 = vmul.f32 %v6305, 0.0078125
        %v6434 = vmul.f32 %v6306, 0.0078125
        %v6435 = vmul.f32 %v6307, 0.0078125
        %v6436 = vmul.f32 %v6308, 0.0078125
        %v6437 = vmul.f32 %v6309, 0.0078125
        %v6438 = vmul.f32 %v6310, 0.0078125
        %v6439 = vmul.f32 %v6311, 0.0078125
        %v6440 = vmul.f32 %v6312, 0.0078125
        %v6441 = vmul.f32 %v6313, 0.0078125
        %v6442 = vmul.f32 %v6314, 0.0078125
        %v6443 = vmul.f32 %v6315, 0.0078125
        %v6444 = vmul.f32 %v6316, 0.0078125
        %v6445 = vmul.f32 %v6317, 0.0078125
        %v6446 = vmul.f32 %v6318, 0.0078125
        %v6447 = vmul.f32 %v6319, 0.0078125
        %v6448 = vmul.f32 %v6320, 0.0078125
        %v6449 = vmul.f32 %v6321, 0.0078125
        %v6450 = vmul.f32 %v6322, 0.0078125
        %v6451 = vmul.f32 %v6323, 0.0078125
        %v6452 = vmul.f32 %v6324, 0.0078125
        %v6453 = vmul.f32 %v6325, 0.0078125
        %v6454 = vmul.f32 %v6326, 0.0078125
        %v6455 = vmul.f32 %v6327, 0.0078125
        %v6456 = vmul.f32 %v6328, 0.0078125
        %v6457 = vmul.f32 %v6329, 0.0078125
        %v6458 = vmul.f32 %v6330, 0.0078125
        %v6459 = vmul.f32 %v6331, 0.0078125
        %v6460 = vmul.f32 %v6332, 0.0078125
        %v6461 = vmul.f32 %v6333, 0.0078125
        %v6462 = vmul.f32 %v6334, 0.0078125
        %v6463 = vmul.f32 %v6335, 0.0078125
        %v6464 = vmul.f32 %v6336, 0.0078125
        %v6465 = vmul.f32 %v6337, 0.0078125
        %v6466 = vmul.f32 %v6338, 0.0078125
        %v6467 = vmul.f32 %v6339, 0.0078125
        %v6468 = vmul.f32 %v6340, 0.0078125
        %v6469 = vmul.f32 %v6341, 0.0078125
        %v6470 = vmul.f32 %v6342, 0.0078125
        %v6471 = vmul.f32 %v6343, 0.0078125
        %v6472 = vmul.f32 %v6344, 0.0078125
        %v6473 = vmul.f32 %v6345, 0.0078125
        %v6474 = vmul.f32 %v6346, 0.0078125
        %v6475 = vmul.f32 %v6347, 0.0078125
        %v6476 = vmul.f32 %v6348, 0.0078125
        %v6477 = vmul.f32 %v6349, 0.0078125
        %v6478 = vmul.f32 %v6350, 0.0078125
        %v6479 = vmul.f32 %v6351, 0.0078125
        %v6480 = vmul.f32 %v6352, 0.0078125
        %v6481 = vmul.f32 %v6353, 0.0078125
        %v6482 = vmul.f32 %v6354, 0.0078125
        %6483 = vst [vmem:[%s325 + $0x280] sm:$0xff] %v6355
        %6484 = vst [vmem:[%s325 + $0x288] sm:$0xff] %v6356
        %6485 = vst [vmem:[%s325 + $0x290] sm:$0xff] %v6357
        %6486 = vst [vmem:[%s325 + $0x298] sm:$0xff] %v6358
        %6487 = vst [vmem:[%s325 + $0x2a0] sm:$0xff] %v6359
        %6488 = vst [vmem:[%s325 + $0x2a8] sm:$0xff] %v6360
        %6489 = vst [vmem:[%s325 + $0x2b0] sm:$0xff] %v6361
        %6490 = vst [vmem:[%s325 + $0x2b8] sm:$0xff] %v6362
        %6491 = vst [vmem:[%s325 + $0x2c0] sm:$0xff] %v6363
        %6492 = vst [vmem:[%s325 + $0x2c8] sm:$0xff] %v6364
        %6493 = vst [vmem:[%s325 + $0x2d0] sm:$0xff] %v6365
        %6494 = vst [vmem:[%s325 + $0x2d8] sm:$0xff] %v6366
        %6495 = vst [vmem:[%s325 + $0x2e0] sm:$0xff] %v6367
        %6496 = vst [vmem:[%s325 + $0x2e8] sm:$0xff] %v6368
        %6497 = vst [vmem:[%s325 + $0x2f0] sm:$0xff] %v6369
        %6498 = vst [vmem:[%s325 + $0x2f8] sm:$0xff] %v6370
        %6499 = vst [vmem:[%s325 + $0x300] sm:$0xff] %v6371
        %6500 = vst [vmem:[%s325 + $0x308] sm:$0xff] %v6372
        %6501 = vst [vmem:[%s325 + $0x310] sm:$0xff] %v6373
        %6502 = vst [vmem:[%s325 + $0x318] sm:$0xff] %v6374
        %6503 = vst [vmem:[%s325 + $0x320] sm:$0xff] %v6375
        %6504 = vst [vmem:[%s325 + $0x328] sm:$0xff] %v6376
        %6505 = vst [vmem:[%s325 + $0x330] sm:$0xff] %v6377
        %6506 = vst [vmem:[%s325 + $0x338] sm:$0xff] %v6378
        %6507 = vst [vmem:[%s325 + $0x340] sm:$0xff] %v6379
        %6508 = vst [vmem:[%s325 + $0x348] sm:$0xff] %v6380
        %6509 = vst [vmem:[%s325 + $0x350] sm:$0xff] %v6381
        %6510 = vst [vmem:[%s325 + $0x358] sm:$0xff] %v6382
        %6511 = vst [vmem:[%s325 + $0x360] sm:$0xff] %v6383
        %6512 = vst [vmem:[%s325 + $0x368] sm:$0xff] %v6384
        %6513 = vst [vmem:[%s325 + $0x370] sm:$0xff] %v6385
        %6514 = vst [vmem:[%s325 + $0x378] sm:$0xff] %v6386
        %6515 = vst [vmem:[%s325 + $0x380] sm:$0xff] %v6387
        %6516 = vst [vmem:[%s325 + $0x388] sm:$0xff] %v6388
        %6517 = vst [vmem:[%s325 + $0x390] sm:$0xff] %v6389
        %6518 = vst [vmem:[%s325 + $0x398] sm:$0xff] %v6390
        %6519 = vst [vmem:[%s325 + $0x3a0] sm:$0xff] %v6391
        %6520 = vst [vmem:[%s325 + $0x3a8] sm:$0xff] %v6392
        %6521 = vst [vmem:[%s325 + $0x3b0] sm:$0xff] %v6393
        %6522 = vst [vmem:[%s325 + $0x3b8] sm:$0xff] %v6394
        %6523 = vst [vmem:[%s325 + $0x3c0] sm:$0xff] %v6395
        %6524 = vst [vmem:[%s325 + $0x3c8] sm:$0xff] %v6396
        %6525 = vst [vmem:[%s325 + $0x3d0] sm:$0xff] %v6397
        %6526 = vst [vmem:[%s325 + $0x3d8] sm:$0xff] %v6398
        %6527 = vst [vmem:[%s325 + $0x3e0] sm:$0xff] %v6399
        %6528 = vst [vmem:[%s325 + $0x3e8] sm:$0xff] %v6400
        %6529 = vst [vmem:[%s325 + $0x3f0] sm:$0xff] %v6401
        %6530 = vst [vmem:[%s325 + $0x3f8] sm:$0xff] %v6402
        %6531 = vst [vmem:[%s325 + $0x400] sm:$0xff] %v6403
        %6532 = vst [vmem:[%s325 + $0x408] sm:$0xff] %v6404
        %6533 = vst [vmem:[%s325 + $0x410] sm:$0xff] %v6405
        %6534 = vst [vmem:[%s325 + $0x418] sm:$0xff] %v6406
        %6535 = vst [vmem:[%s325 + $0x420] sm:$0xff] %v6407
        %6536 = vst [vmem:[%s325 + $0x428] sm:$0xff] %v6408
        %6537 = vst [vmem:[%s325 + $0x430] sm:$0xff] %v6409
        %6538 = vst [vmem:[%s325 + $0x438] sm:$0xff] %v6410
        %6539 = vst [vmem:[%s325 + $0x440] sm:$0xff] %v6411
        %6540 = vst [vmem:[%s325 + $0x448] sm:$0xff] %v6412
        %6541 = vst [vmem:[%s325 + $0x450] sm:$0xff] %v6413
        %6542 = vst [vmem:[%s325 + $0x458] sm:$0xff] %v6414
        %6543 = vst [vmem:[%s325 + $0x460] sm:$0xff] %v6415
        %6544 = vst [vmem:[%s325 + $0x468] sm:$0xff] %v6416
        %6545 = vst [vmem:[%s325 + $0x470] sm:$0xff] %v6417
        %6546 = vst [vmem:[%s325 + $0x478] sm:$0xff] %v6418
        %6547 = vst [vmem:[%s325 + $0x480] sm:$0xff] %v6419
        %6548 = vst [vmem:[%s325 + $0x488] sm:$0xff] %v6420
        %6549 = vst [vmem:[%s325 + $0x490] sm:$0xff] %v6421
        %6550 = vst [vmem:[%s325 + $0x498] sm:$0xff] %v6422
        %6551 = vst [vmem:[%s325 + $0x4a0] sm:$0xff] %v6423
        %6552 = vst [vmem:[%s325 + $0x4a8] sm:$0xff] %v6424
        %6553 = vst [vmem:[%s325 + $0x4b0] sm:$0xff] %v6425
        %6554 = vst [vmem:[%s325 + $0x4b8] sm:$0xff] %v6426
        %6555 = vst [vmem:[%s325 + $0x4c0] sm:$0xff] %v6427
        %6556 = vst [vmem:[%s325 + $0x4c8] sm:$0xff] %v6428
        %6557 = vst [vmem:[%s325 + $0x4d0] sm:$0xff] %v6429
        %6558 = vst [vmem:[%s325 + $0x4d8] sm:$0xff] %v6430
        %6559 = vst [vmem:[%s325 + $0x4e0] sm:$0xff] %v6431
        %6560 = vst [vmem:[%s325 + $0x4e8] sm:$0xff] %v6432
        %6561 = vst [vmem:[%s325 + $0x4f0] sm:$0xff] %v6433
        %6562 = vst [vmem:[%s325 + $0x4f8] sm:$0xff] %v6434
        %6563 = vst [vmem:[%s325 + $0x500] sm:$0xff] %v6435
        %6564 = vst [vmem:[%s325 + $0x508] sm:$0xff] %v6436
        %6565 = vst [vmem:[%s325 + $0x510] sm:$0xff] %v6437
        %6566 = vst [vmem:[%s325 + $0x518] sm:$0xff] %v6438
        %6567 = vst [vmem:[%s325 + $0x520] sm:$0xff] %v6439
        %6568 = vst [vmem:[%s325 + $0x528] sm:$0xff] %v6440
        %6569 = vst [vmem:[%s325 + $0x530] sm:$0xff] %v6441
        %6570 = vst [vmem:[%s325 + $0x538] sm:$0xff] %v6442
        %6571 = vst [vmem:[%s325 + $0x540] sm:$0xff] %v6443
        %6572 = vst [vmem:[%s325 + $0x548] sm:$0xff] %v6444
        %6573 = vst [vmem:[%s325 + $0x550] sm:$0xff] %v6445
        %6574 = vst [vmem:[%s325 + $0x558] sm:$0xff] %v6446
        %6575 = vst [vmem:[%s325 + $0x560] sm:$0xff] %v6447
        %6576 = vst [vmem:[%s325 + $0x568] sm:$0xff] %v6448
        %6577 = vst [vmem:[%s325 + $0x570] sm:$0xff] %v6449
        %6578 = vst [vmem:[%s325 + $0x578] sm:$0xff] %v6450
        %6579 = vst [vmem:[%s325 + $0x580] sm:$0xff] %v6451
        %6580 = vst [vmem:[%s325 + $0x588] sm:$0xff] %v6452
        %6581 = vst [vmem:[%s325 + $0x590] sm:$0xff] %v6453
        %6582 = vst [vmem:[%s325 + $0x598] sm:$0xff] %v6454
        %6583 = vst [vmem:[%s325 + $0x5a0] sm:$0xff] %v6455
        %6584 = vst [vmem:[%s325 + $0x5a8] sm:$0xff] %v6456
        %6585 = vst [vmem:[%s325 + $0x5b0] sm:$0xff] %v6457
        %6586 = vst [vmem:[%s325 + $0x5b8] sm:$0xff] %v6458
        %6587 = vst [vmem:[%s325 + $0x5c0] sm:$0xff] %v6459
        %6588 = vst [vmem:[%s325 + $0x5c8] sm:$0xff] %v6460
        %6589 = vst [vmem:[%s325 + $0x5d0] sm:$0xff] %v6461
        %6590 = vst [vmem:[%s325 + $0x5d8] sm:$0xff] %v6462
        %6591 = vst [vmem:[%s325 + $0x5e0] sm:$0xff] %v6463
        %6592 = vst [vmem:[%s325 + $0x5e8] sm:$0xff] %v6464
        %6593 = vst [vmem:[%s325 + $0x5f0] sm:$0xff] %v6465
        %6594 = vst [vmem:[%s325 + $0x5f8] sm:$0xff] %v6466
        %6595 = vst [vmem:[%s325 + $0x600] sm:$0xff] %v6467
        %6596 = vst [vmem:[%s325 + $0x608] sm:$0xff] %v6468
        %6597 = vst [vmem:[%s325 + $0x610] sm:$0xff] %v6469
        %6598 = vst [vmem:[%s325 + $0x618] sm:$0xff] %v6470
        %6599 = vst [vmem:[%s325 + $0x620] sm:$0xff] %v6471
        %6600 = vst [vmem:[%s325 + $0x628] sm:$0xff] %v6472
        %6601 = vst [vmem:[%s325 + $0x630] sm:$0xff] %v6473
        %6602 = vst [vmem:[%s325 + $0x638] sm:$0xff] %v6474
        %6603 = vst [vmem:[%s325 + $0x640] sm:$0xff] %v6475
        %6604 = vst [vmem:[%s325 + $0x648] sm:$0xff] %v6476
        %6605 = vst [vmem:[%s325 + $0x650] sm:$0xff] %v6477
        %6606 = vst [vmem:[%s325 + $0x658] sm:$0xff] %v6478
        %6607 = vst [vmem:[%s325 + $0x660] sm:$0xff] %v6479
        %6608 = vst [vmem:[%s325 + $0x668] sm:$0xff] %v6480
        %6609 = vst [vmem:[%s325 + $0x670] sm:$0xff] %v6481
        %6610 = vst [vmem:[%s325 + $0x678] sm:$0xff] %v6482
        %s6611 = sand.u32 %s185, 1
        %s6612 = scalar_lea.sflag [#allocation4], %s6611
        %s6613 = sand.u32 %s185, 1
        %s6614 = smul.addr %s6613, 1664
        %s6615 = scalar_lea.vmem [#allocation8], %s6614
        // Predicated region
        $region61: #{tpu_custom_call.1} parent=47 // pred_check
          %p6616 = pneg %p195
        $region62: #{tpu_custom_call.1} parent=47 // pred_check_branch
          %6618 = sbr.rel (%p6616) target = $region64
        $region63: #{tpu_custom_call.1} parent=47 // pred_region
          %s6620 = ssub.s32 26624, 26624
          %6621 = vsyncadd %s6612, %s6620
          %s6622 = smul.addr %s25, 208
          %s6623 = smul.addr %s6622, 128
          %s6624 = scalar_lea.hbm %s7, %s6623
          %s6625 = sshll.u32 %s6615, 4
          %s6626 = int_to_ptr.vmem [resolvable:$true] %s6625
          %6631 = dma.vmem_to_hbm [thread:$0]  %s6626, 26624, %s6624, %s6612, 128, 128, 8
        $region64: #{tpu_custom_call.1} parent=47 // pred_fallthru
          _
      $region48: #{tpu_custom_call.1} parent=5 // pred_fallthru
        _
      %p6632 = scmp.le.s32.totalorder 2, %s20
      // Predicated region
      $region65: #{tpu_custom_call.1} parent=5 // pred_check
        %p6633 = pneg %p6632
      $region66: #{tpu_custom_call.1} parent=5 // pred_check_branch
        %6635 = sbr.rel (%p6633) target = $region68
      $region67: #{tpu_custom_call.1} parent=5 // pred_region
        %s6636 = ssub.s32 %s20, 2
        // Predicated region
        $region69: #{tpu_custom_call.1} parent=67 // pred_check
          %p6637 = pneg %p201
        $region70: #{tpu_custom_call.1} parent=67 // pred_check_branch
          %6639 = sbr.rel (%p6637) target = $region72
        $region71: #{tpu_custom_call.1} parent=67 // pred_region
          %s6640 = sand.u32 %s186, 1
          %s6641 = scalar_lea.sflag [#allocation4], %s6640
          %s6642 = sand.u32 %s186, 1
          %s6643 = smul.addr %s6642, 1664
          %s6644 = scalar_lea.vmem [#allocation8], %s6643
          %6645 = dma.done %s6641, 26624
        $region72: #{tpu_custom_call.1} parent=67 // pred_fallthru
          _
      $region68: #{tpu_custom_call.1} parent=5 // pred_fallthru
        _
    $region6: #{tpu_custom_call.1} parent=1 // loop_footer
      %s24 = sadd.s32 1, %s20
    $region7: #{tpu_custom_call.1} parent=1 // loop_footer_branch
      %19 = sbr.rel target = $region3
    $region8: #{tpu_custom_call.1} parent=1 // loop_exit
      _
    %6646 = vsyncpa [#allocation3], 1
    %s6647 = scalar_lea.sflag [#allocation3], 1
    %6648 = vsyncpa %s6647, 1
    %6649 = vsyncpa [#allocation6], 1
    %6650 = vsyncpa [#allocation4], 1
    %s6651 = scalar_lea.sflag [#allocation4], 1
    %6652 = vsyncpa %s6651, 1

</llo_original>
